<compile_context>
chip_gen: v7x
topology: tpu7x:2x2x1
jax: 0.10.0
libtpu: 0.0.40
codegen_flags: <defaults>
</compile_context>

<pallas_src>
import functools
import math

import jax
import jax.numpy as jnp
from jax.experimental import pallas as pl
from jax.experimental.pallas import tpu as pltpu


def _round_up(x, m):
    return ((x + m - 1) // m) * m


def _elu(x):
    # F.elu with alpha=1; exp() is only *selected* for x <= 0 and its argument is
    # clamped so the unselected branch cannot overflow.
    return jnp.where(x > 0, x, jnp.exp(jnp.minimum(x, 0.0)) - 1.0)


_NEG_BIG = -1e30  # "-inf" stand-in for masked softmax logits (avoids inf - inf)


def _outer2_attention_kernel(seq1_ref, seq2_ref, ctx_ref,
                             wm1t_ref, bm1_ref, wm2t_ref, bm2_ref,
                             wc1t_ref, wc2t_ref, win_ref, wint_ref,
                             out_ref, *, a_true, b_true, lane1, use_context):
    """One batch block (BT examples) per grid step.

    seq1_ref: (BT*Ap, E1)  flattened, Ap = round_up(a_true, 8)
    seq2_ref: (BT*Bp, E2)  flattened, Bp = round_up(b_true, 8)
    ctx_ref : (BT, C)
    out_ref : (BT, lane1 + lane2) dense slab: [att1 | 0-pad | att2 | 0-pad]
    """
    f32 = jnp.float32
    bt = ctx_ref.shape[0]
    e1 = seq1_ref.shape[-1]
    e2 = seq2_ref.shape[-1]
    a_pad = seq1_ref.shape[0] // bt
    b_pad = seq2_ref.shape[0] // bt
    lane2 = out_ref.shape[-1] - lane1

    seq1 = seq1_ref[...]                                               # (BT*Ap, E1)
    seq2 = seq2_ref[...]                                               # (BT*Bp, E2)

    # --- projections: flattened rows feed the MXU densely (weights pre-transposed) ---
    m1 = jnp.dot(seq1, wm1t_ref[...], preferred_element_type=f32)      # (BT*Ap, E1)
    m2 = jnp.dot(seq2, wm2t_ref[...], preferred_element_type=f32)      # (BT*Bp, E2)
    z1 = m1.reshape(bt, a_pad, e1) + bm1_ref[...]                      # (BT, Ap, E1)
    z2 = m2.reshape(bt, b_pad, e2) + bm2_ref[...]                      # (BT, Bp, E2)

    if use_context:
        # context projection hoisted to one (BT, C) @ (C, E) matmul per block
        ctx = ctx_ref[...]                                             # (BT, C)
        c1 = jnp.dot(ctx, wc1t_ref[...], preferred_element_type=f32)   # (BT, E1)
        c2 = jnp.dot(ctx, wc2t_ref[...], preferred_element_type=f32)   # (BT, E2)
        z1 = z1 + c1[:, None, :]
        z2 = z2 + c2[:, None, :]

    p1 = _elu(z1)                                                      # (BT, Ap, E1)
    p2 = _elu(z2)                                                      # (BT, Bp, E2)

    # zero padded sequence rows so they do not leak into the marginals / softmax
    if a_true != a_pad:
        mask_a = jax.lax.broadcasted_iota(jnp.int32, (a_pad, 1), 0) < a_true
        p1 = jnp.where(mask_a, p1, 0.0)
    if b_true != b_pad:
        mask_b = jax.lax.broadcasted_iota(jnp.int32, (b_pad, 1), 0) < b_true
        p2 = jnp.where(mask_b, p2, 0.0)

    # --- exact marginal logits of matrix_ab = p1 @ (p2 @ Win^T)^T, never materialized:
    #   sum_b matrix_ab[a, b] = p1[a, :] . ((sum_b p2[b, :]) @ Win^T)
    #   sum_a matrix_ab[a, b] = p2[b, :] . ((sum_a p1[a, :]) @ Win)
    s_a = jnp.sum(p1, axis=1)                                          # (BT, E1)
    s_b = jnp.sum(p2, axis=1)                                          # (BT, E2)
    t_a = jnp.dot(s_b, wint_ref[...], preferred_element_type=f32)      # (BT, E1)
    t_b = jnp.dot(s_a, win_ref[...], preferred_element_type=f32)       # (BT, E2)
    logits_a = jnp.sum(p1 * t_a[:, None, :], axis=2, keepdims=True)    # (BT, Ap, 1)
    logits_b = jnp.sum(p2 * t_b[:, None, :], axis=2, keepdims=True)    # (BT, Bp, 1)
    if a_true != a_pad:
        logits_a = jnp.where(mask_a, logits_a, _NEG_BIG)
    if b_true != b_pad:
        logits_b = jnp.where(mask_b, logits_b, _NEG_BIG)

    # --- per-example softmax over the sequence axis; approx reciprocal (EUP slot) ---
    ea = jnp.exp(logits_a - jnp.max(logits_a, axis=1, keepdims=True))
    alpha_a = ea * pl.reciprocal(jnp.sum(ea, axis=1, keepdims=True), approx=True)
    eb = jnp.exp(logits_b - jnp.max(logits_b, axis=1, keepdims=True))
    alpha_b = eb * pl.reciprocal(jnp.sum(eb, axis=1, keepdims=True), approx=True)

    att1 = jnp.sum(alpha_a * seq1.reshape(bt, a_pad, e1), axis=1)      # (BT, E1)
    att2 = jnp.sum(alpha_b * seq2.reshape(bt, b_pad, e2), axis=1)      # (BT, E2)

    # --- single sublane/lane-dense output slab (unmasked vst streams) ---
    row1 = att1 if lane1 == e1 else jnp.concatenate(
        [att1, jnp.zeros((bt, lane1 - e1), f32)], axis=1)
    row2 = att2 if lane2 == e2 else jnp.concatenate(
        [att2, jnp.zeros((bt, lane2 - e2), f32)], axis=1)
    out_ref[:, :lane1] = row1
    out_ref[:, lane1:] = row2


# --------------------------------------------------------------------------------------
# Parameters (mimicking the nn.Linear initialisation) and host-side (one-time) weight prep
# --------------------------------------------------------------------------------------
def init_outer2_attention_params(key, seq1_size, seq2_size, context_size):
    k = jax.random.split(key, 7)
    b1 = 1.0 / math.sqrt(seq1_size)
    b2 = 1.0 / math.sqrt(seq2_size)
    p = {
        "w_m1": jax.random.uniform(k[0], (seq1_size, seq1_size), jnp.float32, -b1, b1),
        "b_m1": jax.random.uniform(k[1], (seq1_size,), jnp.float32, -b1, b1),
        "w_m2": jax.random.uniform(k[2], (seq2_size, seq2_size), jnp.float32, -b2, b2),
        "b_m2": jax.random.uniform(k[3], (seq2_size,), jnp.float32, -b2, b2),
        # inner: nn.Linear(seq2_size, seq1_size, bias=False) -> weight (E1, E2)
        "w_in": jax.random.uniform(k[4], (seq1_size, seq2_size), jnp.float32, -b2, b2),
    }
    if context_size:
        bc = 1.0 / math.sqrt(context_size)
        p["w_c1"] = jax.random.uniform(k[5], (seq1_size, context_size), jnp.float32, -bc, bc)
        p["w_c2"] = jax.random.uniform(k[6], (seq2_size, context_size), jnp.float32, -bc, bc)
    else:
        p["w_c1"] = None
        p["w_c2"] = None
    return p


def prepare_params(params):
    """Hoisted (once-per-model) weight prep: transposes / reshapes for natural MXU axes."""
    f32 = jnp.float32
    w_m1, w_m2, w_in = params["w_m1"], params["w_m2"], params["w_in"]
    e1, e2 = w_m1.shape[0], w_m2.shape[0]
    if params["w_c1"] is not None:
        wc1_t = params["w_c1"].T.astype(f32)           # (C, E1)
        wc2_t = params["w_c2"].T.astype(f32)           # (C, E2)
    else:                                              # context_size == 0: zero contribution
        wc1_t = jnp.zeros((1, e1), f32)
        wc2_t = jnp.zeros((1, e2), f32)
    return {
        "wm1_t": w_m1.T.astype(f32),                   # (E1, E1)
        "bm1": params["b_m1"].reshape(1, e1).astype(f32),
        "wm2_t": w_m2.T.astype(f32),                   # (E2, E2)
        "bm2": params["b_m2"].reshape(1, e2).astype(f32),
        "wc1_t": wc1_t,
        "wc2_t": wc2_t,
        "win": w_in.astype(f32),                       # (E1, E2)
        "win_t": w_in.T.astype(f32),                   # (E2, E1)
    }


# --------------------------------------------------------------------------------------
# Wrappers
# --------------------------------------------------------------------------------------
def _choose_block_batch(batch_padded8, max_bt=64):
    """Batch block size: multiple of 8, capped, >=2 grid steps when possible (v7x: 2 TCs)."""
    bt = min(max_bt, batch_padded8)
    if batch_padded8 > 8 and batch_padded8 // bt < 2:
        bt = max(8, _round_up((batch_padded8 + 1) // 2, 8))
    return bt


def outer2_attention_batched(prepped, seq1_bae, seq2_bbe, context_bc=None,
                             max_block_batch=64):
    """Batched forward: seq1 (N,A,E1), seq2 (N,B,E2), ctx (N,C) -> ((N,E1), (N,E2))."""
    f32 = jnp.float32
    n, a, e1 = seq1_bae.shape
    n2, b, e2 = seq2_bbe.shape
    assert n == n2
    c = prepped["wc1_t"].shape[0]

    a_pad = _round_up(a, 8)                 # sublane-aligned per-example rows
    b_pad = _round_up(b, 8)
    n8 = _round_up(n, 8)
    bt = _choose_block_batch(n8, max_block_batch)
    n_blocks = -(-n8 // bt)
    n_pad = n_blocks * bt

    # zero-pad (padded rows / padded examples are masked / sliced away)
    seq1 = jnp.zeros((n_pad, a_pad, e1), f32).at[:n, :a, :].set(seq1_bae.astype(f32))
    seq2 = jnp.zeros((n_pad, b_pad, e2), f32).at[:n, :b, :].set(seq2_bbe.astype(f32))
    if context_bc is None:
        ctx = jnp.zeros((n_pad, c), f32)
        use_context = False
    else:
        ctx = jnp.zeros((n_pad, c), f32).at[:n, :].set(context_bc.reshape(n, c).astype(f32))
        use_context = True

    # flatten examples into the matmul M dimension (free host-side reshape)
    seq1_flat = seq1.reshape(n_pad * a_pad, e1)
    seq2_flat = seq2.reshape(n_pad * b_pad, e2)

    lane1 = _round_up(e1, 128)
    lane2 = _round_up(e2, 128)
    weight_names = ("wm1_t", "bm1", "wm2_t", "bm2", "wc1_t", "wc2_t", "win", "win_t")

    kernel = functools.partial(
        _outer2_attention_kernel,
        a_true=a, b_true=b, lane1=lane1, use_context=use_context)

    in_specs = [
        pl.BlockSpec((bt * a_pad, e1), lambda i: (i, 0)),
        pl.BlockSpec((bt * b_pad, e2), lambda i: (i, 0)),
        pl.BlockSpec((bt, c), lambda i: (i, 0)),
    ] + [pl.BlockSpec(prepped[nm].shape, lambda i: (0, 0)) for nm in weight_names]

    # NOTE: per-block VMEM (double-buffered inputs + output slab) stays well under the
    # 16/32 MiB scoped defaults for bt<=64 at these feature sizes; no vmem_limit needed.
    out = pl.pallas_call(
        kernel,
        grid=(n_blocks,),
        in_specs=in_specs,
        out_specs=pl.BlockSpec((bt, lane1 + lane2), lambda i: (i, 0)),
        out_shape=jax.ShapeDtypeStruct((n_pad, lane1 + lane2), f32),
        compiler_params=pltpu.CompilerParams(dimension_semantics=("parallel",)),
    )(seq1_flat, seq2_flat, ctx, *(prepped[nm] for nm in weight_names))

    return out[:n, :e1], out[:n, lane1:lane1 + e2]


def outer2_attention(prepped, seq1_ae, seq2_be, context_c=None):
    """Single-example forward, matching Outer2Attention.forward's interface."""
    ctx = None if context_c is None else context_c[None]
    att1, att2 = outer2_attention_batched(prepped, seq1_ae[None], seq2_be[None], ctx)
    return att1[0], att2[0]


# --------------------------------------------------------------------------------------
# Pure-JAX reference (direct transcription of the PyTorch forward) and test
# --------------------------------------------------------------------------------------
def _reference(params, seq1_ae, seq2_be, context_c=None):
    with jax.default_matmul_precision("highest"):
        if params["w_c1"] is not None and context_c is not None:
            c1 = params["w_c1"] @ context_c
            c2 = params["w_c2"] @ context_c
        else:
            c1 = 0.0
            c2 = 0.0
        p1 = jax.nn.elu(seq1_ae @ params["w_m1"].T + params["b_m1"] + c1)
        p2 = jax.nn.elu(seq2_be @ params["w_m2"].T + params["b_m2"] + c2)
        inner_be = p2 @ params["w_in"].T          # (B, E1)
        matrix_ab = p1 @ inner_be.T               # (A, B)
        att1 = seq1_ae.T @ jax.nn.softmax(matrix_ab.sum(axis=1))
        att2 = seq2_be.T @ jax.nn.softmax(matrix_ab.sum(axis=0))
        return att1, att2


if __name__ == "__main__":
    # A/B = sequence lengths, E1/E2 = encoding (seq1/seq2) sizes, C = context size
    A, B, E1, E2, C = 8, 12, 32, 48, 16
    BATCH = 24   # -> block size 16, grid of 2 parallel steps

    key = jax.random.PRNGKey(0)
    kp, ks1, ks2, kc = jax.random.split(key, 4)
    params = init_outer2_attention_params(kp, E1, E2, C)
    prepped = prepare_params(params)

    seq1 = jax.random.normal(ks1, (BATCH, A, E1), jnp.float32)
    seq2 = jax.random.normal(ks2, (BATCH, B, E2), jnp.float32)
    ctx = jax.random.normal(kc, (BATCH, C), jnp.float32)

    run = jax.jit(outer2_attention_batched)
    att1, att2 = jax.block_until_ready(run(prepped, seq1, seq2, ctx))
    assert att1.shape == (BATCH, E1) and att2.shape == (BATCH, E2)

    # Tolerance is 5e-3 because softmax normalization uses the EUP approx reciprocal
    # (~1e-4..1e-3 relative); the attended outputs are convex combinations, so any
    # algorithmic error would show up at O(0.1-1) and still be caught.
    TOL = 5e-3
    ref1, ref2 = jax.vmap(lambda s1, s2, c: _reference(params, s1, s2, c))(seq1, seq2, ctx)
    assert jnp.allclose(att1, ref1, atol=TOL, rtol=TOL), float(jnp.max(jnp.abs(att1 - ref1)))
    assert jnp.allclose(att2, ref2, atol=TOL, rtol=TOL), float(jnp.max(jnp.abs(att2 - ref2)))

    # Single-example interface (matches the PyTorch module's per-example forward).
    a1, a2 = outer2_attention(prepped, seq1[0], seq2[0], ctx[0])
    assert jnp.allclose(a1, ref1[0], atol=TOL, rtol=TOL)
    assert jnp.allclose(a2, ref2[0], atol=TOL, rtol=TOL)

    # context_size == 0 configuration (context terms are exactly zero).
    params0 = init_outer2_attention_params(kp, E1, E2, 0)
    prepped0 = prepare_params(params0)
    b1, b2 = outer2_attention(prepped0, seq1[0], seq2[0], None)
    r1, r2 = _reference(params0, seq1[0], seq2[0], None)
    assert jnp.allclose(b1, r1, atol=TOL, rtol=TOL)
    assert jnp.allclose(b2, r2, atol=TOL, rtol=TOL)

    print("KERNEL_OK")
</pallas_src>

<mosaic_0001>
module attributes {stable_mosaic.version = 11 : i64} {
  func.func @_outer2_attention_kernel(%arg0: i32, %arg1: memref<128x32xf32, #tpu.memory_space<vmem>>, %arg2: memref<256x48xf32, #tpu.memory_space<vmem>>, %arg3: memref<16x16xf32, #tpu.memory_space<vmem>>, %arg4: memref<32x32xf32, #tpu.memory_space<vmem>>, %arg5: memref<1x32xf32, #tpu.memory_space<vmem>>, %arg6: memref<48x48xf32, #tpu.memory_space<vmem>>, %arg7: memref<1x48xf32, #tpu.memory_space<vmem>>, %arg8: memref<16x32xf32, #tpu.memory_space<vmem>>, %arg9: memref<16x48xf32, #tpu.memory_space<vmem>>, %arg10: memref<32x48xf32, #tpu.memory_space<vmem>>, %arg11: memref<48x32xf32, #tpu.memory_space<vmem>>, %arg12: memref<16x256xf32, #tpu.memory_space<vmem>>) attributes {dimension_semantics = [#tpu.dimension_semantics<parallel>], iteration_bounds = array<i64: 2>, scalar_prefetch = 0 : i64, scratch_operands = 0 : i64, tpu.core_type = #tpu.core_type<tc>, window_params = [{transform_indices = @transform_0, window_bounds = array<i64: 128, 32>}, {transform_indices = @transform_1, window_bounds = array<i64: 256, 48>}, {transform_indices = @transform_2, window_bounds = array<i64: 16, 16>}, {pipeline_mode = #tpu.pipeline_mode<synchronous>, transform_indices = @transform_3, window_bounds = array<i64: 32, 32>}, {pipeline_mode = #tpu.pipeline_mode<synchronous>, transform_indices = @transform_4, window_bounds = array<i64: 1, 32>}, {pipeline_mode = #tpu.pipeline_mode<synchronous>, transform_indices = @transform_5, window_bounds = array<i64: 48, 48>}, {pipeline_mode = #tpu.pipeline_mode<synchronous>, transform_indices = @transform_6, window_bounds = array<i64: 1, 48>}, {pipeline_mode = #tpu.pipeline_mode<synchronous>, transform_indices = @transform_7, window_bounds = array<i64: 16, 32>}, {pipeline_mode = #tpu.pipeline_mode<synchronous>, transform_indices = @transform_8, window_bounds = array<i64: 16, 48>}, {pipeline_mode = #tpu.pipeline_mode<synchronous>, transform_indices = @transform_9, window_bounds = array<i64: 32, 48>}, {pipeline_mode = #tpu.pipeline_mode<synchronous>, transform_indices = @transform_10, window_bounds = array<i64: 48, 32>}, {transform_indices = @transform_11, window_bounds = array<i64: 16, 256>}]} {
    %c0 = arith.constant 0 : index
    %c0_0 = arith.constant 0 : index
    %0 = vector.load %arg1[%c0, %c0_0] : memref<128x32xf32, #tpu.memory_space<vmem>>, vector<128x32xf32>
    %c0_1 = arith.constant 0 : index
    %c0_2 = arith.constant 0 : index
    %1 = vector.load %arg2[%c0_1, %c0_2] : memref<256x48xf32, #tpu.memory_space<vmem>>, vector<256x48xf32>
    %c0_3 = arith.constant 0 : index
    %c0_4 = arith.constant 0 : index
    %2 = vector.load %arg4[%c0_3, %c0_4] : memref<32x32xf32, #tpu.memory_space<vmem>>, vector<32x32xf32>
    %cst = arith.constant dense<0.000000e+00> : vector<128x32xf32>
    %3 = tpu.matmul %0, %2, %cst {dimension_numbers = #tpu.dot_dimension_numbers<[1], [0], [0], [1], [0, 0, 1, 1], [], []>} : vector<128x32xf32>, vector<32x32xf32>, vector<128x32xf32> -> vector<128x32xf32>
    %c0_5 = arith.constant 0 : index
    %c0_6 = arith.constant 0 : index
    %4 = vector.load %arg6[%c0_5, %c0_6] : memref<48x48xf32, #tpu.memory_space<vmem>>, vector<48x48xf32>
    %cst_7 = arith.constant dense<0.000000e+00> : vector<256x48xf32>
    %5 = tpu.matmul %1, %4, %cst_7 {dimension_numbers = #tpu.dot_dimension_numbers<[1], [0], [0], [1], [0, 0, 1, 1], [], []>} : vector<256x48xf32>, vector<48x48xf32>, vector<256x48xf32> -> vector<256x48xf32>
    %6 = vector.shape_cast %3 : vector<128x32xf32> to vector<16x8x32xf32>
    %c0_8 = arith.constant 0 : index
    %c0_9 = arith.constant 0 : index
    %7 = vector.load %arg5[%c0_8, %c0_9] : memref<1x32xf32, #tpu.memory_space<vmem>>, vector<1x32xf32>
    %8 = vector.shape_cast %7 : vector<1x32xf32> to vector<1x1x32xf32>
    %9 = vector.broadcast %8 : vector<1x1x32xf32> to vector<16x8x32xf32>
    %10 = arith.addf %6, %9 : vector<16x8x32xf32>
    %11 = vector.shape_cast %5 : vector<256x48xf32> to vector<16x16x48xf32>
    %c0_10 = arith.constant 0 : index
    %c0_11 = arith.constant 0 : index
    %12 = vector.load %arg7[%c0_10, %c0_11] : memref<1x48xf32, #tpu.memory_space<vmem>>, vector<1x48xf32>
    %13 = vector.shape_cast %12 : vector<1x48xf32> to vector<1x1x48xf32>
    %14 = vector.broadcast %13 : vector<1x1x48xf32> to vector<16x16x48xf32>
    %15 = arith.addf %11, %14 : vector<16x16x48xf32>
    %c0_12 = arith.constant 0 : index
    %c0_13 = arith.constant 0 : index
    %16 = vector.load %arg3[%c0_12, %c0_13] : memref<16x16xf32, #tpu.memory_space<vmem>>, vector<16x16xf32>
    %c0_14 = arith.constant 0 : index
    %c0_15 = arith.constant 0 : index
    %17 = vector.load %arg8[%c0_14, %c0_15] : memref<16x32xf32, #tpu.memory_space<vmem>>, vector<16x32xf32>
    %cst_16 = arith.constant dense<0.000000e+00> : vector<16x32xf32>
    %18 = tpu.matmul %16, %17, %cst_16 {dimension_numbers = #tpu.dot_dimension_numbers<[1], [0], [0], [1], [0, 0, 1, 1], [], []>} : vector<16x16xf32>, vector<16x32xf32>, vector<16x32xf32> -> vector<16x32xf32>
    %c0_17 = arith.constant 0 : index
    %c0_18 = arith.constant 0 : index
    %19 = vector.load %arg9[%c0_17, %c0_18] : memref<16x48xf32, #tpu.memory_space<vmem>>, vector<16x48xf32>
    %cst_19 = arith.constant dense<0.000000e+00> : vector<16x48xf32>
    %20 = tpu.matmul %16, %19, %cst_19 {dimension_numbers = #tpu.dot_dimension_numbers<[1], [0], [0], [1], [0, 0, 1, 1], [], []>} : vector<16x16xf32>, vector<16x48xf32>, vector<16x48xf32> -> vector<16x48xf32>
    %21 = vector.shape_cast %18 : vector<16x32xf32> to vector<16x1x32xf32>
    %22 = vector.broadcast %21 : vector<16x1x32xf32> to vector<16x8x32xf32>
    %23 = arith.addf %10, %22 : vector<16x8x32xf32>
    %24 = vector.shape_cast %20 : vector<16x48xf32> to vector<16x1x48xf32>
    %25 = vector.broadcast %24 : vector<16x1x48xf32> to vector<16x16x48xf32>
    %26 = arith.addf %15, %25 : vector<16x16x48xf32>
    %cst_20 = arith.constant 0.000000e+00 : f32
    %27 = vector.broadcast %cst_20 : f32 to vector<16x8x32xf32>
    %28 = arith.cmpf ogt, %23, %27 : vector<16x8x32xf32>
    %cst_21 = arith.constant 0.000000e+00 : f32
    %29 = vector.broadcast %cst_21 : f32 to vector<16x8x32xf32>
    %30 = arith.minimumf %23, %29 : vector<16x8x32xf32>
    %31 = math.exp %30 : vector<16x8x32xf32>
    %cst_22 = arith.constant 1.000000e+00 : f32
    %32 = vector.broadcast %cst_22 : f32 to vector<16x8x32xf32>
    %33 = arith.subf %31, %32 : vector<16x8x32xf32>
    %34 = arith.select %28, %23, %33 : vector<16x8x32xi1>, vector<16x8x32xf32>
    %cst_23 = arith.constant 0.000000e+00 : f32
    %35 = vector.broadcast %cst_23 : f32 to vector<16x16x48xf32>
    %36 = arith.cmpf ogt, %26, %35 : vector<16x16x48xf32>
    %cst_24 = arith.constant 0.000000e+00 : f32
    %37 = vector.broadcast %cst_24 : f32 to vector<16x16x48xf32>
    %38 = arith.minimumf %26, %37 : vector<16x16x48xf32>
    %39 = math.exp %38 : vector<16x16x48xf32>
    %cst_25 = arith.constant 1.000000e+00 : f32
    %40 = vector.broadcast %cst_25 : f32 to vector<16x16x48xf32>
    %41 = arith.subf %39, %40 : vector<16x16x48xf32>
    %42 = arith.select %36, %26, %41 : vector<16x16x48xi1>, vector<16x16x48xf32>
    %43 = tpu.iota {dimensions = array<i32: 0>} : vector<16x1xi32>
    %c12_i32 = arith.constant 12 : i32
    %44 = vector.broadcast %c12_i32 : i32 to vector<16x1xi32>
    %45 = arith.cmpi slt, %43, %44 : vector<16x1xi32>
    %cst_26 = arith.constant 0.000000e+00 : f32
    %46 = vector.shape_cast %45 : vector<16x1xi1> to vector<1x16x1xi1>
    %47 = vector.broadcast %46 : vector<1x16x1xi1> to vector<16x16x48xi1>
    %48 = vector.broadcast %cst_26 : f32 to vector<16x16x48xf32>
    %49 = arith.select %47, %42, %48 : vector<16x16x48xi1>, vector<16x16x48xf32>
    %cst_27 = arith.constant dense<0.000000e+00> : vector<16x32xf32>
    %50 = vector.multi_reduction <add>, %34, %cst_27 [1] : vector<16x8x32xf32> to vector<16x32xf32>
    %cst_28 = arith.constant dense<0.000000e+00> : vector<16x48xf32>
    %51 = vector.multi_reduction <add>, %49, %cst_28 [1] : vector<16x16x48xf32> to vector<16x48xf32>
    %c0_29 = arith.constant 0 : index
    %c0_30 = arith.constant 0 : index
    %52 = vector.load %arg11[%c0_29, %c0_30] : memref<48x32xf32, #tpu.memory_space<vmem>>, vector<48x32xf32>
    %cst_31 = arith.constant dense<0.000000e+00> : vector<16x32xf32>
    %53 = tpu.matmul %51, %52, %cst_31 {dimension_numbers = #tpu.dot_dimension_numbers<[1], [0], [0], [1], [0, 0, 1, 1], [], []>} : vector<16x48xf32>, vector<48x32xf32>, vector<16x32xf32> -> vector<16x32xf32>
    %c0_32 = arith.constant 0 : index
    %c0_33 = arith.constant 0 : index
    %54 = vector.load %arg10[%c0_32, %c0_33] : memref<32x48xf32, #tpu.memory_space<vmem>>, vector<32x48xf32>
    %cst_34 = arith.constant dense<0.000000e+00> : vector<16x48xf32>
    %55 = tpu.matmul %50, %54, %cst_34 {dimension_numbers = #tpu.dot_dimension_numbers<[1], [0], [0], [1], [0, 0, 1, 1], [], []>} : vector<16x32xf32>, vector<32x48xf32>, vector<16x48xf32> -> vector<16x48xf32>
    %56 = vector.shape_cast %53 : vector<16x32xf32> to vector<16x1x32xf32>
    %57 = vector.broadcast %56 : vector<16x1x32xf32> to vector<16x8x32xf32>
    %58 = arith.mulf %34, %57 : vector<16x8x32xf32>
    %cst_35 = arith.constant dense<0.000000e+00> : vector<16x8xf32>
    %59 = vector.multi_reduction <add>, %58, %cst_35 [2] : vector<16x8x32xf32> to vector<16x8xf32>
    %60 = vector.shape_cast %59 : vector<16x8xf32> to vector<16x8x1xf32>
    %61 = vector.shape_cast %55 : vector<16x48xf32> to vector<16x1x48xf32>
    %62 = vector.broadcast %61 : vector<16x1x48xf32> to vector<16x16x48xf32>
    %63 = arith.mulf %49, %62 : vector<16x16x48xf32>
    %cst_36 = arith.constant dense<0.000000e+00> : vector<16x16xf32>
    %64 = vector.multi_reduction <add>, %63, %cst_36 [2] : vector<16x16x48xf32> to vector<16x16xf32>
    %65 = vector.shape_cast %64 : vector<16x16xf32> to vector<16x16x1xf32>
    %cst_37 = arith.constant -1.000000e+30 : f32
    %66 = vector.shape_cast %45 : vector<16x1xi1> to vector<1x16x1xi1>
    %67 = vector.broadcast %66 : vector<1x16x1xi1> to vector<16x16x1xi1>
    %68 = vector.broadcast %cst_37 : f32 to vector<16x16x1xf32>
    %69 = arith.select %67, %65, %68 : vector<16x16x1xi1>, vector<16x16x1xf32>
    %cst_38 = arith.constant dense<0xFF800000> : vector<16x1xf32>
    %70 = vector.multi_reduction <maximumf>, %60, %cst_38 [1] : vector<16x8x1xf32> to vector<16x1xf32>
    %71 = vector.shape_cast %70 : vector<16x1xf32> to vector<16x1x1xf32>
    %72 = vector.broadcast %71 : vector<16x1x1xf32> to vector<16x8x1xf32>
    %73 = arith.subf %60, %72 : vector<16x8x1xf32>
    %74 = math.exp %73 : vector<16x8x1xf32>
    %cst_39 = arith.constant dense<0.000000e+00> : vector<16x1xf32>
    %75 = vector.multi_reduction <add>, %74, %cst_39 [1] : vector<16x8x1xf32> to vector<16x1xf32>
    %76 = vector.shape_cast %75 : vector<16x1xf32> to vector<16x1x1xf32>
    %77 = tpu.reciprocal %76 {approx = true} : vector<16x1x1xf32> -> vector<16x1x1xf32>
    %78 = vector.broadcast %77 : vector<16x1x1xf32> to vector<16x8x1xf32>
    %79 = arith.mulf %74, %78 : vector<16x8x1xf32>
    %cst_40 = arith.constant dense<0xFF800000> : vector<16x1xf32>
    %80 = vector.multi_reduction <maximumf>, %69, %cst_40 [1] : vector<16x16x1xf32> to vector<16x1xf32>
    %81 = vector.shape_cast %80 : vector<16x1xf32> to vector<16x1x1xf32>
    %82 = vector.broadcast %81 : vector<16x1x1xf32> to vector<16x16x1xf32>
    %83 = arith.subf %69, %82 : vector<16x16x1xf32>
    %84 = math.exp %83 : vector<16x16x1xf32>
    %cst_41 = arith.constant dense<0.000000e+00> : vector<16x1xf32>
    %85 = vector.multi_reduction <add>, %84, %cst_41 [1] : vector<16x16x1xf32> to vector<16x1xf32>
    %86 = vector.shape_cast %85 : vector<16x1xf32> to vector<16x1x1xf32>
    %87 = tpu.reciprocal %86 {approx = true} : vector<16x1x1xf32> -> vector<16x1x1xf32>
    %88 = vector.broadcast %87 : vector<16x1x1xf32> to vector<16x16x1xf32>
    %89 = arith.mulf %84, %88 : vector<16x16x1xf32>
    %90 = vector.shape_cast %0 : vector<128x32xf32> to vector<16x8x32xf32>
    %91 = vector.broadcast %79 : vector<16x8x1xf32> to vector<16x8x32xf32>
    %92 = arith.mulf %91, %90 : vector<16x8x32xf32>
    %cst_42 = arith.constant dense<0.000000e+00> : vector<16x32xf32>
    %93 = vector.multi_reduction <add>, %92, %cst_42 [1] : vector<16x8x32xf32> to vector<16x32xf32>
    %94 = vector.shape_cast %1 : vector<256x48xf32> to vector<16x16x48xf32>
    %95 = vector.broadcast %89 : vector<16x16x1xf32> to vector<16x16x48xf32>
    %96 = arith.mulf %95, %94 : vector<16x16x48xf32>
    %cst_43 = arith.constant dense<0.000000e+00> : vector<16x48xf32>
    %97 = vector.multi_reduction <add>, %96, %cst_43 [1] : vector<16x16x48xf32> to vector<16x48xf32>
    %cst_44 = arith.constant 0.000000e+00 : f32
    %98 = vector.broadcast %cst_44 : f32 to vector<16x96xf32>
    %99 = tpu.concatenate %93, %98 in 1 : vector<16x32xf32>, vector<16x96xf32> -> vector<16x128xf32>
    %cst_45 = arith.constant 0.000000e+00 : f32
    %100 = vector.broadcast %cst_45 : f32 to vector<16x80xf32>
    %101 = tpu.concatenate %97, %100 in 1 : vector<16x48xf32>, vector<16x80xf32> -> vector<16x128xf32>
    %c0_46 = arith.constant 0 : index
    %c0_47 = arith.constant 0 : index
    %102 = vector.load %arg12[%c0_46, %c0_47] : memref<16x256xf32, #tpu.memory_space<vmem>>, vector<16x128xf32>
    tpu.vector_store %arg12[%c0_46, %c0_47], %99 {strides = array<i32>} : memref<16x256xf32, #tpu.memory_space<vmem>>, vector<16x128xf32>,
    %c0_48 = arith.constant 0 : index
    %c128 = arith.constant 128 : index
    %103 = vector.load %arg12[%c0_48, %c128] : memref<16x256xf32, #tpu.memory_space<vmem>>, vector<16x128xf32>
    tpu.vector_store %arg12[%c0_48, %c128], %101 {strides = array<i32>} : memref<16x256xf32, #tpu.memory_space<vmem>>, vector<16x128xf32>,
    return
  }
  func.func @transform_0(%arg0: i32) -> (i32, i32) {
    %c0_i32 = arith.constant 0 : i32
    %c0_i32_0 = arith.constant 0 : i32
    return %arg0, %c0_i32 : i32, i32
  }
  func.func @transform_1(%arg0: i32) -> (i32, i32) {
    %c0_i32 = arith.constant 0 : i32
    %c0_i32_0 = arith.constant 0 : i32
    return %arg0, %c0_i32 : i32, i32
  }
  func.func @transform_2(%arg0: i32) -> (i32, i32) {
    %c0_i32 = arith.constant 0 : i32
    %c0_i32_0 = arith.constant 0 : i32
    return %arg0, %c0_i32 : i32, i32
  }
  func.func @transform_3(%arg0: i32) -> (i32, i32) {
    %c0_i32 = arith.constant 0 : i32
    %c0_i32_0 = arith.constant 0 : i32
    %c0_i32_1 = arith.constant 0 : i32
    return %c0_i32, %c0_i32_0 : i32, i32
  }
  func.func @transform_4(%arg0: i32) -> (i32, i32) {
    %c0_i32 = arith.constant 0 : i32
    %c0_i32_0 = arith.constant 0 : i32
    %c0_i32_1 = arith.constant 0 : i32
    return %c0_i32, %c0_i32_0 : i32, i32
  }
  func.func @transform_5(%arg0: i32) -> (i32, i32) {
    %c0_i32 = arith.constant 0 : i32
    %c0_i32_0 = arith.constant 0 : i32
    %c0_i32_1 = arith.constant 0 : i32
    return %c0_i32, %c0_i32_0 : i32, i32
  }
  func.func @transform_6(%arg0: i32) -> (i32, i32) {
    %c0_i32 = arith.constant 0 : i32
    %c0_i32_0 = arith.constant 0 : i32
    %c0_i32_1 = arith.constant 0 : i32
    return %c0_i32, %c0_i32_0 : i32, i32
  }
  func.func @transform_7(%arg0: i32) -> (i32, i32) {
    %c0_i32 = arith.constant 0 : i32
    %c0_i32_0 = arith.constant 0 : i32
    %c0_i32_1 = arith.constant 0 : i32
    return %c0_i32, %c0_i32_0 : i32, i32
  }
  func.func @transform_8(%arg0: i32) -> (i32, i32) {
    %c0_i32 = arith.constant 0 : i32
    %c0_i32_0 = arith.constant 0 : i32
    %c0_i32_1 = arith.constant 0 : i32
    return %c0_i32, %c0_i32_0 : i32, i32
  }
  func.func @transform_9(%arg0: i32) -> (i32, i32) {
    %c0_i32 = arith.constant 0 : i32
    %c0_i32_0 = arith.constant 0 : i32
    %c0_i32_1 = arith.constant 0 : i32
    return %c0_i32, %c0_i32_0 : i32, i32
  }
  func.func @transform_10(%arg0: i32) -> (i32, i32) {
    %c0_i32 = arith.constant 0 : i32
    %c0_i32_0 = arith.constant 0 : i32
    %c0_i32_1 = arith.constant 0 : i32
    return %c0_i32, %c0_i32_0 : i32, i32
  }
  func.func @transform_11(%arg0: i32) -> (i32, i32) {
    %c0_i32 = arith.constant 0 : i32
    %c0_i32_0 = arith.constant 0 : i32
    return %arg0, %c0_i32 : i32, i32
  }
}

</mosaic_0001>

<llo_original>
// kernel: outer2_attention_batched.1
$region0: #{outer2_attention_batched.1}
  #allocation0 [shape = 'u32[]', space=smem, size = 0x4, offset = 0x4, fixed_abs, tag = 'smem constant byte address 0x4 - core index']
  #allocation1 [shape = 'u32[144,128]{1,0:T(1,128)}', space=vmem, size = 0x12000, scoped, tag = 'internal scratch']
  %s0 = inlined_call_operand.vmem [shape: f32[256,32], index: 0, kind: input, shape index: {}]
  %s1 = inlined_call_operand.vmem [shape: f32[512,48], index: 1, kind: input, shape index: {}]
  %s2 = inlined_call_operand.vmem [shape: f32[32,16], index: 2, kind: input, shape index: {}]
  %s3 = inlined_call_operand.vmem [shape: f32[32,32], index: 3, kind: input, shape index: {}]
  %s4 = inlined_call_operand.vmem [shape: f32[1,32], index: 4, kind: input, shape index: {}]
  %s5 = inlined_call_operand.vmem [shape: f32[48,48], index: 5, kind: input, shape index: {}]
  %s6 = inlined_call_operand.vmem [shape: f32[1,48], index: 6, kind: input, shape index: {}]
  %s7 = inlined_call_operand.vmem [shape: f32[16,32], index: 7, kind: input, shape index: {}]
  %s8 = inlined_call_operand.vmem [shape: f32[16,48], index: 8, kind: input, shape index: {}]
  %s9 = inlined_call_operand.vmem [shape: f32[32,48], index: 9, kind: input, shape index: {}]
  %s10 = inlined_call_operand.vmem [shape: f32[48,32], index: 10, kind: input, shape index: {}]
  %s11 = inlined_call_operand.vmem [shape: f32[32,256], index: 11, kind: output, shape index: {}]
  %s12 = sld [smem:[#allocation0]]
  $region77: #{outer2_attention_batched.1} parent=0
    _
  %s14 = ssub.s32 1, %s12
  %s15 = scalar_select 0, %s14, %s12
  loop: start=0, step=1, limit=4
  $region2: #{outer2_attention_batched.1} parent=0 // loop_pre_header
    _
  $region3: #{outer2_attention_batched.1} parent=0 // loop_header
    %s17 = sphi 0, %s21
    %p18 = scmp.ge.s32.totalorder %s17, 4
    %s27 = sphi 0, %s29
    %s30 = sphi 0, %s27
    %s31 = sphi 0, %s30
    %s47 = sphi 0, %s31
    %s53 = sphi 0, %s55
    %s56 = sphi 0, %s53
    %s57 = sphi 0, %s56
    %s73 = sphi 0, %s57
    %s79 = sphi 0, %s81
    %s82 = sphi 0, %s79
    %s83 = sphi 0, %s82
    %s99 = sphi 0, %s83
    %s103 = sphi 0, %s103
    %s105 = sphi 0, %s103
    %s106 = sphi 0, %s105
    %s120 = sphi 0, %s106
    %s124 = sphi 0, %s124
    %s126 = sphi 0, %s124
    %s127 = sphi 0, %s126
    %s141 = sphi 0, %s127
    %s145 = sphi 0, %s145
    %s147 = sphi 0, %s145
    %s148 = sphi 0, %s147
    %s162 = sphi 0, %s148
    %s166 = sphi 0, %s166
    %s168 = sphi 0, %s166
    %s169 = sphi 0, %s168
    %s183 = sphi 0, %s169
    %s187 = sphi 0, %s187
    %s189 = sphi 0, %s187
    %s190 = sphi 0, %s189
    %s204 = sphi 0, %s190
    %s208 = sphi 0, %s208
    %s210 = sphi 0, %s208
    %s211 = sphi 0, %s210
    %s225 = sphi 0, %s211
    %s229 = sphi 0, %s229
    %s231 = sphi 0, %s229
    %s232 = sphi 0, %s231
    %s246 = sphi 0, %s232
    %s250 = sphi 0, %s250
    %s252 = sphi 0, %s250
    %s253 = sphi 0, %s252
    %s267 = sphi 0, %s253
    %s273 = sphi 0, %s275
    %s276 = sphi 0, %s273
    %s277 = sphi 0, %s276
    %s293 = sphi 0, %s277
  $region4: #{outer2_attention_batched.1} parent=0 // loop_header_branch
    %20 = sbr.rel (%p18) target = $region8
  $region5: #{outer2_attention_batched.1} parent=0 // loop_body
    %s22 = ssub.s32 %s17, 1
    %s23 = ssub.s32 %s17, 2
    %s24 = sadd.s32 %s17, 1
    %s25 = ssub.s32 %s17, %s24
    %p26 = scmp.eq.s32.totalorder %s25, 0
    %s28 = sadd.s32 %s27, 1
    %s29 = scalar_select %p26, %s27, %s28
    %p32 = pneg %p26
    %p33 = scmp.eq.s32.totalorder %s17, 1
    %p34 = por %p32, %p33
    %p35 = scmp.ne.s32.totalorder %s27, %s30
    %p36 = scmp.eq.s32.totalorder %s17, 0
    %p37 = por %p35, %p36
    %p38 = scmp.ne.s32.totalorder %s27, %s30
    %p39 = scmp.eq.s32.totalorder %s22, 1
    %p40 = por %p38, %p39
    %p41 = scmp.ne.s32.totalorder %s30, %s31
    %p42 = scmp.eq.s32.totalorder %s22, 0
    %p43 = por %p41, %p42
    %p44 = scmp.ne.s32.totalorder %s30, %s31
    %p45 = scmp.eq.s32.totalorder %s23, 1
    %p46 = por %p44, %p45
    %p48 = scmp.ne.s32.totalorder %s31, %s47
    %p49 = scmp.eq.s32.totalorder %s23, 0
    %p50 = por %p48, %p49
    %s51 = ssub.s32 %s17, %s24
    %p52 = scmp.eq.s32.totalorder %s51, 0
    %s54 = sadd.s32 %s53, 1
    %s55 = scalar_select %p52, %s53, %s54
    %p58 = pneg %p52
    %p59 = scmp.eq.s32.totalorder %s17, 1
    %p60 = por %p58, %p59
    %p61 = scmp.ne.s32.totalorder %s53, %s56
    %p62 = scmp.eq.s32.totalorder %s17, 0
    %p63 = por %p61, %p62
    %p64 = scmp.ne.s32.totalorder %s53, %s56
    %p65 = scmp.eq.s32.totalorder %s22, 1
    %p66 = por %p64, %p65
    %p67 = scmp.ne.s32.totalorder %s56, %s57
    %p68 = scmp.eq.s32.totalorder %s22, 0
    %p69 = por %p67, %p68
    %p70 = scmp.ne.s32.totalorder %s56, %s57
    %p71 = scmp.eq.s32.totalorder %s23, 1
    %p72 = por %p70, %p71
    %p74 = scmp.ne.s32.totalorder %s57, %s73
    %p75 = scmp.eq.s32.totalorder %s23, 0
    %p76 = por %p74, %p75
    %s77 = ssub.s32 %s17, %s24
    %p78 = scmp.eq.s32.totalorder %s77, 0
    %s80 = sadd.s32 %s79, 1
    %s81 = scalar_select %p78, %s79, %s80
    %p84 = pneg %p78
    %p85 = scmp.eq.s32.totalorder %s17, 1
    %p86 = por %p84, %p85
    %p87 = scmp.ne.s32.totalorder %s79, %s82
    %p88 = scmp.eq.s32.totalorder %s17, 0
    %p89 = por %p87, %p88
    %p90 = scmp.ne.s32.totalorder %s79, %s82
    %p91 = scmp.eq.s32.totalorder %s22, 1
    %p92 = por %p90, %p91
    %p93 = scmp.ne.s32.totalorder %s82, %s83
    %p94 = scmp.eq.s32.totalorder %s22, 0
    %p95 = por %p93, %p94
    %p96 = scmp.ne.s32.totalorder %s82, %s83
    %p97 = scmp.eq.s32.totalorder %s23, 1
    %p98 = por %p96, %p97
    %p100 = scmp.ne.s32.totalorder %s83, %s99
    %p101 = scmp.eq.s32.totalorder %s23, 0
    %p102 = por %p100, %p101
    %s104 = sadd.s32 %s103, 1
    %p107 = scmp.eq.s32.totalorder %s17, 1
    %p108 = scmp.ne.s32.totalorder %s103, %s105
    %p109 = scmp.eq.s32.totalorder %s17, 0
    %p110 = por %p108, %p109
    %p111 = scmp.ne.s32.totalorder %s103, %s105
    %p112 = scmp.eq.s32.totalorder %s22, 1
    %p113 = por %p111, %p112
    %p114 = scmp.ne.s32.totalorder %s105, %s106
    %p115 = scmp.eq.s32.totalorder %s22, 0
    %p116 = por %p114, %p115
    %p117 = scmp.ne.s32.totalorder %s105, %s106
    %p118 = scmp.eq.s32.totalorder %s23, 1
    %p119 = por %p117, %p118
    %p121 = scmp.ne.s32.totalorder %s106, %s120
    %p122 = scmp.eq.s32.totalorder %s23, 0
    %p123 = por %p121, %p122
    %s125 = sadd.s32 %s124, 1
    %p128 = scmp.eq.s32.totalorder %s17, 1
    %p129 = scmp.ne.s32.totalorder %s124, %s126
    %p130 = scmp.eq.s32.totalorder %s17, 0
    %p131 = por %p129, %p130
    %p132 = scmp.ne.s32.totalorder %s124, %s126
    %p133 = scmp.eq.s32.totalorder %s22, 1
    %p134 = por %p132, %p133
    %p135 = scmp.ne.s32.totalorder %s126, %s127
    %p136 = scmp.eq.s32.totalorder %s22, 0
    %p137 = por %p135, %p136
    %p138 = scmp.ne.s32.totalorder %s126, %s127
    %p139 = scmp.eq.s32.totalorder %s23, 1
    %p140 = por %p138, %p139
    %p142 = scmp.ne.s32.totalorder %s127, %s141
    %p143 = scmp.eq.s32.totalorder %s23, 0
    %p144 = por %p142, %p143
    %s146 = sadd.s32 %s145, 1
    %p149 = scmp.eq.s32.totalorder %s17, 1
    %p150 = scmp.ne.s32.totalorder %s145, %s147
    %p151 = scmp.eq.s32.totalorder %s17, 0
    %p152 = por %p150, %p151
    %p153 = scmp.ne.s32.totalorder %s145, %s147
    %p154 = scmp.eq.s32.totalorder %s22, 1
    %p155 = por %p153, %p154
    %p156 = scmp.ne.s32.totalorder %s147, %s148
    %p157 = scmp.eq.s32.totalorder %s22, 0
    %p158 = por %p156, %p157
    %p159 = scmp.ne.s32.totalorder %s147, %s148
    %p160 = scmp.eq.s32.totalorder %s23, 1
    %p161 = por %p159, %p160
    %p163 = scmp.ne.s32.totalorder %s148, %s162
    %p164 = scmp.eq.s32.totalorder %s23, 0
    %p165 = por %p163, %p164
    %s167 = sadd.s32 %s166, 1
    %p170 = scmp.eq.s32.totalorder %s17, 1
    %p171 = scmp.ne.s32.totalorder %s166, %s168
    %p172 = scmp.eq.s32.totalorder %s17, 0
    %p173 = por %p171, %p172
    %p174 = scmp.ne.s32.totalorder %s166, %s168
    %p175 = scmp.eq.s32.totalorder %s22, 1
    %p176 = por %p174, %p175
    %p177 = scmp.ne.s32.totalorder %s168, %s169
    %p178 = scmp.eq.s32.totalorder %s22, 0
    %p179 = por %p177, %p178
    %p180 = scmp.ne.s32.totalorder %s168, %s169
    %p181 = scmp.eq.s32.totalorder %s23, 1
    %p182 = por %p180, %p181
    %p184 = scmp.ne.s32.totalorder %s169, %s183
    %p185 = scmp.eq.s32.totalorder %s23, 0
    %p186 = por %p184, %p185
    %s188 = sadd.s32 %s187, 1
    %p191 = scmp.eq.s32.totalorder %s17, 1
    %p192 = scmp.ne.s32.totalorder %s187, %s189
    %p193 = scmp.eq.s32.totalorder %s17, 0
    %p194 = por %p192, %p193
    %p195 = scmp.ne.s32.totalorder %s187, %s189
    %p196 = scmp.eq.s32.totalorder %s22, 1
    %p197 = por %p195, %p196
    %p198 = scmp.ne.s32.totalorder %s189, %s190
    %p199 = scmp.eq.s32.totalorder %s22, 0
    %p200 = por %p198, %p199
    %p201 = scmp.ne.s32.totalorder %s189, %s190
    %p202 = scmp.eq.s32.totalorder %s23, 1
    %p203 = por %p201, %p202
    %p205 = scmp.ne.s32.totalorder %s190, %s204
    %p206 = scmp.eq.s32.totalorder %s23, 0
    %p207 = por %p205, %p206
    %s209 = sadd.s32 %s208, 1
    %p212 = scmp.eq.s32.totalorder %s17, 1
    %p213 = scmp.ne.s32.totalorder %s208, %s210
    %p214 = scmp.eq.s32.totalorder %s17, 0
    %p215 = por %p213, %p214
    %p216 = scmp.ne.s32.totalorder %s208, %s210
    %p217 = scmp.eq.s32.totalorder %s22, 1
    %p218 = por %p216, %p217
    %p219 = scmp.ne.s32.totalorder %s210, %s211
    %p220 = scmp.eq.s32.totalorder %s22, 0
    %p221 = por %p219, %p220
    %p222 = scmp.ne.s32.totalorder %s210, %s211
    %p223 = scmp.eq.s32.totalorder %s23, 1
    %p224 = por %p222, %p223
    %p226 = scmp.ne.s32.totalorder %s211, %s225
    %p227 = scmp.eq.s32.totalorder %s23, 0
    %p228 = por %p226, %p227
    %s230 = sadd.s32 %s229, 1
    %p233 = scmp.eq.s32.totalorder %s17, 1
    %p234 = scmp.ne.s32.totalorder %s229, %s231
    %p235 = scmp.eq.s32.totalorder %s17, 0
    %p236 = por %p234, %p235
    %p237 = scmp.ne.s32.totalorder %s229, %s231
    %p238 = scmp.eq.s32.totalorder %s22, 1
    %p239 = por %p237, %p238
    %p240 = scmp.ne.s32.totalorder %s231, %s232
    %p241 = scmp.eq.s32.totalorder %s22, 0
    %p242 = por %p240, %p241
    %p243 = scmp.ne.s32.totalorder %s231, %s232
    %p244 = scmp.eq.s32.totalorder %s23, 1
    %p245 = por %p243, %p244
    %p247 = scmp.ne.s32.totalorder %s232, %s246
    %p248 = scmp.eq.s32.totalorder %s23, 0
    %p249 = por %p247, %p248
    %s251 = sadd.s32 %s250, 1
    %p254 = scmp.eq.s32.totalorder %s17, 1
    %p255 = scmp.ne.s32.totalorder %s250, %s252
    %p256 = scmp.eq.s32.totalorder %s17, 0
    %p257 = por %p255, %p256
    %p258 = scmp.ne.s32.totalorder %s250, %s252
    %p259 = scmp.eq.s32.totalorder %s22, 1
    %p260 = por %p258, %p259
    %p261 = scmp.ne.s32.totalorder %s252, %s253
    %p262 = scmp.eq.s32.totalorder %s22, 0
    %p263 = por %p261, %p262
    %p264 = scmp.ne.s32.totalorder %s252, %s253
    %p265 = scmp.eq.s32.totalorder %s23, 1
    %p266 = por %p264, %p265
    %p268 = scmp.ne.s32.totalorder %s253, %s267
    %p269 = scmp.eq.s32.totalorder %s23, 0
    %p270 = por %p268, %p269
    %s271 = ssub.s32 %s17, %s24
    %p272 = scmp.eq.s32.totalorder %s271, 0
    %s274 = sadd.s32 %s273, 1
    %s275 = scalar_select %p272, %s273, %s274
    %p278 = pneg %p272
    %p279 = scmp.eq.s32.totalorder %s17, 1
    %p280 = por %p278, %p279
    %p281 = scmp.ne.s32.totalorder %s273, %s276
    %p282 = scmp.eq.s32.totalorder %s17, 0
    %p283 = por %p281, %p282
    %p284 = scmp.ne.s32.totalorder %s273, %s276
    %p285 = scmp.eq.s32.totalorder %s22, 1
    %p286 = por %p284, %p285
    %p287 = scmp.ne.s32.totalorder %s276, %s277
    %p288 = scmp.eq.s32.totalorder %s22, 0
    %p289 = por %p287, %p288
    %p290 = scmp.ne.s32.totalorder %s276, %s277
    %p291 = scmp.eq.s32.totalorder %s23, 1
    %p292 = por %p290, %p291
    %p294 = scmp.ne.s32.totalorder %s277, %s293
    %p295 = scmp.eq.s32.totalorder %s23, 0
    %p296 = por %p294, %p295
    %p297 = scmp.le.s32.totalorder 1, %s17
    %p298 = scmp.lt.s32.totalorder %s17, 3
    %p299 = pnand %p297, %p298
    %p300 = pneg %p299
    // Predicated region
    $region9: #{outer2_attention_batched.1} parent=5 // pred_check
      _
    $region10: #{outer2_attention_batched.1} parent=5 // pred_check_branch
      %302 = sbr.rel (%p299) target = $region12
    $region11: #{outer2_attention_batched.1} parent=5 // pred_region
      %s303 = ssub.s32 %s17, 1
      // Predicated region
      $region13: #{outer2_attention_batched.1} parent=11 // pred_check
        %p304 = pneg %p116
      $region14: #{outer2_attention_batched.1} parent=11 // pred_check_branch
        %306 = sbr.rel (%p304) target = $region16
      $region15: #{outer2_attention_batched.1} parent=11 // pred_region
        _
      $region16: #{outer2_attention_batched.1} parent=11 // pred_fallthru
        _
      // Predicated region
      $region17: #{outer2_attention_batched.1} parent=11 // pred_check
        %p307 = pneg %p137
      $region18: #{outer2_attention_batched.1} parent=11 // pred_check_branch
        %309 = sbr.rel (%p307) target = $region20
      $region19: #{outer2_attention_batched.1} parent=11 // pred_region
        _
      $region20: #{outer2_attention_batched.1} parent=11 // pred_fallthru
        _
      // Predicated region
      $region21: #{outer2_attention_batched.1} parent=11 // pred_check
        %p310 = pneg %p158
      $region22: #{outer2_attention_batched.1} parent=11 // pred_check_branch
        %312 = sbr.rel (%p310) target = $region24
      $region23: #{outer2_attention_batched.1} parent=11 // pred_region
        _
      $region24: #{outer2_attention_batched.1} parent=11 // pred_fallthru
        _
      // Predicated region
      $region25: #{outer2_attention_batched.1} parent=11 // pred_check
        %p313 = pneg %p179
      $region26: #{outer2_attention_batched.1} parent=11 // pred_check_branch
        %315 = sbr.rel (%p313) target = $region28
      $region27: #{outer2_attention_batched.1} parent=11 // pred_region
        _
      $region28: #{outer2_attention_batched.1} parent=11 // pred_fallthru
        _
      // Predicated region
      $region29: #{outer2_attention_batched.1} parent=11 // pred_check
        %p316 = pneg %p200
      $region30: #{outer2_attention_batched.1} parent=11 // pred_check_branch
        %318 = sbr.rel (%p316) target = $region32
      $region31: #{outer2_attention_batched.1} parent=11 // pred_region
        _
      $region32: #{outer2_attention_batched.1} parent=11 // pred_fallthru
        _
      // Predicated region
      $region33: #{outer2_attention_batched.1} parent=11 // pred_check
        %p319 = pneg %p221
      $region34: #{outer2_attention_batched.1} parent=11 // pred_check_branch
        %321 = sbr.rel (%p319) target = $region36
      $region35: #{outer2_attention_batched.1} parent=11 // pred_region
        _
      $region36: #{outer2_attention_batched.1} parent=11 // pred_fallthru
        _
      // Predicated region
      $region37: #{outer2_attention_batched.1} parent=11 // pred_check
        %p322 = pneg %p242
      $region38: #{outer2_attention_batched.1} parent=11 // pred_check_branch
        %324 = sbr.rel (%p322) target = $region40
      $region39: #{outer2_attention_batched.1} parent=11 // pred_region
        _
      $region40: #{outer2_attention_batched.1} parent=11 // pred_fallthru
        _
      // Predicated region
      $region41: #{outer2_attention_batched.1} parent=11 // pred_check
        %p325 = pneg %p263
      $region42: #{outer2_attention_batched.1} parent=11 // pred_check_branch
        %327 = sbr.rel (%p325) target = $region44
      $region43: #{outer2_attention_batched.1} parent=11 // pred_region
        _
      $region44: #{outer2_attention_batched.1} parent=11 // pred_fallthru
        _
    $region12: #{outer2_attention_batched.1} parent=5 // pred_fallthru
      _
    %p328 = scmp.lt.s32.totalorder %s17, 2
    // Predicated region
    $region45: #{outer2_attention_batched.1} parent=5 // pred_check
      %p329 = pneg %p328
    $region46: #{outer2_attention_batched.1} parent=5 // pred_check_branch
      %331 = sbr.rel (%p329) target = $region48
    $region47: #{outer2_attention_batched.1} parent=5 // pred_region
      // Predicated region
      $region49: #{outer2_attention_batched.1} parent=47 // pred_check
        %p332 = pneg %p37
      $region50: #{outer2_attention_batched.1} parent=47 // pred_check_branch
        %334 = sbr.rel (%p332) target = $region52
      $region51: #{outer2_attention_batched.1} parent=47 // pred_region
        %s335 = smul.u32 16, %s17
        %p336 = scmp.lt.s32.totalorder %s335, 31
        %s337 = scalar_select %p336, %s335, 31
        %s338 = smul.addr %s337, 8
        %s339 = scalar_lea.vmem %s0, %s338
        %s340 = smul.u32 16, %s17
      $region52: #{outer2_attention_batched.1} parent=47 // pred_fallthru
        _
      // Predicated region
      $region53: #{outer2_attention_batched.1} parent=47 // pred_check
        %p341 = pneg %p63
      $region54: #{outer2_attention_batched.1} parent=47 // pred_check_branch
        %343 = sbr.rel (%p341) target = $region56
      $region55: #{outer2_attention_batched.1} parent=47 // pred_region
        %s344 = smul.u32 32, %s17
        %p345 = scmp.lt.s32.totalorder %s344, 63
        %s346 = scalar_select %p345, %s344, 63
        %s347 = smul.addr %s346, 8
        %s348 = scalar_lea.vmem %s1, %s347
        %s349 = smul.u32 32, %s17
      $region56: #{outer2_attention_batched.1} parent=47 // pred_fallthru
        _
      // Predicated region
      $region57: #{outer2_attention_batched.1} parent=47 // pred_check
        %p350 = pneg %p89
      $region58: #{outer2_attention_batched.1} parent=47 // pred_check_branch
        %352 = sbr.rel (%p350) target = $region60
      $region59: #{outer2_attention_batched.1} parent=47 // pred_region
        %s353 = smul.u32 2, %s17
        %p354 = scmp.lt.s32.totalorder %s353, 3
        %s355 = scalar_select %p354, %s353, 3
        %s356 = smul.addr %s355, 8
        %s357 = scalar_lea.vmem %s2, %s356
        %s358 = smul.u32 2, %s17
      $region60: #{outer2_attention_batched.1} parent=47 // pred_fallthru
        _
    $region48: #{outer2_attention_batched.1} parent=5 // pred_fallthru
      _
    %p359 = scmp.le.s32.totalorder 1, %s17
    %p360 = scmp.lt.s32.totalorder %s17, 3
    %p361 = pnand %p359, %p360
    %p362 = pneg %p361
    // Predicated region
    $region61: #{outer2_attention_batched.1} parent=5 // pred_check
      _
    $region62: #{outer2_attention_batched.1} parent=5 // pred_check_branch
      %364 = sbr.rel (%p361) target = $region64
    $region63: #{outer2_attention_batched.1} parent=5 // pred_region
      %s365 = ssub.s32 %s17, 1
      %s366 = smul.u32 16, %s22
      %p367 = scmp.lt.s32.totalorder %s366, 31
      %s368 = scalar_select %p367, %s366, 31
      %s369 = smul.addr %s368, 8
      %s370 = scalar_lea.vmem %s0, %s369
      %p371 = pneg %p43
      %p372 = pneg %p40
      %s373 = smul.u32 32, %s22
      %p374 = scmp.lt.s32.totalorder %s373, 63
      %s375 = scalar_select %p374, %s373, 63
      %s376 = smul.addr %s375, 8
      %s377 = scalar_lea.vmem %s1, %s376
      %p378 = pneg %p69
      %p379 = pneg %p66
      %s380 = smul.u32 2, %s22
      %p381 = scmp.lt.s32.totalorder %s380, 3
      %s382 = scalar_select %p381, %s380, 3
      %s383 = smul.addr %s382, 8
      %s384 = scalar_lea.vmem %s2, %s383
      %p385 = pneg %p95
      %p386 = pneg %p92
      %p387 = pneg %p116
      %p388 = pneg %p113
      %p389 = pneg %p137
      %p390 = pneg %p134
      %p391 = pneg %p158
      %p392 = pneg %p155
      %p393 = pneg %p179
      %p394 = pneg %p176
      %p395 = pneg %p200
      %p396 = pneg %p197
      %p397 = pneg %p221
      %p398 = pneg %p218
      %p399 = pneg %p242
      %p400 = pneg %p239
      %p401 = pneg %p263
      %p402 = pneg %p260
      %p403 = pneg %p289
      %p404 = pneg %p286
      %s405 = smul.u32 2, %s22
      %p406 = scmp.lt.s32.totalorder %s405, 3
      %s407 = scalar_select %p406, %s405, 3
      %s408 = smul.addr %s407, 2
      %s409 = smul.addr %s408, 8
      %s410 = scalar_lea.vmem %s11, %s409
      %s411 = smul.u32 16, %s22
      %p412 = scmp.lt.s32.totalorder %s411, 31
      %s413 = scalar_select %p412, %s411, 31
      %s414 = smul.addr %s413, 8
      %s415 = scalar_lea.vmem %s0, %s414
      %s416 = smul.u32 16, %s22
      %s417 = smul.u32 32, %s22
      %p418 = scmp.lt.s32.totalorder %s417, 63
      %s419 = scalar_select %p418, %s417, 63
      %s420 = smul.addr %s419, 8
      %s421 = scalar_lea.vmem %s1, %s420
      %s422 = smul.u32 32, %s22
      %s423 = smul.u32 2, %s22
      %p424 = scmp.lt.s32.totalorder %s423, 3
      %s425 = scalar_select %p424, %s423, 3
      %s426 = smul.addr %s425, 8
      %s427 = scalar_lea.vmem %s2, %s426
      %s428 = smul.u32 2, %s22
      %s429 = smul.u32 2, %s22
      %p430 = scmp.lt.s32.totalorder %s429, 3
      %s431 = scalar_select %p430, %s429, 3
      %s432 = smul.addr %s431, 2
      %s433 = smul.addr %s432, 8
      %s434 = scalar_lea.vmem %s11, %s433
      %s435 = smul.u32 2, %s22
      %v436 = vld [vmem:[%s415] sm:$0xff]
      %v437 = vld [vmem:[%s415 + $0x8] sm:$0xff]
      %v438 = vld [vmem:[%s415 + $0x10] sm:$0xff]
      %v439 = vld [vmem:[%s415 + $0x18] sm:$0xff]
      %v440 = vld [vmem:[%s415 + $0x20] sm:$0xff]
      %v441 = vld [vmem:[%s415 + $0x28] sm:$0xff]
      %v442 = vld [vmem:[%s415 + $0x30] sm:$0xff]
      %v443 = vld [vmem:[%s415 + $0x38] sm:$0xff]
      %v444 = vld [vmem:[%s415 + $0x40] sm:$0xff]
      %v445 = vld [vmem:[%s415 + $0x48] sm:$0xff]
      %v446 = vld [vmem:[%s415 + $0x50] sm:$0xff]
      %v447 = vld [vmem:[%s415 + $0x58] sm:$0xff]
      %v448 = vld [vmem:[%s415 + $0x60] sm:$0xff]
      %v449 = vld [vmem:[%s415 + $0x68] sm:$0xff]
      %v450 = vld [vmem:[%s415 + $0x70] sm:$0xff]
      %v451 = vld [vmem:[%s415 + $0x78] sm:$0xff]
      %v452 = vld [vmem:[%s421] sm:$0xff]
      %v453 = vld [vmem:[%s421 + $0x8] sm:$0xff]
      %v454 = vld [vmem:[%s421 + $0x10] sm:$0xff]
      %v455 = vld [vmem:[%s421 + $0x18] sm:$0xff]
      %v456 = vld [vmem:[%s421 + $0x20] sm:$0xff]
      %v457 = vld [vmem:[%s421 + $0x28] sm:$0xff]
      %v458 = vld [vmem:[%s421 + $0x30] sm:$0xff]
      %v459 = vld [vmem:[%s421 + $0x38] sm:$0xff]
      %v460 = vld [vmem:[%s421 + $0x40] sm:$0xff]
      %v461 = vld [vmem:[%s421 + $0x48] sm:$0xff]
      %v462 = vld [vmem:[%s421 + $0x50] sm:$0xff]
      %v463 = vld [vmem:[%s421 + $0x58] sm:$0xff]
      %v464 = vld [vmem:[%s421 + $0x60] sm:$0xff]
      %v465 = vld [vmem:[%s421 + $0x68] sm:$0xff]
      %v466 = vld [vmem:[%s421 + $0x70] sm:$0xff]
      %v467 = vld [vmem:[%s421 + $0x78] sm:$0xff]
      %v468 = vld [vmem:[%s421 + $0x80] sm:$0xff]
      %v469 = vld [vmem:[%s421 + $0x88] sm:$0xff]
      %v470 = vld [vmem:[%s421 + $0x90] sm:$0xff]
      %v471 = vld [vmem:[%s421 + $0x98] sm:$0xff]
      %v472 = vld [vmem:[%s421 + $0xa0] sm:$0xff]
      %v473 = vld [vmem:[%s421 + $0xa8] sm:$0xff]
      %v474 = vld [vmem:[%s421 + $0xb0] sm:$0xff]
      %v475 = vld [vmem:[%s421 + $0xb8] sm:$0xff]
      %v476 = vld [vmem:[%s421 + $0xc0] sm:$0xff]
      %v477 = vld [vmem:[%s421 + $0xc8] sm:$0xff]
      %v478 = vld [vmem:[%s421 + $0xd0] sm:$0xff]
      %v479 = vld [vmem:[%s421 + $0xd8] sm:$0xff]
      %v480 = vld [vmem:[%s421 + $0xe0] sm:$0xff]
      %v481 = vld [vmem:[%s421 + $0xe8] sm:$0xff]
      %v482 = vld [vmem:[%s421 + $0xf0] sm:$0xff]
      %v483 = vld [vmem:[%s421 + $0xf8] sm:$0xff]
      %v484 = vld [vmem:[%s3] sm:$0xff]
      %v485 = vld [vmem:[%s3 + $0x8] sm:$0xff]
      %v486 = vld [vmem:[%s3 + $0x10] sm:$0xff]
      %v487 = vld [vmem:[%s3 + $0x18] sm:$0xff]
      %vm488 = vcmask 261120
      %v490 = vsel %vm488, %v436, 0
      %v493 = vsel %vm488, %v437, 0
      %v496 = vsel %vm488, %v438, 0
      %v499 = vsel %vm488, %v439, 0
      %v502 = vsel %vm488, %v440, 0
      %v505 = vsel %vm488, %v441, 0
      %v508 = vsel %vm488, %v442, 0
      %v511 = vsel %vm488, %v443, 0
      %v514 = vsel %vm488, %v444, 0
      %v517 = vsel %vm488, %v445, 0
      %v520 = vsel %vm488, %v446, 0
      %v523 = vsel %vm488, %v447, 0
      %v526 = vsel %vm488, %v448, 0
      %v529 = vsel %vm488, %v449, 0
      %v532 = vsel %vm488, %v450, 0
      %v535 = vsel %vm488, %v451, 0
      %537 = vmatprep.subr.mxu0 0.0
      %538 = vmatpush1.msra.mxu0 %v484
      %539 = vmatprep.subr.mxu0 0.0
      %540 = vmatpush1.msra.mxu0 %v485
      %541 = vmatprep.subr.mxu0 0.0
      %542 = vmatpush1.msra.mxu0 %v486
      %543 = vmatprep.subr.mxu0 0.0
      %544 = vmatpush1.msra.mxu0 %v487
      %545 = vmatprep.subr.mxu0 0.0
      %546 = vmatpush1.msra.mxu0 0.0
      %547 = vmatprep.subr.mxu0 0.0
      %548 = vmatpush1.msra.mxu0 0.0
      %549 = vmatprep.subr.mxu0 0.0
      %550 = vmatpush1.msra.mxu0 0.0
      %551 = vmatprep.subr.mxu0 0.0
      %552 = vmatpush1.msra.mxu0 0.0
      %553 = vmatprep.subr.mxu0 0.0
      %554 = vmatpush1.msra.mxu0 0.0
      %555 = vmatprep.subr.mxu0 0.0
      %556 = vmatpush1.msra.mxu0 0.0
      %557 = vmatprep.subr.mxu0 0.0
      %558 = vmatpush1.msra.mxu0 0.0
      %559 = vmatprep.subr.mxu0 0.0
      %560 = vmatpush1.msra.mxu0 0.0
      %561 = vmatprep.subr.mxu0 0.0
      %562 = vmatpush1.msra.mxu0 0.0
      %563 = vmatprep.subr.mxu0 0.0
      %564 = vmatpush1.msra.mxu0 0.0
      %565 = vmatprep.subr.mxu0 0.0
      %566 = vmatpush1.msra.mxu0 0.0
      %567 = vmatprep.subr.mxu0 0.0
      %568 = vmatpush1.msra.mxu0 0.0
      %569 = vmatprep.subr.mxu0 0.0
      %570 = vmatpush1.msra.mxu0 0.0
      %571 = vmatprep.subr.mxu0 0.0
      %572 = vmatpush1.msra.mxu0 0.0
      %573 = vmatprep.subr.mxu0 0.0
      %574 = vmatpush1.msra.mxu0 0.0
      %575 = vmatprep.subr.mxu0 0.0
      %576 = vmatpush1.msra.mxu0 0.0
      %577 = vmatprep.subr.mxu0 0.0
      %578 = vmatpush1.msra.mxu0 0.0
      %579 = vmatprep.subr.mxu0 0.0
      %580 = vmatpush1.msra.mxu0 0.0
      %581 = vmatprep.subr.mxu0 0.0
      %582 = vmatpush1.msra.mxu0 0.0
      %583 = vmatprep.subr.mxu0 0.0
      %584 = vmatpush1.msra.mxu0 0.0
      %585 = vmatprep.subr.mxu0 0.0
      %586 = vmatpush1.msra.mxu0 0.0
      %587 = vmatprep.subr.mxu0 0.0
      %588 = vmatpush1.msra.mxu0 0.0
      %589 = vmatprep.subr.mxu0 0.0
      %590 = vmatpush1.msra.mxu0 0.0
      %591 = vmatprep.subr.mxu0 0.0
      %592 = vmatpush1.msra.mxu0 0.0
      %593 = vmatprep.subr.mxu0 0.0
      %594 = vmatpush1.msra.mxu0 0.0
      %595 = vmatprep.subr.mxu0 0.0
      %596 = vmatpush1.msra.mxu0 0.0
      %597 = vmatprep.subr.mxu0 0.0
      %598 = vmatpush1.msra.mxu0 0.0
      %599 = vmatprep.subr.mxu0 0.0
      %600 = vmatpush1.msra.mxu0 0.0
      %601 = vmatprep.mubr.f32.mxu0 0.0
      %602 = vmatmul.mubr.f32.gmra.mrb[0].mxu0 %v490
      %v603 = vpop.f32.mrb[0].mxu0
      %v604 = vadd.f32 0.0, %v603
      %v605 = vpop.f32.mrb[0].mxu0
      %606 = vmatprep.mubr.f32.mxu0 0.0
      %607 = vmatmul.mubr.f32.gmra.mrb[0].mxu0 %v493
      %v608 = vpop.f32.mrb[0].mxu0
      %v609 = vadd.f32 0.0, %v608
      %v610 = vpop.f32.mrb[0].mxu0
      %611 = vmatprep.mubr.f32.mxu0 0.0
      %612 = vmatmul.mubr.f32.gmra.mrb[0].mxu0 %v496
      %v613 = vpop.f32.mrb[0].mxu0
      %v614 = vadd.f32 0.0, %v613
      %v615 = vpop.f32.mrb[0].mxu0
      %616 = vmatprep.mubr.f32.mxu0 0.0
      %617 = vmatmul.mubr.f32.gmra.mrb[0].mxu0 %v499
      %v618 = vpop.f32.mrb[0].mxu0
      %v619 = vadd.f32 0.0, %v618
      %v620 = vpop.f32.mrb[0].mxu0
      %621 = vmatprep.mubr.f32.mxu0 0.0
      %622 = vmatmul.mubr.f32.gmra.mrb[0].mxu0 %v502
      %v623 = vpop.f32.mrb[0].mxu0
      %v624 = vadd.f32 0.0, %v623
      %v625 = vpop.f32.mrb[0].mxu0
      %626 = vmatprep.mubr.f32.mxu0 0.0
      %627 = vmatmul.mubr.f32.gmra.mrb[0].mxu0 %v505
      %v628 = vpop.f32.mrb[0].mxu0
      %v629 = vadd.f32 0.0, %v628
      %v630 = vpop.f32.mrb[0].mxu0
      %631 = vmatprep.mubr.f32.mxu0 0.0
      %632 = vmatmul.mubr.f32.gmra.mrb[0].mxu0 %v508
      %v633 = vpop.f32.mrb[0].mxu0
      %v634 = vadd.f32 0.0, %v633
      %v635 = vpop.f32.mrb[0].mxu0
      %636 = vmatprep.mubr.f32.mxu0 0.0
      %637 = vmatmul.mubr.f32.gmra.mrb[0].mxu0 %v511
      %v638 = vpop.f32.mrb[0].mxu0
      %v639 = vadd.f32 0.0, %v638
      %v640 = vpop.f32.mrb[0].mxu0
      %641 = vmatprep.mubr.f32.mxu0 0.0
      %642 = vmatmul.mubr.f32.gmra.mrb[0].mxu0 %v514
      %v643 = vpop.f32.mrb[0].mxu0
      %v644 = vadd.f32 0.0, %v643
      %v645 = vpop.f32.mrb[0].mxu0
      %646 = vmatprep.mubr.f32.mxu0 0.0
      %647 = vmatmul.mubr.f32.gmra.mrb[0].mxu0 %v517
      %v648 = vpop.f32.mrb[0].mxu0
      %v649 = vadd.f32 0.0, %v648
      %v650 = vpop.f32.mrb[0].mxu0
      %651 = vmatprep.mubr.f32.mxu0 0.0
      %652 = vmatmul.mubr.f32.gmra.mrb[0].mxu0 %v520
      %v653 = vpop.f32.mrb[0].mxu0
      %v654 = vadd.f32 0.0, %v653
      %v655 = vpop.f32.mrb[0].mxu0
      %656 = vmatprep.mubr.f32.mxu0 0.0
      %657 = vmatmul.mubr.f32.gmra.mrb[0].mxu0 %v523
      %v658 = vpop.f32.mrb[0].mxu0
      %v659 = vadd.f32 0.0, %v658
      %v660 = vpop.f32.mrb[0].mxu0
      %661 = vmatprep.mubr.f32.mxu0 0.0
      %662 = vmatmul.mubr.f32.gmra.mrb[0].mxu0 %v526
      %v663 = vpop.f32.mrb[0].mxu0
      %v664 = vadd.f32 0.0, %v663
      %v665 = vpop.f32.mrb[0].mxu0
      %666 = vmatprep.mubr.f32.mxu0 0.0
      %667 = vmatmul.mubr.f32.gmra.mrb[0].mxu0 %v529
      %v668 = vpop.f32.mrb[0].mxu0
      %v669 = vadd.f32 0.0, %v668
      %v670 = vpop.f32.mrb[0].mxu0
      %671 = vmatprep.mubr.f32.mxu0 0.0
      %672 = vmatmul.mubr.f32.gmra.mrb[0].mxu0 %v532
      %v673 = vpop.f32.mrb[0].mxu0
      %v674 = vadd.f32 0.0, %v673
      %v675 = vpop.f32.mrb[0].mxu0
      %676 = vmatprep.mubr.f32.mxu0 0.0
      %677 = vmatmul.mubr.f32.gmra.mrb[0].mxu0 %v535
      %v678 = vpop.f32.mrb[0].mxu0
      %v679 = vadd.f32 0.0, %v678
      %v680 = vpop.f32.mrb[0].mxu0
      %681 = vdwg.mxu0
      %v682 = vld [vmem:[%s5] sm:$0xff]
      %v683 = vld [vmem:[%s5 + $0x8] sm:$0xff]
      %v684 = vld [vmem:[%s5 + $0x10] sm:$0xff]
      %v685 = vld [vmem:[%s5 + $0x18] sm:$0xff]
      %v686 = vld [vmem:[%s5 + $0x20] sm:$0xff]
      %v687 = vld [vmem:[%s5 + $0x28] sm:$0xff]
      %vm688 = vcmask 392192
      %v690 = vsel %vm688, %v452, 0
      %v693 = vsel %vm688, %v453, 0
      %v696 = vsel %vm688, %v454, 0
      %v699 = vsel %vm688, %v455, 0
      %v702 = vsel %vm688, %v456, 0
      %v705 = vsel %vm688, %v457, 0
      %v708 = vsel %vm688, %v458, 0
      %v711 = vsel %vm688, %v459, 0
      %v714 = vsel %vm688, %v460, 0
      %v717 = vsel %vm688, %v461, 0
      %v720 = vsel %vm688, %v462, 0
      %v723 = vsel %vm688, %v463, 0
      %v726 = vsel %vm688, %v464, 0
      %v729 = vsel %vm688, %v465, 0
      %v732 = vsel %vm688, %v466, 0
      %v735 = vsel %vm688, %v467, 0
      %v738 = vsel %vm688, %v468, 0
      %v741 = vsel %vm688, %v469, 0
      %v744 = vsel %vm688, %v470, 0
      %v747 = vsel %vm688, %v471, 0
      %v750 = vsel %vm688, %v472, 0
      %v753 = vsel %vm688, %v473, 0
      %v756 = vsel %vm688, %v474, 0
      %v759 = vsel %vm688, %v475, 0
      %v762 = vsel %vm688, %v476, 0
      %v765 = vsel %vm688, %v477, 0
      %v768 = vsel %vm688, %v478, 0
      %v771 = vsel %vm688, %v479, 0
      %v774 = vsel %vm688, %v480, 0
      %v777 = vsel %vm688, %v481, 0
      %v780 = vsel %vm688, %v482, 0
      %v783 = vsel %vm688, %v483, 0
      %785 = vmatprep.subr.mxu0 0.0
      %786 = vmatpush1.msra.mxu0 %v682
      %787 = vmatprep.subr.mxu0 0.0
      %788 = vmatpush1.msra.mxu0 %v683
      %789 = vmatprep.subr.mxu0 0.0
      %790 = vmatpush1.msra.mxu0 %v684
      %791 = vmatprep.subr.mxu0 0.0
      %792 = vmatpush1.msra.mxu0 %v685
      %793 = vmatprep.subr.mxu0 0.0
      %794 = vmatpush1.msra.mxu0 %v686
      %795 = vmatprep.subr.mxu0 0.0
      %796 = vmatpush1.msra.mxu0 %v687
      %797 = vmatprep.subr.mxu0 0.0
      %798 = vmatpush1.msra.mxu0 0.0
      %799 = vmatprep.subr.mxu0 0.0
      %800 = vmatpush1.msra.mxu0 0.0
      %801 = vmatprep.subr.mxu0 0.0
      %802 = vmatpush1.msra.mxu0 0.0
      %803 = vmatprep.subr.mxu0 0.0
      %804 = vmatpush1.msra.mxu0 0.0
      %805 = vmatprep.subr.mxu0 0.0
      %806 = vmatpush1.msra.mxu0 0.0
      %807 = vmatprep.subr.mxu0 0.0
      %808 = vmatpush1.msra.mxu0 0.0
      %809 = vmatprep.subr.mxu0 0.0
      %810 = vmatpush1.msra.mxu0 0.0
      %811 = vmatprep.subr.mxu0 0.0
      %812 = vmatpush1.msra.mxu0 0.0
      %813 = vmatprep.subr.mxu0 0.0
      %814 = vmatpush1.msra.mxu0 0.0
      %815 = vmatprep.subr.mxu0 0.0
      %816 = vmatpush1.msra.mxu0 0.0
      %817 = vmatprep.subr.mxu0 0.0
      %818 = vmatpush1.msra.mxu0 0.0
      %819 = vmatprep.subr.mxu0 0.0
      %820 = vmatpush1.msra.mxu0 0.0
      %821 = vmatprep.subr.mxu0 0.0
      %822 = vmatpush1.msra.mxu0 0.0
      %823 = vmatprep.subr.mxu0 0.0
      %824 = vmatpush1.msra.mxu0 0.0
      %825 = vmatprep.subr.mxu0 0.0
      %826 = vmatpush1.msra.mxu0 0.0
      %827 = vmatprep.subr.mxu0 0.0
      %828 = vmatpush1.msra.mxu0 0.0
      %829 = vmatprep.subr.mxu0 0.0
      %830 = vmatpush1.msra.mxu0 0.0
      %831 = vmatprep.subr.mxu0 0.0
      %832 = vmatpush1.msra.mxu0 0.0
      %833 = vmatprep.subr.mxu0 0.0
      %834 = vmatpush1.msra.mxu0 0.0
      %835 = vmatprep.subr.mxu0 0.0
      %836 = vmatpush1.msra.mxu0 0.0
      %837 = vmatprep.subr.mxu0 0.0
      %838 = vmatpush1.msra.mxu0 0.0
      %839 = vmatprep.subr.mxu0 0.0
      %840 = vmatpush1.msra.mxu0 0.0
      %841 = vmatprep.subr.mxu0 0.0
      %842 = vmatpush1.msra.mxu0 0.0
      %843 = vmatprep.subr.mxu0 0.0
      %844 = vmatpush1.msra.mxu0 0.0
      %845 = vmatprep.subr.mxu0 0.0
      %846 = vmatpush1.msra.mxu0 0.0
      %847 = vmatprep.subr.mxu0 0.0
      %848 = vmatpush1.msra.mxu0 0.0
      %849 = vmatprep.mubr.f32.mxu0 0.0
      %850 = vmatmul.mubr.f32.gmra.mrb[0].mxu0 %v690
      %v851 = vpop.f32.mrb[0].mxu0
      %v852 = vadd.f32 0.0, %v851
      %v853 = vpop.f32.mrb[0].mxu0
      %854 = vmatprep.mubr.f32.mxu0 0.0
      %855 = vmatmul.mubr.f32.gmra.mrb[0].mxu0 %v693
      %v856 = vpop.f32.mrb[0].mxu0
      %v857 = vadd.f32 0.0, %v856
      %v858 = vpop.f32.mrb[0].mxu0
      %859 = vmatprep.mubr.f32.mxu0 0.0
      %860 = vmatmul.mubr.f32.gmra.mrb[0].mxu0 %v696
      %v861 = vpop.f32.mrb[0].mxu0
      %v862 = vadd.f32 0.0, %v861
      %v863 = vpop.f32.mrb[0].mxu0
      %864 = vmatprep.mubr.f32.mxu0 0.0
      %865 = vmatmul.mubr.f32.gmra.mrb[0].mxu0 %v699
      %v866 = vpop.f32.mrb[0].mxu0
      %v867 = vadd.f32 0.0, %v866
      %v868 = vpop.f32.mrb[0].mxu0
      %869 = vmatprep.mubr.f32.mxu0 0.0
      %870 = vmatmul.mubr.f32.gmra.mrb[0].mxu0 %v702
      %v871 = vpop.f32.mrb[0].mxu0
      %v872 = vadd.f32 0.0, %v871
      %v873 = vpop.f32.mrb[0].mxu0
      %874 = vmatprep.mubr.f32.mxu0 0.0
      %875 = vmatmul.mubr.f32.gmra.mrb[0].mxu0 %v705
      %v876 = vpop.f32.mrb[0].mxu0
      %v877 = vadd.f32 0.0, %v876
      %v878 = vpop.f32.mrb[0].mxu0
      %879 = vmatprep.mubr.f32.mxu0 0.0
      %880 = vmatmul.mubr.f32.gmra.mrb[0].mxu0 %v708
      %v881 = vpop.f32.mrb[0].mxu0
      %v882 = vadd.f32 0.0, %v881
      %v883 = vpop.f32.mrb[0].mxu0
      %884 = vmatprep.mubr.f32.mxu0 0.0
      %885 = vmatmul.mubr.f32.gmra.mrb[0].mxu0 %v711
      %v886 = vpop.f32.mrb[0].mxu0
      %v887 = vadd.f32 0.0, %v886
      %v888 = vpop.f32.mrb[0].mxu0
      %889 = vmatprep.mubr.f32.mxu0 0.0
      %890 = vmatmul.mubr.f32.gmra.mrb[0].mxu0 %v714
      %v891 = vpop.f32.mrb[0].mxu0
      %v892 = vadd.f32 0.0, %v891
      %v893 = vpop.f32.mrb[0].mxu0
      %894 = vmatprep.mubr.f32.mxu0 0.0
      %895 = vmatmul.mubr.f32.gmra.mrb[0].mxu0 %v717
      %v896 = vpop.f32.mrb[0].mxu0
      %v897 = vadd.f32 0.0, %v896
      %v898 = vpop.f32.mrb[0].mxu0
      %899 = vmatprep.mubr.f32.mxu0 0.0
      %900 = vmatmul.mubr.f32.gmra.mrb[0].mxu0 %v720
      %v901 = vpop.f32.mrb[0].mxu0
      %v902 = vadd.f32 0.0, %v901
      %v903 = vpop.f32.mrb[0].mxu0
      %904 = vmatprep.mubr.f32.mxu0 0.0
      %905 = vmatmul.mubr.f32.gmra.mrb[0].mxu0 %v723
      %v906 = vpop.f32.mrb[0].mxu0
      %v907 = vadd.f32 0.0, %v906
      %v908 = vpop.f32.mrb[0].mxu0
      %909 = vmatprep.mubr.f32.mxu0 0.0
      %910 = vmatmul.mubr.f32.gmra.mrb[0].mxu0 %v726
      %v911 = vpop.f32.mrb[0].mxu0
      %v912 = vadd.f32 0.0, %v911
      %v913 = vpop.f32.mrb[0].mxu0
      %914 = vmatprep.mubr.f32.mxu0 0.0
      %915 = vmatmul.mubr.f32.gmra.mrb[0].mxu0 %v729
      %v916 = vpop.f32.mrb[0].mxu0
      %v917 = vadd.f32 0.0, %v916
      %v918 = vpop.f32.mrb[0].mxu0
      %919 = vmatprep.mubr.f32.mxu0 0.0
      %920 = vmatmul.mubr.f32.gmra.mrb[0].mxu0 %v732
      %v921 = vpop.f32.mrb[0].mxu0
      %v922 = vadd.f32 0.0, %v921
      %v923 = vpop.f32.mrb[0].mxu0
      %924 = vmatprep.mubr.f32.mxu0 0.0
      %925 = vmatmul.mubr.f32.gmra.mrb[0].mxu0 %v735
      %v926 = vpop.f32.mrb[0].mxu0
      %v927 = vadd.f32 0.0, %v926
      %v928 = vpop.f32.mrb[0].mxu0
      %929 = vmatprep.mubr.f32.mxu0 0.0
      %930 = vmatmul.mubr.f32.gmra.mrb[0].mxu0 %v738
      %v931 = vpop.f32.mrb[0].mxu0
      %v932 = vadd.f32 0.0, %v931
      %v933 = vpop.f32.mrb[0].mxu0
      %934 = vmatprep.mubr.f32.mxu0 0.0
      %935 = vmatmul.mubr.f32.gmra.mrb[0].mxu0 %v741
      %v936 = vpop.f32.mrb[0].mxu0
      %v937 = vadd.f32 0.0, %v936
      %v938 = vpop.f32.mrb[0].mxu0
      %939 = vmatprep.mubr.f32.mxu0 0.0
      %940 = vmatmul.mubr.f32.gmra.mrb[0].mxu0 %v744
      %v941 = vpop.f32.mrb[0].mxu0
      %v942 = vadd.f32 0.0, %v941
      %v943 = vpop.f32.mrb[0].mxu0
      %944 = vmatprep.mubr.f32.mxu0 0.0
      %945 = vmatmul.mubr.f32.gmra.mrb[0].mxu0 %v747
      %v946 = vpop.f32.mrb[0].mxu0
      %v947 = vadd.f32 0.0, %v946
      %v948 = vpop.f32.mrb[0].mxu0
      %949 = vmatprep.mubr.f32.mxu0 0.0
      %950 = vmatmul.mubr.f32.gmra.mrb[0].mxu0 %v750
      %v951 = vpop.f32.mrb[0].mxu0
      %v952 = vadd.f32 0.0, %v951
      %v953 = vpop.f32.mrb[0].mxu0
      %954 = vmatprep.mubr.f32.mxu0 0.0
      %955 = vmatmul.mubr.f32.gmra.mrb[0].mxu0 %v753
      %v956 = vpop.f32.mrb[0].mxu0
      %v957 = vadd.f32 0.0, %v956
      %v958 = vpop.f32.mrb[0].mxu0
      %959 = vmatprep.mubr.f32.mxu0 0.0
      %960 = vmatmul.mubr.f32.gmra.mrb[0].mxu0 %v756
      %v961 = vpop.f32.mrb[0].mxu0
      %v962 = vadd.f32 0.0, %v961
      %v963 = vpop.f32.mrb[0].mxu0
      %964 = vmatprep.mubr.f32.mxu0 0.0
      %965 = vmatmul.mubr.f32.gmra.mrb[0].mxu0 %v759
      %v966 = vpop.f32.mrb[0].mxu0
      %v967 = vadd.f32 0.0, %v966
      %v968 = vpop.f32.mrb[0].mxu0
      %969 = vmatprep.mubr.f32.mxu0 0.0
      %970 = vmatmul.mubr.f32.gmra.mrb[0].mxu0 %v762
      %v971 = vpop.f32.mrb[0].mxu0
      %v972 = vadd.f32 0.0, %v971
      %v973 = vpop.f32.mrb[0].mxu0
      %974 = vmatprep.mubr.f32.mxu0 0.0
      %975 = vmatmul.mubr.f32.gmra.mrb[0].mxu0 %v765
      %v976 = vpop.f32.mrb[0].mxu0
      %v977 = vadd.f32 0.0, %v976
      %v978 = vpop.f32.mrb[0].mxu0
      %979 = vmatprep.mubr.f32.mxu0 0.0
      %980 = vmatmul.mubr.f32.gmra.mrb[0].mxu0 %v768
      %v981 = vpop.f32.mrb[0].mxu0
      %v982 = vadd.f32 0.0, %v981
      %v983 = vpop.f32.mrb[0].mxu0
      %984 = vmatprep.mubr.f32.mxu0 0.0
      %985 = vmatmul.mubr.f32.gmra.mrb[0].mxu0 %v771
      %v986 = vpop.f32.mrb[0].mxu0
      %v987 = vadd.f32 0.0, %v986
      %v988 = vpop.f32.mrb[0].mxu0
      %989 = vmatprep.mubr.f32.mxu0 0.0
      %990 = vmatmul.mubr.f32.gmra.mrb[0].mxu0 %v774
      %v991 = vpop.f32.mrb[0].mxu0
      %v992 = vadd.f32 0.0, %v991
      %v993 = vpop.f32.mrb[0].mxu0
      %994 = vmatprep.mubr.f32.mxu0 0.0
      %995 = vmatmul.mubr.f32.gmra.mrb[0].mxu0 %v777
      %v996 = vpop.f32.mrb[0].mxu0
      %v997 = vadd.f32 0.0, %v996
      %v998 = vpop.f32.mrb[0].mxu0
      %999 = vmatprep.mubr.f32.mxu0 0.0
      %1000 = vmatmul.mubr.f32.gmra.mrb[0].mxu0 %v780
      %v1001 = vpop.f32.mrb[0].mxu0
      %v1002 = vadd.f32 0.0, %v1001
      %v1003 = vpop.f32.mrb[0].mxu0
      %1004 = vmatprep.mubr.f32.mxu0 0.0
      %1005 = vmatmul.mubr.f32.gmra.mrb[0].mxu0 %v783
      %v1006 = vpop.f32.mrb[0].mxu0
      %v1007 = vadd.f32 0.0, %v1006
      %v1008 = vpop.f32.mrb[0].mxu0
      %1009 = vdwg.mxu0
      %v1010 = vld [vmem:[%s4] sm:$0x1]
      %v1012 = vlaneseq
      %v1013 = vshrl.u32 %v1012, 7
      %v1014 = vsub.s32 0, %v1013
      %v1015 = vrot.slane %v1010, %v1014
      %v1017 = vadd.f32 %v604, %v1015
      %v1018 = vadd.f32 %v609, %v1015
      %v1019 = vadd.f32 %v614, %v1015
      %v1020 = vadd.f32 %v619, %v1015
      %v1021 = vadd.f32 %v624, %v1015
      %v1022 = vadd.f32 %v629, %v1015
      %v1023 = vadd.f32 %v634, %v1015
      %v1024 = vadd.f32 %v639, %v1015
      %v1025 = vadd.f32 %v644, %v1015
      %v1026 = vadd.f32 %v649, %v1015
      %v1027 = vadd.f32 %v654, %v1015
      %v1028 = vadd.f32 %v659, %v1015
      %v1029 = vadd.f32 %v664, %v1015
      %v1030 = vadd.f32 %v669, %v1015
      %v1031 = vadd.f32 %v674, %v1015
      %v1032 = vadd.f32 %v679, %v1015
      %v1033 = vld [vmem:[%s6] sm:$0x1]
      %v1035 = vlaneseq
      %v1036 = vshrl.u32 %v1035, 7
      %v1037 = vsub.s32 0, %v1036
      %v1038 = vrot.slane %v1033, %v1037
      %v1040 = vadd.f32 %v852, %v1038
      %v1041 = vadd.f32 %v857, %v1038
      %v1042 = vadd.f32 %v862, %v1038
      %v1043 = vadd.f32 %v867, %v1038
      %v1044 = vadd.f32 %v872, %v1038
      %v1045 = vadd.f32 %v877, %v1038
      %v1046 = vadd.f32 %v882, %v1038
      %v1047 = vadd.f32 %v887, %v1038
      %v1048 = vadd.f32 %v892, %v1038
      %v1049 = vadd.f32 %v897, %v1038
      %v1050 = vadd.f32 %v902, %v1038
      %v1051 = vadd.f32 %v907, %v1038
      %v1052 = vadd.f32 %v912, %v1038
      %v1053 = vadd.f32 %v917, %v1038
      %v1054 = vadd.f32 %v922, %v1038
      %v1055 = vadd.f32 %v927, %v1038
      %v1056 = vadd.f32 %v932, %v1038
      %v1057 = vadd.f32 %v937, %v1038
      %v1058 = vadd.f32 %v942, %v1038
      %v1059 = vadd.f32 %v947, %v1038
      %v1060 = vadd.f32 %v952, %v1038
      %v1061 = vadd.f32 %v957, %v1038
      %v1062 = vadd.f32 %v962, %v1038
      %v1063 = vadd.f32 %v967, %v1038
      %v1064 = vadd.f32 %v972, %v1038
      %v1065 = vadd.f32 %v977, %v1038
      %v1066 = vadd.f32 %v982, %v1038
      %v1067 = vadd.f32 %v987, %v1038
      %v1068 = vadd.f32 %v992, %v1038
      %v1069 = vadd.f32 %v997, %v1038
      %v1070 = vadd.f32 %v1002, %v1038
      %v1071 = vadd.f32 %v1007, %v1038
      %v1072 = vld [vmem:[%s427] sm:$0xff]
      %v1073 = vld [vmem:[%s427 + $0x8] sm:$0xff]
      %v1074 = vld [vmem:[%s7] sm:$0xff]
      %v1075 = vld [vmem:[%s7 + $0x8] sm:$0xff]
      %vm1076 = vcmask 130048
      %v1078 = vsel %vm1076, %v1072, 0
      %v1081 = vsel %vm1076, %v1073, 0
      %1083 = vmatprep.subr.mxu0 0.0
      %1084 = vmatpush1.msra.mxu0 %v1074
      %1085 = vmatprep.subr.mxu0 0.0
      %1086 = vmatpush1.msra.mxu0 %v1075
      %1087 = vmatprep.subr.mxu0 0.0
      %1088 = vmatpush1.msra.mxu0 0.0
      %1089 = vmatprep.subr.mxu0 0.0
      %1090 = vmatpush1.msra.mxu0 0.0
      %1091 = vmatprep.subr.mxu0 0.0
      %1092 = vmatpush1.msra.mxu0 0.0
      %1093 = vmatprep.subr.mxu0 0.0
      %1094 = vmatpush1.msra.mxu0 0.0
      %1095 = vmatprep.subr.mxu0 0.0
      %1096 = vmatpush1.msra.mxu0 0.0
      %1097 = vmatprep.subr.mxu0 0.0
      %1098 = vmatpush1.msra.mxu0 0.0
      %1099 = vmatprep.subr.mxu0 0.0
      %1100 = vmatpush1.msra.mxu0 0.0
      %1101 = vmatprep.subr.mxu0 0.0
      %1102 = vmatpush1.msra.mxu0 0.0
      %1103 = vmatprep.subr.mxu0 0.0
      %1104 = vmatpush1.msra.mxu0 0.0
      %1105 = vmatprep.subr.mxu0 0.0
      %1106 = vmatpush1.msra.mxu0 0.0
      %1107 = vmatprep.subr.mxu0 0.0
      %1108 = vmatpush1.msra.mxu0 0.0
      %1109 = vmatprep.subr.mxu0 0.0
      %1110 = vmatpush1.msra.mxu0 0.0
      %1111 = vmatprep.subr.mxu0 0.0
      %1112 = vmatpush1.msra.mxu0 0.0
      %1113 = vmatprep.subr.mxu0 0.0
      %1114 = vmatpush1.msra.mxu0 0.0
      %1115 = vmatprep.subr.mxu0 0.0
      %1116 = vmatpush1.msra.mxu0 0.0
      %1117 = vmatprep.subr.mxu0 0.0
      %1118 = vmatpush1.msra.mxu0 0.0
      %1119 = vmatprep.subr.mxu0 0.0
      %1120 = vmatpush1.msra.mxu0 0.0
      %1121 = vmatprep.subr.mxu0 0.0
      %1122 = vmatpush1.msra.mxu0 0.0
      %1123 = vmatprep.subr.mxu0 0.0
      %1124 = vmatpush1.msra.mxu0 0.0
      %1125 = vmatprep.subr.mxu0 0.0
      %1126 = vmatpush1.msra.mxu0 0.0
      %1127 = vmatprep.subr.mxu0 0.0
      %1128 = vmatpush1.msra.mxu0 0.0
      %1129 = vmatprep.subr.mxu0 0.0
      %1130 = vmatpush1.msra.mxu0 0.0
      %1131 = vmatprep.subr.mxu0 0.0
      %1132 = vmatpush1.msra.mxu0 0.0
      %1133 = vmatprep.subr.mxu0 0.0
      %1134 = vmatpush1.msra.mxu0 0.0
      %1135 = vmatprep.subr.mxu0 0.0
      %1136 = vmatpush1.msra.mxu0 0.0
      %1137 = vmatprep.subr.mxu0 0.0
      %1138 = vmatpush1.msra.mxu0 0.0
      %1139 = vmatprep.subr.mxu0 0.0
      %1140 = vmatpush1.msra.mxu0 0.0
      %1141 = vmatprep.subr.mxu0 0.0
      %1142 = vmatpush1.msra.mxu0 0.0
      %1143 = vmatprep.subr.mxu0 0.0
      %1144 = vmatpush1.msra.mxu0 0.0
      %1145 = vmatprep.subr.mxu0 0.0
      %1146 = vmatpush1.msra.mxu0 0.0
      %1147 = vmatprep.mubr.f32.mxu0 0.0
      %1148 = vmatmul.mubr.f32.gmra.mrb[0].mxu0 %v1078
      %v1149 = vpop.f32.mrb[0].mxu0
      %v1150 = vadd.f32 0.0, %v1149
      %v1151 = vpop.f32.mrb[0].mxu0
      %1152 = vmatprep.mubr.f32.mxu0 0.0
      %1153 = vmatmul.mubr.f32.gmra.mrb[0].mxu0 %v1081
      %v1154 = vpop.f32.mrb[0].mxu0
      %v1155 = vadd.f32 0.0, %v1154
      %v1156 = vpop.f32.mrb[0].mxu0
      %1157 = vdwg.mxu0
      %v1158 = vld [vmem:[%s8] sm:$0xff]
      %v1159 = vld [vmem:[%s8 + $0x8] sm:$0xff]
      %1160 = vmatprep.subr.mxu0 0.0
      %1161 = vmatpush1.msra.mxu0 %v1158
      %1162 = vmatprep.subr.mxu0 0.0
      %1163 = vmatpush1.msra.mxu0 %v1159
      %1164 = vmatprep.subr.mxu0 0.0
      %1165 = vmatpush1.msra.mxu0 0.0
      %1166 = vmatprep.subr.mxu0 0.0
      %1167 = vmatpush1.msra.mxu0 0.0
      %1168 = vmatprep.subr.mxu0 0.0
      %1169 = vmatpush1.msra.mxu0 0.0
      %1170 = vmatprep.subr.mxu0 0.0
      %1171 = vmatpush1.msra.mxu0 0.0
      %1172 = vmatprep.subr.mxu0 0.0
      %1173 = vmatpush1.msra.mxu0 0.0
      %1174 = vmatprep.subr.mxu0 0.0
      %1175 = vmatpush1.msra.mxu0 0.0
      %1176 = vmatprep.subr.mxu0 0.0
      %1177 = vmatpush1.msra.mxu0 0.0
      %1178 = vmatprep.subr.mxu0 0.0
      %1179 = vmatpush1.msra.mxu0 0.0
      %1180 = vmatprep.subr.mxu0 0.0
      %1181 = vmatpush1.msra.mxu0 0.0
      %1182 = vmatprep.subr.mxu0 0.0
      %1183 = vmatpush1.msra.mxu0 0.0
      %1184 = vmatprep.subr.mxu0 0.0
      %1185 = vmatpush1.msra.mxu0 0.0
      %1186 = vmatprep.subr.mxu0 0.0
      %1187 = vmatpush1.msra.mxu0 0.0
      %1188 = vmatprep.subr.mxu0 0.0
      %1189 = vmatpush1.msra.mxu0 0.0
      %1190 = vmatprep.subr.mxu0 0.0
      %1191 = vmatpush1.msra.mxu0 0.0
      %1192 = vmatprep.subr.mxu0 0.0
      %1193 = vmatpush1.msra.mxu0 0.0
      %1194 = vmatprep.subr.mxu0 0.0
      %1195 = vmatpush1.msra.mxu0 0.0
      %1196 = vmatprep.subr.mxu0 0.0
      %1197 = vmatpush1.msra.mxu0 0.0
      %1198 = vmatprep.subr.mxu0 0.0
      %1199 = vmatpush1.msra.mxu0 0.0
      %1200 = vmatprep.subr.mxu0 0.0
      %1201 = vmatpush1.msra.mxu0 0.0
      %1202 = vmatprep.subr.mxu0 0.0
      %1203 = vmatpush1.msra.mxu0 0.0
      %1204 = vmatprep.subr.mxu0 0.0
      %1205 = vmatpush1.msra.mxu0 0.0
      %1206 = vmatprep.subr.mxu0 0.0
      %1207 = vmatpush1.msra.mxu0 0.0
      %1208 = vmatprep.subr.mxu0 0.0
      %1209 = vmatpush1.msra.mxu0 0.0
      %1210 = vmatprep.subr.mxu0 0.0
      %1211 = vmatpush1.msra.mxu0 0.0
      %1212 = vmatprep.subr.mxu0 0.0
      %1213 = vmatpush1.msra.mxu0 0.0
      %1214 = vmatprep.subr.mxu0 0.0
      %1215 = vmatpush1.msra.mxu0 0.0
      %1216 = vmatprep.subr.mxu0 0.0
      %1217 = vmatpush1.msra.mxu0 0.0
      %1218 = vmatprep.subr.mxu0 0.0
      %1219 = vmatpush1.msra.mxu0 0.0
      %1220 = vmatprep.subr.mxu0 0.0
      %1221 = vmatpush1.msra.mxu0 0.0
      %1222 = vmatprep.subr.mxu0 0.0
      %1223 = vmatpush1.msra.mxu0 0.0
      %1224 = vmatprep.mubr.f32.mxu0 0.0
      %1225 = vmatmul.mubr.f32.gmra.mrb[0].mxu0 %v1078
      %v1226 = vpop.f32.mrb[0].mxu0
      %v1227 = vadd.f32 0.0, %v1226
      %v1228 = vpop.f32.mrb[0].mxu0
      %1229 = vmatprep.mubr.f32.mxu0 0.0
      %1230 = vmatmul.mubr.f32.gmra.mrb[0].mxu0 %v1081
      %v1231 = vpop.f32.mrb[0].mxu0
      %v1232 = vadd.f32 0.0, %v1231
      %v1233 = vpop.f32.mrb[0].mxu0
      %1234 = vdwg.mxu0
      %v1237 = vcombine.high %v1150, %v1150
      %v1239 = vunpack.c.l.s4 1966171168
      %v1240 = vunpack.c.0.s8 %v1239
      %v1241 = vlaneseq
      %v1242 = vshrl.u32 %v1241, 7
      %v1243 = vsub.s32 %v1240, %v1242
      %v1244 = vrot.slane %v1150, %v1243
      %v1246 = vunpack.c.l.s4 1966171168
      %v1247 = vunpack.c.0.s8 %v1246
      %v1248 = vlaneseq
      %v1249 = vshrl.u32 %v1248, 7
      %v1250 = vsub.s32 %v1247, %v1249
      %v1251 = vrot.slane %v1237, %v1250
      %v1252 = vcombine.high %v1244, %v1244
      %v1253 = vcombine.high %v1251, %v1251
      %v1255 = vunpack.c.l.s4 1966171168
      %v1256 = vunpack.c.0.s8 %v1255
      %v1257 = vlaneseq
      %v1258 = vshrl.u32 %v1257, 7
      %v1259 = vsub.s32 %v1256, %v1258
      %v1260 = vrot.slane %v1244, %v1259
      %v1262 = vunpack.c.l.s4 1966171168
      %v1263 = vunpack.c.0.s8 %v1262
      %v1264 = vlaneseq
      %v1265 = vshrl.u32 %v1264, 7
      %v1266 = vsub.s32 %v1263, %v1265
      %v1267 = vrot.slane %v1251, %v1266
      %v1269 = vunpack.c.l.s4 1966171168
      %v1270 = vunpack.c.0.s8 %v1269
      %v1271 = vlaneseq
      %v1272 = vshrl.u32 %v1271, 7
      %v1273 = vsub.s32 %v1270, %v1272
      %v1274 = vrot.slane %v1252, %v1273
      %v1276 = vunpack.c.l.s4 1966171168
      %v1277 = vunpack.c.0.s8 %v1276
      %v1278 = vlaneseq
      %v1279 = vshrl.u32 %v1278, 7
      %v1280 = vsub.s32 %v1277, %v1279
      %v1281 = vrot.slane %v1253, %v1280
      %v1282 = vcombine.high %v1260, %v1260
      %v1283 = vcombine.high %v1267, %v1267
      %v1284 = vcombine.high %v1274, %v1274
      %v1285 = vcombine.high %v1281, %v1281
      %v1286 = vcombine.high %v1155, %v1155
      %v1288 = vunpack.c.l.s4 1966171168
      %v1289 = vunpack.c.0.s8 %v1288
      %v1290 = vlaneseq
      %v1291 = vshrl.u32 %v1290, 7
      %v1292 = vsub.s32 %v1289, %v1291
      %v1293 = vrot.slane %v1155, %v1292
      %v1295 = vunpack.c.l.s4 1966171168
      %v1296 = vunpack.c.0.s8 %v1295
      %v1297 = vlaneseq
      %v1298 = vshrl.u32 %v1297, 7
      %v1299 = vsub.s32 %v1296, %v1298
      %v1300 = vrot.slane %v1286, %v1299
      %v1301 = vcombine.high %v1293, %v1293
      %v1302 = vcombine.high %v1300, %v1300
      %v1304 = vunpack.c.l.s4 1966171168
      %v1305 = vunpack.c.0.s8 %v1304
      %v1306 = vlaneseq
      %v1307 = vshrl.u32 %v1306, 7
      %v1308 = vsub.s32 %v1305, %v1307
      %v1309 = vrot.slane %v1293, %v1308
      %v1311 = vunpack.c.l.s4 1966171168
      %v1312 = vunpack.c.0.s8 %v1311
      %v1313 = vlaneseq
      %v1314 = vshrl.u32 %v1313, 7
      %v1315 = vsub.s32 %v1312, %v1314
      %v1316 = vrot.slane %v1300, %v1315
      %v1318 = vunpack.c.l.s4 1966171168
      %v1319 = vunpack.c.0.s8 %v1318
      %v1320 = vlaneseq
      %v1321 = vshrl.u32 %v1320, 7
      %v1322 = vsub.s32 %v1319, %v1321
      %v1323 = vrot.slane %v1301, %v1322
      %v1325 = vunpack.c.l.s4 1966171168
      %v1326 = vunpack.c.0.s8 %v1325
      %v1327 = vlaneseq
      %v1328 = vshrl.u32 %v1327, 7
      %v1329 = vsub.s32 %v1326, %v1328
      %v1330 = vrot.slane %v1302, %v1329
      %v1331 = vcombine.high %v1309, %v1309
      %v1332 = vcombine.high %v1316, %v1316
      %v1333 = vcombine.high %v1323, %v1323
      %v1334 = vcombine.high %v1330, %v1330
      %v1335 = vlaneseq
      %v1336 = vshrl.u32 %v1335, 7
      %v1337 = vsub.s32 0, %v1336
      %v1338 = vrot.slane %v1260, %v1337
      %v1339 = vlaneseq
      %v1340 = vshrl.u32 %v1339, 7
      %v1341 = vsub.s32 0, %v1340
      %v1342 = vrot.slane %v1274, %v1341
      %v1343 = vlaneseq
      %v1344 = vshrl.u32 %v1343, 7
      %v1345 = vsub.s32 0, %v1344
      %v1346 = vrot.slane %v1282, %v1345
      %v1347 = vlaneseq
      %v1348 = vshrl.u32 %v1347, 7
      %v1349 = vsub.s32 0, %v1348
      %v1350 = vrot.slane %v1284, %v1349
      %v1351 = vlaneseq
      %v1352 = vshrl.u32 %v1351, 7
      %v1353 = vsub.s32 0, %v1352
      %v1354 = vrot.slane %v1267, %v1353
      %v1355 = vlaneseq
      %v1356 = vshrl.u32 %v1355, 7
      %v1357 = vsub.s32 0, %v1356
      %v1358 = vrot.slane %v1281, %v1357
      %v1359 = vlaneseq
      %v1360 = vshrl.u32 %v1359, 7
      %v1361 = vsub.s32 0, %v1360
      %v1362 = vrot.slane %v1283, %v1361
      %v1363 = vlaneseq
      %v1364 = vshrl.u32 %v1363, 7
      %v1365 = vsub.s32 0, %v1364
      %v1366 = vrot.slane %v1285, %v1365
      %v1367 = vlaneseq
      %v1368 = vshrl.u32 %v1367, 7
      %v1369 = vsub.s32 0, %v1368
      %v1370 = vrot.slane %v1309, %v1369
      %v1371 = vlaneseq
      %v1372 = vshrl.u32 %v1371, 7
      %v1373 = vsub.s32 0, %v1372
      %v1374 = vrot.slane %v1323, %v1373
      %v1375 = vlaneseq
      %v1376 = vshrl.u32 %v1375, 7
      %v1377 = vsub.s32 0, %v1376
      %v1378 = vrot.slane %v1331, %v1377
      %v1379 = vlaneseq
      %v1380 = vshrl.u32 %v1379, 7
      %v1381 = vsub.s32 0, %v1380
      %v1382 = vrot.slane %v1333, %v1381
      %v1383 = vlaneseq
      %v1384 = vshrl.u32 %v1383, 7
      %v1385 = vsub.s32 0, %v1384
      %v1386 = vrot.slane %v1316, %v1385
      %v1387 = vlaneseq
      %v1388 = vshrl.u32 %v1387, 7
      %v1389 = vsub.s32 0, %v1388
      %v1390 = vrot.slane %v1330, %v1389
      %v1391 = vlaneseq
      %v1392 = vshrl.u32 %v1391, 7
      %v1393 = vsub.s32 0, %v1392
      %v1394 = vrot.slane %v1332, %v1393
      %v1395 = vlaneseq
      %v1396 = vshrl.u32 %v1395, 7
      %v1397 = vsub.s32 0, %v1396
      %v1398 = vrot.slane %v1334, %v1397
      %v1415 = vadd.f32 %v1017, %v1338
      %v1416 = vadd.f32 %v1018, %v1342
      %v1417 = vadd.f32 %v1019, %v1346
      %v1418 = vadd.f32 %v1020, %v1350
      %v1419 = vadd.f32 %v1021, %v1354
      %v1420 = vadd.f32 %v1022, %v1358
      %v1421 = vadd.f32 %v1023, %v1362
      %v1422 = vadd.f32 %v1024, %v1366
      %v1423 = vadd.f32 %v1025, %v1370
      %v1424 = vadd.f32 %v1026, %v1374
      %v1425 = vadd.f32 %v1027, %v1378
      %v1426 = vadd.f32 %v1028, %v1382
      %v1427 = vadd.f32 %v1029, %v1386
      %v1428 = vadd.f32 %v1030, %v1390
      %v1429 = vadd.f32 %v1031, %v1394
      %v1430 = vadd.f32 %v1032, %v1398
      %v1433 = vcombine.high %v1227, %v1227
      %v1435 = vunpack.c.l.s4 1966171168
      %v1436 = vunpack.c.0.s8 %v1435
      %v1437 = vlaneseq
      %v1438 = vshrl.u32 %v1437, 7
      %v1439 = vsub.s32 %v1436, %v1438
      %v1440 = vrot.slane %v1227, %v1439
      %v1442 = vunpack.c.l.s4 1966171168
      %v1443 = vunpack.c.0.s8 %v1442
      %v1444 = vlaneseq
      %v1445 = vshrl.u32 %v1444, 7
      %v1446 = vsub.s32 %v1443, %v1445
      %v1447 = vrot.slane %v1433, %v1446
      %v1448 = vcombine.high %v1440, %v1440
      %v1449 = vcombine.high %v1447, %v1447
      %v1451 = vunpack.c.l.s4 1966171168
      %v1452 = vunpack.c.0.s8 %v1451
      %v1453 = vlaneseq
      %v1454 = vshrl.u32 %v1453, 7
      %v1455 = vsub.s32 %v1452, %v1454
      %v1456 = vrot.slane %v1440, %v1455
      %v1458 = vunpack.c.l.s4 1966171168
      %v1459 = vunpack.c.0.s8 %v1458
      %v1460 = vlaneseq
      %v1461 = vshrl.u32 %v1460, 7
      %v1462 = vsub.s32 %v1459, %v1461
      %v1463 = vrot.slane %v1447, %v1462
      %v1465 = vunpack.c.l.s4 1966171168
      %v1466 = vunpack.c.0.s8 %v1465
      %v1467 = vlaneseq
      %v1468 = vshrl.u32 %v1467, 7
      %v1469 = vsub.s32 %v1466, %v1468
      %v1470 = vrot.slane %v1448, %v1469
      %v1472 = vunpack.c.l.s4 1966171168
      %v1473 = vunpack.c.0.s8 %v1472
      %v1474 = vlaneseq
      %v1475 = vshrl.u32 %v1474, 7
      %v1476 = vsub.s32 %v1473, %v1475
      %v1477 = vrot.slane %v1449, %v1476
      %v1478 = vcombine.high %v1456, %v1456
      %v1479 = vcombine.high %v1463, %v1463
      %v1480 = vcombine.high %v1470, %v1470
      %v1481 = vcombine.high %v1477, %v1477
      %v1482 = vcombine.high %v1232, %v1232
      %v1484 = vunpack.c.l.s4 1966171168
      %v1485 = vunpack.c.0.s8 %v1484
      %v1486 = vlaneseq
      %v1487 = vshrl.u32 %v1486, 7
      %v1488 = vsub.s32 %v1485, %v1487
      %v1489 = vrot.slane %v1232, %v1488
      %v1491 = vunpack.c.l.s4 1966171168
      %v1492 = vunpack.c.0.s8 %v1491
      %v1493 = vlaneseq
      %v1494 = vshrl.u32 %v1493, 7
      %v1495 = vsub.s32 %v1492, %v1494
      %v1496 = vrot.slane %v1482, %v1495
      %v1497 = vcombine.high %v1489, %v1489
      %v1498 = vcombine.high %v1496, %v1496
      %v1500 = vunpack.c.l.s4 1966171168
      %v1501 = vunpack.c.0.s8 %v1500
      %v1502 = vlaneseq
      %v1503 = vshrl.u32 %v1502, 7
      %v1504 = vsub.s32 %v1501, %v1503
      %v1505 = vrot.slane %v1489, %v1504
      %v1507 = vunpack.c.l.s4 1966171168
      %v1508 = vunpack.c.0.s8 %v1507
      %v1509 = vlaneseq
      %v1510 = vshrl.u32 %v1509, 7
      %v1511 = vsub.s32 %v1508, %v1510
      %v1512 = vrot.slane %v1496, %v1511
      %v1514 = vunpack.c.l.s4 1966171168
      %v1515 = vunpack.c.0.s8 %v1514
      %v1516 = vlaneseq
      %v1517 = vshrl.u32 %v1516, 7
      %v1518 = vsub.s32 %v1515, %v1517
      %v1519 = vrot.slane %v1497, %v1518
      %v1521 = vunpack.c.l.s4 1966171168
      %v1522 = vunpack.c.0.s8 %v1521
      %v1523 = vlaneseq
      %v1524 = vshrl.u32 %v1523, 7
      %v1525 = vsub.s32 %v1522, %v1524
      %v1526 = vrot.slane %v1498, %v1525
      %v1527 = vcombine.high %v1505, %v1505
      %v1528 = vcombine.high %v1512, %v1512
      %v1529 = vcombine.high %v1519, %v1519
      %v1530 = vcombine.high %v1526, %v1526
      %v1531 = vlaneseq
      %v1532 = vshrl.u32 %v1531, 7
      %v1533 = vsub.s32 0, %v1532
      %v1534 = vrot.slane %v1456, %v1533
      %v1535 = vlaneseq
      %v1536 = vshrl.u32 %v1535, 7
      %v1537 = vsub.s32 0, %v1536
      %v1538 = vrot.slane %v1470, %v1537
      %v1539 = vlaneseq
      %v1540 = vshrl.u32 %v1539, 7
      %v1541 = vsub.s32 0, %v1540
      %v1542 = vrot.slane %v1478, %v1541
      %v1543 = vlaneseq
      %v1544 = vshrl.u32 %v1543, 7
      %v1545 = vsub.s32 0, %v1544
      %v1546 = vrot.slane %v1480, %v1545
      %v1547 = vlaneseq
      %v1548 = vshrl.u32 %v1547, 7
      %v1549 = vsub.s32 0, %v1548
      %v1550 = vrot.slane %v1463, %v1549
      %v1551 = vlaneseq
      %v1552 = vshrl.u32 %v1551, 7
      %v1553 = vsub.s32 0, %v1552
      %v1554 = vrot.slane %v1477, %v1553
      %v1555 = vlaneseq
      %v1556 = vshrl.u32 %v1555, 7
      %v1557 = vsub.s32 0, %v1556
      %v1558 = vrot.slane %v1479, %v1557
      %v1559 = vlaneseq
      %v1560 = vshrl.u32 %v1559, 7
      %v1561 = vsub.s32 0, %v1560
      %v1562 = vrot.slane %v1481, %v1561
      %v1563 = vlaneseq
      %v1564 = vshrl.u32 %v1563, 7
      %v1565 = vsub.s32 0, %v1564
      %v1566 = vrot.slane %v1505, %v1565
      %v1567 = vlaneseq
      %v1568 = vshrl.u32 %v1567, 7
      %v1569 = vsub.s32 0, %v1568
      %v1570 = vrot.slane %v1519, %v1569
      %v1571 = vlaneseq
      %v1572 = vshrl.u32 %v1571, 7
      %v1573 = vsub.s32 0, %v1572
      %v1574 = vrot.slane %v1527, %v1573
      %v1575 = vlaneseq
      %v1576 = vshrl.u32 %v1575, 7
      %v1577 = vsub.s32 0, %v1576
      %v1578 = vrot.slane %v1529, %v1577
      %v1579 = vlaneseq
      %v1580 = vshrl.u32 %v1579, 7
      %v1581 = vsub.s32 0, %v1580
      %v1582 = vrot.slane %v1512, %v1581
      %v1583 = vlaneseq
      %v1584 = vshrl.u32 %v1583, 7
      %v1585 = vsub.s32 0, %v1584
      %v1586 = vrot.slane %v1526, %v1585
      %v1587 = vlaneseq
      %v1588 = vshrl.u32 %v1587, 7
      %v1589 = vsub.s32 0, %v1588
      %v1590 = vrot.slane %v1528, %v1589
      %v1591 = vlaneseq
      %v1592 = vshrl.u32 %v1591, 7
      %v1593 = vsub.s32 0, %v1592
      %v1594 = vrot.slane %v1530, %v1593
      %v1611 = vadd.f32 %v1040, %v1534
      %v1612 = vadd.f32 %v1041, %v1534
      %v1613 = vadd.f32 %v1042, %v1538
      %v1614 = vadd.f32 %v1043, %v1538
      %v1615 = vadd.f32 %v1044, %v1542
      %v1616 = vadd.f32 %v1045, %v1542
      %v1617 = vadd.f32 %v1046, %v1546
      %v1618 = vadd.f32 %v1047, %v1546
      %v1619 = vadd.f32 %v1048, %v1550
      %v1620 = vadd.f32 %v1049, %v1550
      %v1621 = vadd.f32 %v1050, %v1554
      %v1622 = vadd.f32 %v1051, %v1554
      %v1623 = vadd.f32 %v1052, %v1558
      %v1624 = vadd.f32 %v1053, %v1558
      %v1625 = vadd.f32 %v1054, %v1562
      %v1626 = vadd.f32 %v1055, %v1562
      %v1627 = vadd.f32 %v1056, %v1566
      %v1628 = vadd.f32 %v1057, %v1566
      %v1629 = vadd.f32 %v1058, %v1570
      %v1630 = vadd.f32 %v1059, %v1570
      %v1631 = vadd.f32 %v1060, %v1574
      %v1632 = vadd.f32 %v1061, %v1574
      %v1633 = vadd.f32 %v1062, %v1578
      %v1634 = vadd.f32 %v1063, %v1578
      %v1635 = vadd.f32 %v1064, %v1582
      %v1636 = vadd.f32 %v1065, %v1582
      %v1637 = vadd.f32 %v1066, %v1586
      %v1638 = vadd.f32 %v1067, %v1586
      %v1639 = vadd.f32 %v1068, %v1590
      %v1640 = vadd.f32 %v1069, %v1590
      %v1641 = vadd.f32 %v1070, %v1594
      %v1642 = vadd.f32 %v1071, %v1594
      %vm1643 = vcmp.gt.f32.partialorder %v1415, 0.0
      %vm1644 = vcmp.gt.f32.partialorder %v1416, 0.0
      %vm1645 = vcmp.gt.f32.partialorder %v1417, 0.0
      %vm1646 = vcmp.gt.f32.partialorder %v1418, 0.0
      %vm1647 = vcmp.gt.f32.partialorder %v1419, 0.0
      %vm1648 = vcmp.gt.f32.partialorder %v1420, 0.0
      %vm1649 = vcmp.gt.f32.partialorder %v1421, 0.0
      %vm1650 = vcmp.gt.f32.partialorder %v1422, 0.0
      %vm1651 = vcmp.gt.f32.partialorder %v1423, 0.0
      %vm1652 = vcmp.gt.f32.partialorder %v1424, 0.0
      %vm1653 = vcmp.gt.f32.partialorder %v1425, 0.0
      %vm1654 = vcmp.gt.f32.partialorder %v1426, 0.0
      %vm1655 = vcmp.gt.f32.partialorder %v1427, 0.0
      %vm1656 = vcmp.gt.f32.partialorder %v1428, 0.0
      %vm1657 = vcmp.gt.f32.partialorder %v1429, 0.0
      %vm1658 = vcmp.gt.f32.partialorder %v1430, 0.0
      %v1659 = vmin.f32 %v1415, 0.0
      %v1660 = vmin.f32 %v1416, 0.0
      %v1661 = vmin.f32 %v1417, 0.0
      %v1662 = vmin.f32 %v1418, 0.0
      %v1663 = vmin.f32 %v1419, 0.0
      %v1664 = vmin.f32 %v1420, 0.0
      %v1665 = vmin.f32 %v1421, 0.0
      %v1666 = vmin.f32 %v1422, 0.0
      %v1667 = vmin.f32 %v1423, 0.0
      %v1668 = vmin.f32 %v1424, 0.0
      %v1669 = vmin.f32 %v1425, 0.0
      %v1670 = vmin.f32 %v1426, 0.0
      %v1671 = vmin.f32 %v1427, 0.0
      %v1672 = vmin.f32 %v1428, 0.0
      %v1673 = vmin.f32 %v1429, 0.0
      %v1674 = vmin.f32 %v1430, 0.0
      %v1675 = vmul.f32 %v1659, 1.442695
      %v1676 = vpow.pop %v1675
      %v1677 = vmul.f32 %v1660, 1.442695
      %v1678 = vpow.pop %v1677
      %v1679 = vmul.f32 %v1661, 1.442695
      %v1680 = vpow.pop %v1679
      %v1681 = vmul.f32 %v1662, 1.442695
      %v1682 = vpow.pop %v1681
      %v1683 = vmul.f32 %v1663, 1.442695
      %v1684 = vpow.pop %v1683
      %v1685 = vmul.f32 %v1664, 1.442695
      %v1686 = vpow.pop %v1685
      %v1687 = vmul.f32 %v1665, 1.442695
      %v1688 = vpow.pop %v1687
      %v1689 = vmul.f32 %v1666, 1.442695
      %v1690 = vpow.pop %v1689
      %v1691 = vmul.f32 %v1667, 1.442695
      %v1692 = vpow.pop %v1691
      %v1693 = vmul.f32 %v1668, 1.442695
      %v1694 = vpow.pop %v1693
      %v1695 = vmul.f32 %v1669, 1.442695
      %v1696 = vpow.pop %v1695
      %v1697 = vmul.f32 %v1670, 1.442695
      %v1698 = vpow.pop %v1697
      %v1699 = vmul.f32 %v1671, 1.442695
      %v1700 = vpow.pop %v1699
      %v1701 = vmul.f32 %v1672, 1.442695
      %v1702 = vpow.pop %v1701
      %v1703 = vmul.f32 %v1673, 1.442695
      %v1704 = vpow.pop %v1703
      %v1705 = vmul.f32 %v1674, 1.442695
      %v1706 = vpow.pop %v1705
      %v1707 = vsub.f32 %v1676, 1.0
      %v1708 = vsub.f32 %v1678, 1.0
      %v1709 = vsub.f32 %v1680, 1.0
      %v1710 = vsub.f32 %v1682, 1.0
      %v1711 = vsub.f32 %v1684, 1.0
      %v1712 = vsub.f32 %v1686, 1.0
      %v1713 = vsub.f32 %v1688, 1.0
      %v1714 = vsub.f32 %v1690, 1.0
      %v1715 = vsub.f32 %v1692, 1.0
      %v1716 = vsub.f32 %v1694, 1.0
      %v1717 = vsub.f32 %v1696, 1.0
      %v1718 = vsub.f32 %v1698, 1.0
      %v1719 = vsub.f32 %v1700, 1.0
      %v1720 = vsub.f32 %v1702, 1.0
      %v1721 = vsub.f32 %v1704, 1.0
      %v1722 = vsub.f32 %v1706, 1.0
      %v1723 = vsel %vm1643, %v1415, %v1707
      %v1724 = vsel %vm1644, %v1416, %v1708
      %v1725 = vsel %vm1645, %v1417, %v1709
      %v1726 = vsel %vm1646, %v1418, %v1710
      %v1727 = vsel %vm1647, %v1419, %v1711
      %v1728 = vsel %vm1648, %v1420, %v1712
      %v1729 = vsel %vm1649, %v1421, %v1713
      %v1730 = vsel %vm1650, %v1422, %v1714
      %v1731 = vsel %vm1651, %v1423, %v1715
      %v1732 = vsel %vm1652, %v1424, %v1716
      %v1733 = vsel %vm1653, %v1425, %v1717
      %v1734 = vsel %vm1654, %v1426, %v1718
      %v1735 = vsel %vm1655, %v1427, %v1719
      %v1736 = vsel %vm1656, %v1428, %v1720
      %v1737 = vsel %vm1657, %v1429, %v1721
      %v1738 = vsel %vm1658, %v1430, %v1722
      %vm1739 = vcmp.gt.f32.partialorder %v1611, 0.0
      %vm1740 = vcmp.gt.f32.partialorder %v1612, 0.0
      %vm1741 = vcmp.gt.f32.partialorder %v1613, 0.0
      %vm1742 = vcmp.gt.f32.partialorder %v1614, 0.0
      %vm1743 = vcmp.gt.f32.partialorder %v1615, 0.0
      %vm1744 = vcmp.gt.f32.partialorder %v1616, 0.0
      %vm1745 = vcmp.gt.f32.partialorder %v1617, 0.0
      %vm1746 = vcmp.gt.f32.partialorder %v1618, 0.0
      %vm1747 = vcmp.gt.f32.partialorder %v1619, 0.0
      %vm1748 = vcmp.gt.f32.partialorder %v1620, 0.0
      %vm1749 = vcmp.gt.f32.partialorder %v1621, 0.0
      %vm1750 = vcmp.gt.f32.partialorder %v1622, 0.0
      %vm1751 = vcmp.gt.f32.partialorder %v1623, 0.0
      %vm1752 = vcmp.gt.f32.partialorder %v1624, 0.0
      %vm1753 = vcmp.gt.f32.partialorder %v1625, 0.0
      %vm1754 = vcmp.gt.f32.partialorder %v1626, 0.0
      %vm1755 = vcmp.gt.f32.partialorder %v1627, 0.0
      %vm1756 = vcmp.gt.f32.partialorder %v1628, 0.0
      %vm1757 = vcmp.gt.f32.partialorder %v1629, 0.0
      %vm1758 = vcmp.gt.f32.partialorder %v1630, 0.0
      %vm1759 = vcmp.gt.f32.partialorder %v1631, 0.0
      %vm1760 = vcmp.gt.f32.partialorder %v1632, 0.0
      %vm1761 = vcmp.gt.f32.partialorder %v1633, 0.0
      %vm1762 = vcmp.gt.f32.partialorder %v1634, 0.0
      %vm1763 = vcmp.gt.f32.partialorder %v1635, 0.0
      %vm1764 = vcmp.gt.f32.partialorder %v1636, 0.0
      %vm1765 = vcmp.gt.f32.partialorder %v1637, 0.0
      %vm1766 = vcmp.gt.f32.partialorder %v1638, 0.0
      %vm1767 = vcmp.gt.f32.partialorder %v1639, 0.0
      %vm1768 = vcmp.gt.f32.partialorder %v1640, 0.0
      %vm1769 = vcmp.gt.f32.partialorder %v1641, 0.0
      %vm1770 = vcmp.gt.f32.partialorder %v1642, 0.0
      %v1771 = vmin.f32 %v1611, 0.0
      %v1772 = vmin.f32 %v1612, 0.0
      %v1773 = vmin.f32 %v1613, 0.0
      %v1774 = vmin.f32 %v1614, 0.0
      %v1775 = vmin.f32 %v1615, 0.0
      %v1776 = vmin.f32 %v1616, 0.0
      %v1777 = vmin.f32 %v1617, 0.0
      %v1778 = vmin.f32 %v1618, 0.0
      %v1779 = vmin.f32 %v1619, 0.0
      %v1780 = vmin.f32 %v1620, 0.0
      %v1781 = vmin.f32 %v1621, 0.0
      %v1782 = vmin.f32 %v1622, 0.0
      %v1783 = vmin.f32 %v1623, 0.0
      %v1784 = vmin.f32 %v1624, 0.0
      %v1785 = vmin.f32 %v1625, 0.0
      %v1786 = vmin.f32 %v1626, 0.0
      %v1787 = vmin.f32 %v1627, 0.0
      %v1788 = vmin.f32 %v1628, 0.0
      %v1789 = vmin.f32 %v1629, 0.0
      %v1790 = vmin.f32 %v1630, 0.0
      %v1791 = vmin.f32 %v1631, 0.0
      %v1792 = vmin.f32 %v1632, 0.0
      %v1793 = vmin.f32 %v1633, 0.0
      %v1794 = vmin.f32 %v1634, 0.0
      %v1795 = vmin.f32 %v1635, 0.0
      %v1796 = vmin.f32 %v1636, 0.0
      %v1797 = vmin.f32 %v1637, 0.0
      %v1798 = vmin.f32 %v1638, 0.0
      %v1799 = vmin.f32 %v1639, 0.0
      %v1800 = vmin.f32 %v1640, 0.0
      %v1801 = vmin.f32 %v1641, 0.0
      %v1802 = vmin.f32 %v1642, 0.0
      %v1803 = vmul.f32 %v1771, 1.442695
      %v1804 = vpow.pop %v1803
      %v1805 = vmul.f32 %v1772, 1.442695
      %v1806 = vpow.pop %v1805
      %v1807 = vmul.f32 %v1773, 1.442695
      %v1808 = vpow.pop %v1807
      %v1809 = vmul.f32 %v1774, 1.442695
      %v1810 = vpow.pop %v1809
      %v1811 = vmul.f32 %v1775, 1.442695
      %v1812 = vpow.pop %v1811
      %v1813 = vmul.f32 %v1776, 1.442695
      %v1814 = vpow.pop %v1813
      %v1815 = vmul.f32 %v1777, 1.442695
      %v1816 = vpow.pop %v1815
      %v1817 = vmul.f32 %v1778, 1.442695
      %v1818 = vpow.pop %v1817
      %v1819 = vmul.f32 %v1779, 1.442695
      %v1820 = vpow.pop %v1819
      %v1821 = vmul.f32 %v1780, 1.442695
      %v1822 = vpow.pop %v1821
      %v1823 = vmul.f32 %v1781, 1.442695
      %v1824 = vpow.pop %v1823
      %v1825 = vmul.f32 %v1782, 1.442695
      %v1826 = vpow.pop %v1825
      %v1827 = vmul.f32 %v1783, 1.442695
      %v1828 = vpow.pop %v1827
      %v1829 = vmul.f32 %v1784, 1.442695
      %v1830 = vpow.pop %v1829
      %v1831 = vmul.f32 %v1785, 1.442695
      %v1832 = vpow.pop %v1831
      %v1833 = vmul.f32 %v1786, 1.442695
      %v1834 = vpow.pop %v1833
      %v1835 = vmul.f32 %v1787, 1.442695
      %v1836 = vpow.pop %v1835
      %v1837 = vmul.f32 %v1788, 1.442695
      %v1838 = vpow.pop %v1837
      %v1839 = vmul.f32 %v1789, 1.442695
      %v1840 = vpow.pop %v1839
      %v1841 = vmul.f32 %v1790, 1.442695
      %v1842 = vpow.pop %v1841
      %v1843 = vmul.f32 %v1791, 1.442695
      %v1844 = vpow.pop %v1843
      %v1845 = vmul.f32 %v1792, 1.442695
      %v1846 = vpow.pop %v1845
      %v1847 = vmul.f32 %v1793, 1.442695
      %v1848 = vpow.pop %v1847
      %v1849 = vmul.f32 %v1794, 1.442695
      %v1850 = vpow.pop %v1849
      %v1851 = vmul.f32 %v1795, 1.442695
      %v1852 = vpow.pop %v1851
      %v1853 = vmul.f32 %v1796, 1.442695
      %v1854 = vpow.pop %v1853
      %v1855 = vmul.f32 %v1797, 1.442695
      %v1856 = vpow.pop %v1855
      %v1857 = vmul.f32 %v1798, 1.442695
      %v1858 = vpow.pop %v1857
      %v1859 = vmul.f32 %v1799, 1.442695
      %v1860 = vpow.pop %v1859
      %v1861 = vmul.f32 %v1800, 1.442695
      %v1862 = vpow.pop %v1861
      %v1863 = vmul.f32 %v1801, 1.442695
      %v1864 = vpow.pop %v1863
      %v1865 = vmul.f32 %v1802, 1.442695
      %v1866 = vpow.pop %v1865
      %v1867 = vsub.f32 %v1804, 1.0
      %v1868 = vsub.f32 %v1806, 1.0
      %v1869 = vsub.f32 %v1808, 1.0
      %v1870 = vsub.f32 %v1810, 1.0
      %v1871 = vsub.f32 %v1812, 1.0
      %v1872 = vsub.f32 %v1814, 1.0
      %v1873 = vsub.f32 %v1816, 1.0
      %v1874 = vsub.f32 %v1818, 1.0
      %v1875 = vsub.f32 %v1820, 1.0
      %v1876 = vsub.f32 %v1822, 1.0
      %v1877 = vsub.f32 %v1824, 1.0
      %v1878 = vsub.f32 %v1826, 1.0
      %v1879 = vsub.f32 %v1828, 1.0
      %v1880 = vsub.f32 %v1830, 1.0
      %v1881 = vsub.f32 %v1832, 1.0
      %v1882 = vsub.f32 %v1834, 1.0
      %v1883 = vsub.f32 %v1836, 1.0
      %v1884 = vsub.f32 %v1838, 1.0
      %v1885 = vsub.f32 %v1840, 1.0
      %v1886 = vsub.f32 %v1842, 1.0
      %v1887 = vsub.f32 %v1844, 1.0
      %v1888 = vsub.f32 %v1846, 1.0
      %v1889 = vsub.f32 %v1848, 1.0
      %v1890 = vsub.f32 %v1850, 1.0
      %v1891 = vsub.f32 %v1852, 1.0
      %v1892 = vsub.f32 %v1854, 1.0
      %v1893 = vsub.f32 %v1856, 1.0
      %v1894 = vsub.f32 %v1858, 1.0
      %v1895 = vsub.f32 %v1860, 1.0
      %v1896 = vsub.f32 %v1862, 1.0
      %v1897 = vsub.f32 %v1864, 1.0
      %v1898 = vsub.f32 %v1866, 1.0
      %v1899 = vsel %vm1739, %v1611, %v1867
      %v1900 = vsel %vm1740, %v1612, %v1868
      %v1901 = vsel %vm1741, %v1613, %v1869
      %v1902 = vsel %vm1742, %v1614, %v1870
      %v1903 = vsel %vm1743, %v1615, %v1871
      %v1904 = vsel %vm1744, %v1616, %v1872
      %v1905 = vsel %vm1745, %v1617, %v1873
      %v1906 = vsel %vm1746, %v1618, %v1874
      %v1907 = vsel %vm1747, %v1619, %v1875
      %v1908 = vsel %vm1748, %v1620, %v1876
      %v1909 = vsel %vm1749, %v1621, %v1877
      %v1910 = vsel %vm1750, %v1622, %v1878
      %v1911 = vsel %vm1751, %v1623, %v1879
      %v1912 = vsel %vm1752, %v1624, %v1880
      %v1913 = vsel %vm1753, %v1625, %v1881
      %v1914 = vsel %vm1754, %v1626, %v1882
      %v1915 = vsel %vm1755, %v1627, %v1883
      %v1916 = vsel %vm1756, %v1628, %v1884
      %v1917 = vsel %vm1757, %v1629, %v1885
      %v1918 = vsel %vm1758, %v1630, %v1886
      %v1919 = vsel %vm1759, %v1631, %v1887
      %v1920 = vsel %vm1760, %v1632, %v1888
      %v1921 = vsel %vm1761, %v1633, %v1889
      %v1922 = vsel %vm1762, %v1634, %v1890
      %v1923 = vsel %vm1763, %v1635, %v1891
      %v1924 = vsel %vm1764, %v1636, %v1892
      %v1925 = vsel %vm1765, %v1637, %v1893
      %v1926 = vsel %vm1766, %v1638, %v1894
      %v1927 = vsel %vm1767, %v1639, %v1895
      %v1928 = vsel %vm1768, %v1640, %v1896
      %v1929 = vsel %vm1769, %v1641, %v1897
      %v1930 = vsel %vm1770, %v1642, %v1898
      %v1931 = vlaneseq
      %v1932 = vshrl.u32 %v1931, 7
      %v1933 = vadd.s32 %v1932, 8
      %vm1934 = vcmp.lt.s32.totalorder %v1932, 12
      %vm1935 = vcmp.lt.s32.totalorder %v1933, 12
      %v1936 = vsel %vm1934, 1, 0
      %v1937 = vsel %vm1935, 1, 0
      %vm1938 = vcmp.eq.s32.totalorder %v1936, 1
      %vm1939 = vcmp.eq.s32.totalorder %v1937, 1
      %v1940 = vsel %vm1938, %v1899, 0.0
      %v1941 = vsel %vm1939, %v1900, 0.0
      %v1942 = vsel %vm1938, %v1901, 0.0
      %v1943 = vsel %vm1939, %v1902, 0.0
      %v1944 = vsel %vm1938, %v1903, 0.0
      %v1945 = vsel %vm1939, %v1904, 0.0
      %v1946 = vsel %vm1938, %v1905, 0.0
      %v1947 = vsel %vm1939, %v1906, 0.0
      %v1948 = vsel %vm1938, %v1907, 0.0
      %v1949 = vsel %vm1939, %v1908, 0.0
      %v1950 = vsel %vm1938, %v1909, 0.0
      %v1951 = vsel %vm1939, %v1910, 0.0
      %v1952 = vsel %vm1938, %v1911, 0.0
      %v1953 = vsel %vm1939, %v1912, 0.0
      %v1954 = vsel %vm1938, %v1913, 0.0
      %v1955 = vsel %vm1939, %v1914, 0.0
      %v1956 = vsel %vm1938, %v1915, 0.0
      %v1957 = vsel %vm1939, %v1916, 0.0
      %v1958 = vsel %vm1938, %v1917, 0.0
      %v1959 = vsel %vm1939, %v1918, 0.0
      %v1960 = vsel %vm1938, %v1919, 0.0
      %v1961 = vsel %vm1939, %v1920, 0.0
      %v1962 = vsel %vm1938, %v1921, 0.0
      %v1963 = vsel %vm1939, %v1922, 0.0
      %v1964 = vsel %vm1938, %v1923, 0.0
      %v1965 = vsel %vm1939, %v1924, 0.0
      %v1966 = vsel %vm1938, %v1925, 0.0
      %v1967 = vsel %vm1939, %v1926, 0.0
      %v1968 = vsel %vm1938, %v1927, 0.0
      %v1969 = vsel %vm1939, %v1928, 0.0
      %v1970 = vsel %vm1938, %v1929, 0.0
      %v1971 = vsel %vm1939, %v1930, 0.0
      %v1972 = vsel %vm488, %v1723, 0.0
      %v1973 = vrot.slane %v1972, 4
      %v1974 = vadd.f32 %v1972, %v1973
      %v1975 = vrot.slane %v1974, 2
      %v1976 = vadd.f32 %v1974, %v1975
      %v1977 = vrot.slane %v1976, 1
      %v1978 = vadd.f32 %v1976, %v1977
      %v1979 = vsel %vm488, %v1724, 0.0
      %v1980 = vrot.slane %v1979, 4
      %v1981 = vadd.f32 %v1979, %v1980
      %v1982 = vrot.slane %v1981, 2
      %v1983 = vadd.f32 %v1981, %v1982
      %v1984 = vrot.slane %v1983, 1
      %v1985 = vadd.f32 %v1983, %v1984
      %v1986 = vsel %vm488, %v1725, 0.0
      %v1987 = vrot.slane %v1986, 4
      %v1988 = vadd.f32 %v1986, %v1987
      %v1989 = vrot.slane %v1988, 2
      %v1990 = vadd.f32 %v1988, %v1989
      %v1991 = vrot.slane %v1990, 1
      %v1992 = vadd.f32 %v1990, %v1991
      %v1993 = vsel %vm488, %v1726, 0.0
      %v1994 = vrot.slane %v1993, 4
      %v1995 = vadd.f32 %v1993, %v1994
      %v1996 = vrot.slane %v1995, 2
      %v1997 = vadd.f32 %v1995, %v1996
      %v1998 = vrot.slane %v1997, 1
      %v1999 = vadd.f32 %v1997, %v1998
      %v2000 = vsel %vm488, %v1727, 0.0
      %v2001 = vrot.slane %v2000, 4
      %v2002 = vadd.f32 %v2000, %v2001
      %v2003 = vrot.slane %v2002, 2
      %v2004 = vadd.f32 %v2002, %v2003
      %v2005 = vrot.slane %v2004, 1
      %v2006 = vadd.f32 %v2004, %v2005
      %v2007 = vsel %vm488, %v1728, 0.0
      %v2008 = vrot.slane %v2007, 4
      %v2009 = vadd.f32 %v2007, %v2008
      %v2010 = vrot.slane %v2009, 2
      %v2011 = vadd.f32 %v2009, %v2010
      %v2012 = vrot.slane %v2011, 1
      %v2013 = vadd.f32 %v2011, %v2012
      %v2014 = vsel %vm488, %v1729, 0.0
      %v2015 = vrot.slane %v2014, 4
      %v2016 = vadd.f32 %v2014, %v2015
      %v2017 = vrot.slane %v2016, 2
      %v2018 = vadd.f32 %v2016, %v2017
      %v2019 = vrot.slane %v2018, 1
      %v2020 = vadd.f32 %v2018, %v2019
      %v2021 = vsel %vm488, %v1730, 0.0
      %v2022 = vrot.slane %v2021, 4
      %v2023 = vadd.f32 %v2021, %v2022
      %v2024 = vrot.slane %v2023, 2
      %v2025 = vadd.f32 %v2023, %v2024
      %v2026 = vrot.slane %v2025, 1
      %v2027 = vadd.f32 %v2025, %v2026
      %v2028 = vsel %vm488, %v1731, 0.0
      %v2029 = vrot.slane %v2028, 4
      %v2030 = vadd.f32 %v2028, %v2029
      %v2031 = vrot.slane %v2030, 2
      %v2032 = vadd.f32 %v2030, %v2031
      %v2033 = vrot.slane %v2032, 1
      %v2034 = vadd.f32 %v2032, %v2033
      %v2035 = vsel %vm488, %v1732, 0.0
      %v2036 = vrot.slane %v2035, 4
      %v2037 = vadd.f32 %v2035, %v2036
      %v2038 = vrot.slane %v2037, 2
      %v2039 = vadd.f32 %v2037, %v2038
      %v2040 = vrot.slane %v2039, 1
      %v2041 = vadd.f32 %v2039, %v2040
      %v2042 = vsel %vm488, %v1733, 0.0
      %v2043 = vrot.slane %v2042, 4
      %v2044 = vadd.f32 %v2042, %v2043
      %v2045 = vrot.slane %v2044, 2
      %v2046 = vadd.f32 %v2044, %v2045
      %v2047 = vrot.slane %v2046, 1
      %v2048 = vadd.f32 %v2046, %v2047
      %v2049 = vsel %vm488, %v1734, 0.0
      %v2050 = vrot.slane %v2049, 4
      %v2051 = vadd.f32 %v2049, %v2050
      %v2052 = vrot.slane %v2051, 2
      %v2053 = vadd.f32 %v2051, %v2052
      %v2054 = vrot.slane %v2053, 1
      %v2055 = vadd.f32 %v2053, %v2054
      %v2056 = vsel %vm488, %v1735, 0.0
      %v2057 = vrot.slane %v2056, 4
      %v2058 = vadd.f32 %v2056, %v2057
      %v2059 = vrot.slane %v2058, 2
      %v2060 = vadd.f32 %v2058, %v2059
      %v2061 = vrot.slane %v2060, 1
      %v2062 = vadd.f32 %v2060, %v2061
      %v2063 = vsel %vm488, %v1736, 0.0
      %v2064 = vrot.slane %v2063, 4
      %v2065 = vadd.f32 %v2063, %v2064
      %v2066 = vrot.slane %v2065, 2
      %v2067 = vadd.f32 %v2065, %v2066
      %v2068 = vrot.slane %v2067, 1
      %v2069 = vadd.f32 %v2067, %v2068
      %v2070 = vsel %vm488, %v1737, 0.0
      %v2071 = vrot.slane %v2070, 4
      %v2072 = vadd.f32 %v2070, %v2071
      %v2073 = vrot.slane %v2072, 2
      %v2074 = vadd.f32 %v2072, %v2073
      %v2075 = vrot.slane %v2074, 1
      %v2076 = vadd.f32 %v2074, %v2075
      %v2077 = vsel %vm488, %v1738, 0.0
      %v2078 = vrot.slane %v2077, 4
      %v2079 = vadd.f32 %v2077, %v2078
      %v2080 = vrot.slane %v2079, 2
      %v2081 = vadd.f32 %v2079, %v2080
      %v2082 = vrot.slane %v2081, 1
      %v2083 = vadd.f32 %v2081, %v2082
      %v2084 = vsel %vm688, %v1940, 0.0
      %v2085 = vsel %vm688, %v1941, 0.0
      %v2086 = vadd.f32 %v2084, %v2085
      %v2087 = vrot.slane %v2086, 4
      %v2088 = vadd.f32 %v2086, %v2087
      %v2089 = vrot.slane %v2088, 2
      %v2090 = vadd.f32 %v2088, %v2089
      %v2091 = vrot.slane %v2090, 1
      %v2092 = vadd.f32 %v2090, %v2091
      %v2093 = vsel %vm688, %v1942, 0.0
      %v2094 = vsel %vm688, %v1943, 0.0
      %v2095 = vadd.f32 %v2093, %v2094
      %v2096 = vrot.slane %v2095, 4
      %v2097 = vadd.f32 %v2095, %v2096
      %v2098 = vrot.slane %v2097, 2
      %v2099 = vadd.f32 %v2097, %v2098
      %v2100 = vrot.slane %v2099, 1
      %v2101 = vadd.f32 %v2099, %v2100
      %v2102 = vsel %vm688, %v1944, 0.0
      %v2103 = vsel %vm688, %v1945, 0.0
      %v2104 = vadd.f32 %v2102, %v2103
      %v2105 = vrot.slane %v2104, 4
      %v2106 = vadd.f32 %v2104, %v2105
      %v2107 = vrot.slane %v2106, 2
      %v2108 = vadd.f32 %v2106, %v2107
      %v2109 = vrot.slane %v2108, 1
      %v2110 = vadd.f32 %v2108, %v2109
      %v2111 = vsel %vm688, %v1946, 0.0
      %v2112 = vsel %vm688, %v1947, 0.0
      %v2113 = vadd.f32 %v2111, %v2112
      %v2114 = vrot.slane %v2113, 4
      %v2115 = vadd.f32 %v2113, %v2114
      %v2116 = vrot.slane %v2115, 2
      %v2117 = vadd.f32 %v2115, %v2116
      %v2118 = vrot.slane %v2117, 1
      %v2119 = vadd.f32 %v2117, %v2118
      %v2120 = vsel %vm688, %v1948, 0.0
      %v2121 = vsel %vm688, %v1949, 0.0
      %v2122 = vadd.f32 %v2120, %v2121
      %v2123 = vrot.slane %v2122, 4
      %v2124 = vadd.f32 %v2122, %v2123
      %v2125 = vrot.slane %v2124, 2
      %v2126 = vadd.f32 %v2124, %v2125
      %v2127 = vrot.slane %v2126, 1
      %v2128 = vadd.f32 %v2126, %v2127
      %v2129 = vsel %vm688, %v1950, 0.0
      %v2130 = vsel %vm688, %v1951, 0.0
      %v2131 = vadd.f32 %v2129, %v2130
      %v2132 = vrot.slane %v2131, 4
      %v2133 = vadd.f32 %v2131, %v2132
      %v2134 = vrot.slane %v2133, 2
      %v2135 = vadd.f32 %v2133, %v2134
      %v2136 = vrot.slane %v2135, 1
      %v2137 = vadd.f32 %v2135, %v2136
      %v2138 = vsel %vm688, %v1952, 0.0
      %v2139 = vsel %vm688, %v1953, 0.0
      %v2140 = vadd.f32 %v2138, %v2139
      %v2141 = vrot.slane %v2140, 4
      %v2142 = vadd.f32 %v2140, %v2141
      %v2143 = vrot.slane %v2142, 2
      %v2144 = vadd.f32 %v2142, %v2143
      %v2145 = vrot.slane %v2144, 1
      %v2146 = vadd.f32 %v2144, %v2145
      %v2147 = vsel %vm688, %v1954, 0.0
      %v2148 = vsel %vm688, %v1955, 0.0
      %v2149 = vadd.f32 %v2147, %v2148
      %v2150 = vrot.slane %v2149, 4
      %v2151 = vadd.f32 %v2149, %v2150
      %v2152 = vrot.slane %v2151, 2
      %v2153 = vadd.f32 %v2151, %v2152
      %v2154 = vrot.slane %v2153, 1
      %v2155 = vadd.f32 %v2153, %v2154
      %v2156 = vsel %vm688, %v1956, 0.0
      %v2157 = vsel %vm688, %v1957, 0.0
      %v2158 = vadd.f32 %v2156, %v2157
      %v2159 = vrot.slane %v2158, 4
      %v2160 = vadd.f32 %v2158, %v2159
      %v2161 = vrot.slane %v2160, 2
      %v2162 = vadd.f32 %v2160, %v2161
      %v2163 = vrot.slane %v2162, 1
      %v2164 = vadd.f32 %v2162, %v2163
      %v2165 = vsel %vm688, %v1958, 0.0
      %v2166 = vsel %vm688, %v1959, 0.0
      %v2167 = vadd.f32 %v2165, %v2166
      %v2168 = vrot.slane %v2167, 4
      %v2169 = vadd.f32 %v2167, %v2168
      %v2170 = vrot.slane %v2169, 2
      %v2171 = vadd.f32 %v2169, %v2170
      %v2172 = vrot.slane %v2171, 1
      %v2173 = vadd.f32 %v2171, %v2172
      %v2174 = vsel %vm688, %v1960, 0.0
      %v2175 = vsel %vm688, %v1961, 0.0
      %v2176 = vadd.f32 %v2174, %v2175
      %v2177 = vrot.slane %v2176, 4
      %v2178 = vadd.f32 %v2176, %v2177
      %v2179 = vrot.slane %v2178, 2
      %v2180 = vadd.f32 %v2178, %v2179
      %v2181 = vrot.slane %v2180, 1
      %v2182 = vadd.f32 %v2180, %v2181
      %v2183 = vsel %vm688, %v1962, 0.0
      %v2184 = vsel %vm688, %v1963, 0.0
      %v2185 = vadd.f32 %v2183, %v2184
      %v2186 = vrot.slane %v2185, 4
      %v2187 = vadd.f32 %v2185, %v2186
      %v2188 = vrot.slane %v2187, 2
      %v2189 = vadd.f32 %v2187, %v2188
      %v2190 = vrot.slane %v2189, 1
      %v2191 = vadd.f32 %v2189, %v2190
      %v2192 = vsel %vm688, %v1964, 0.0
      %v2193 = vsel %vm688, %v1965, 0.0
      %v2194 = vadd.f32 %v2192, %v2193
      %v2195 = vrot.slane %v2194, 4
      %v2196 = vadd.f32 %v2194, %v2195
      %v2197 = vrot.slane %v2196, 2
      %v2198 = vadd.f32 %v2196, %v2197
      %v2199 = vrot.slane %v2198, 1
      %v2200 = vadd.f32 %v2198, %v2199
      %v2201 = vsel %vm688, %v1966, 0.0
      %v2202 = vsel %vm688, %v1967, 0.0
      %v2203 = vadd.f32 %v2201, %v2202
      %v2204 = vrot.slane %v2203, 4
      %v2205 = vadd.f32 %v2203, %v2204
      %v2206 = vrot.slane %v2205, 2
      %v2207 = vadd.f32 %v2205, %v2206
      %v2208 = vrot.slane %v2207, 1
      %v2209 = vadd.f32 %v2207, %v2208
      %v2210 = vsel %vm688, %v1968, 0.0
      %v2211 = vsel %vm688, %v1969, 0.0
      %v2212 = vadd.f32 %v2210, %v2211
      %v2213 = vrot.slane %v2212, 4
      %v2214 = vadd.f32 %v2212, %v2213
      %v2215 = vrot.slane %v2214, 2
      %v2216 = vadd.f32 %v2214, %v2215
      %v2217 = vrot.slane %v2216, 1
      %v2218 = vadd.f32 %v2216, %v2217
      %v2219 = vsel %vm688, %v1970, 0.0
      %v2220 = vsel %vm688, %v1971, 0.0
      %v2221 = vadd.f32 %v2219, %v2220
      %v2222 = vrot.slane %v2221, 4
      %v2223 = vadd.f32 %v2221, %v2222
      %v2224 = vrot.slane %v2223, 2
      %v2225 = vadd.f32 %v2223, %v2224
      %v2226 = vrot.slane %v2225, 1
      %v2227 = vadd.f32 %v2225, %v2226
      %v2228 = vld [vmem:[%s10] sm:$0xff]
      %v2229 = vld [vmem:[%s10 + $0x8] sm:$0xff]
      %v2230 = vld [vmem:[%s10 + $0x10] sm:$0xff]
      %v2231 = vld [vmem:[%s10 + $0x18] sm:$0xff]
      %v2232 = vld [vmem:[%s10 + $0x20] sm:$0xff]
      %v2233 = vld [vmem:[%s10 + $0x28] sm:$0xff]
      %vm2250 = vcmask 1041409
      %v2251 = vsel %vm2250, %v2101, %v2092
      %vm2252 = vcmask 1042434
      %v2253 = vsel %vm2252, %v2110, %v2251
      %vm2254 = vcmask 1043459
      %v2255 = vsel %vm2254, %v2119, %v2253
      %vm2256 = vcmask 1044484
      %v2257 = vsel %vm2256, %v2128, %v2255
      %vm2258 = vcmask 1045509
      %v2259 = vsel %vm2258, %v2137, %v2257
      %vm2260 = vcmask 1046534
      %v2261 = vsel %vm2260, %v2146, %v2259
      %vm2262 = vcmask 1047559
      %v2263 = vsel %vm2262, %v2155, %v2261
      %v2264 = vsel %vm2250, %v2173, %v2164
      %v2265 = vsel %vm2252, %v2182, %v2264
      %v2266 = vsel %vm2254, %v2191, %v2265
      %v2267 = vsel %vm2256, %v2200, %v2266
      %v2268 = vsel %vm2258, %v2209, %v2267
      %v2269 = vsel %vm2260, %v2218, %v2268
      %v2270 = vsel %vm2262, %v2227, %v2269
      %v2271 = vsel %vm688, %v2263, 0
      %v2273 = vsel %vm688, %v2270, 0
      %2275 = vmatprep.subr.mxu0 0.0
      %2276 = vmatpush1.msra.mxu0 %v2228
      %2277 = vmatprep.subr.mxu0 0.0
      %2278 = vmatpush1.msra.mxu0 %v2229
      %2279 = vmatprep.subr.mxu0 0.0
      %2280 = vmatpush1.msra.mxu0 %v2230
      %2281 = vmatprep.subr.mxu0 0.0
      %2282 = vmatpush1.msra.mxu0 %v2231
      %2283 = vmatprep.subr.mxu0 0.0
      %2284 = vmatpush1.msra.mxu0 %v2232
      %2285 = vmatprep.subr.mxu0 0.0
      %2286 = vmatpush1.msra.mxu0 %v2233
      %2287 = vmatprep.subr.mxu0 0.0
      %2288 = vmatpush1.msra.mxu0 0.0
      %2289 = vmatprep.subr.mxu0 0.0
      %2290 = vmatpush1.msra.mxu0 0.0
      %2291 = vmatprep.subr.mxu0 0.0
      %2292 = vmatpush1.msra.mxu0 0.0
      %2293 = vmatprep.subr.mxu0 0.0
      %2294 = vmatpush1.msra.mxu0 0.0
      %2295 = vmatprep.subr.mxu0 0.0
      %2296 = vmatpush1.msra.mxu0 0.0
      %2297 = vmatprep.subr.mxu0 0.0
      %2298 = vmatpush1.msra.mxu0 0.0
      %2299 = vmatprep.subr.mxu0 0.0
      %2300 = vmatpush1.msra.mxu0 0.0
      %2301 = vmatprep.subr.mxu0 0.0
      %2302 = vmatpush1.msra.mxu0 0.0
      %2303 = vmatprep.subr.mxu0 0.0
      %2304 = vmatpush1.msra.mxu0 0.0
      %2305 = vmatprep.subr.mxu0 0.0
      %2306 = vmatpush1.msra.mxu0 0.0
      %2307 = vmatprep.subr.mxu0 0.0
      %2308 = vmatpush1.msra.mxu0 0.0
      %2309 = vmatprep.subr.mxu0 0.0
      %2310 = vmatpush1.msra.mxu0 0.0
      %2311 = vmatprep.subr.mxu0 0.0
      %2312 = vmatpush1.msra.mxu0 0.0
      %2313 = vmatprep.subr.mxu0 0.0
      %2314 = vmatpush1.msra.mxu0 0.0
      %2315 = vmatprep.subr.mxu0 0.0
      %2316 = vmatpush1.msra.mxu0 0.0
      %2317 = vmatprep.subr.mxu0 0.0
      %2318 = vmatpush1.msra.mxu0 0.0
      %2319 = vmatprep.subr.mxu0 0.0
      %2320 = vmatpush1.msra.mxu0 0.0
      %2321 = vmatprep.subr.mxu0 0.0
      %2322 = vmatpush1.msra.mxu0 0.0
      %2323 = vmatprep.subr.mxu0 0.0
      %2324 = vmatpush1.msra.mxu0 0.0
      %2325 = vmatprep.subr.mxu0 0.0
      %2326 = vmatpush1.msra.mxu0 0.0
      %2327 = vmatprep.subr.mxu0 0.0
      %2328 = vmatpush1.msra.mxu0 0.0
      %2329 = vmatprep.subr.mxu0 0.0
      %2330 = vmatpush1.msra.mxu0 0.0
      %2331 = vmatprep.subr.mxu0 0.0
      %2332 = vmatpush1.msra.mxu0 0.0
      %2333 = vmatprep.subr.mxu0 0.0
      %2334 = vmatpush1.msra.mxu0 0.0
      %2335 = vmatprep.subr.mxu0 0.0
      %2336 = vmatpush1.msra.mxu0 0.0
      %2337 = vmatprep.subr.mxu0 0.0
      %2338 = vmatpush1.msra.mxu0 0.0
      %2339 = vmatprep.mubr.f32.mxu0 0.0
      %2340 = vmatmul.mubr.f32.gmra.mrb[0].mxu0 %v2271
      %v2341 = vpop.f32.mrb[0].mxu0
      %v2342 = vadd.f32 0.0, %v2341
      %v2343 = vpop.f32.mrb[0].mxu0
      %2344 = vmatprep.mubr.f32.mxu0 0.0
      %2345 = vmatmul.mubr.f32.gmra.mrb[0].mxu0 %v2273
      %v2346 = vpop.f32.mrb[0].mxu0
      %v2347 = vadd.f32 0.0, %v2346
      %v2348 = vpop.f32.mrb[0].mxu0
      %2349 = vdwg.mxu0
      %v2350 = vld [vmem:[%s9] sm:$0xff]
      %v2351 = vld [vmem:[%s9 + $0x8] sm:$0xff]
      %v2352 = vld [vmem:[%s9 + $0x10] sm:$0xff]
      %v2353 = vld [vmem:[%s9 + $0x18] sm:$0xff]
      %v2370 = vsel %vm2250, %v1985, %v1978
      %v2371 = vsel %vm2252, %v1992, %v2370
      %v2372 = vsel %vm2254, %v1999, %v2371
      %v2373 = vsel %vm2256, %v2006, %v2372
      %v2374 = vsel %vm2258, %v2013, %v2373
      %v2375 = vsel %vm2260, %v2020, %v2374
      %v2376 = vsel %vm2262, %v2027, %v2375
      %v2377 = vsel %vm2250, %v2041, %v2034
      %v2378 = vsel %vm2252, %v2048, %v2377
      %v2379 = vsel %vm2254, %v2055, %v2378
      %v2380 = vsel %vm2256, %v2062, %v2379
      %v2381 = vsel %vm2258, %v2069, %v2380
      %v2382 = vsel %vm2260, %v2076, %v2381
      %v2383 = vsel %vm2262, %v2083, %v2382
      %v2384 = vsel %vm488, %v2376, 0
      %v2386 = vsel %vm488, %v2383, 0
      %2388 = vmatprep.subr.mxu0 0.0
      %2389 = vmatpush1.msra.mxu0 %v2350
      %2390 = vmatprep.subr.mxu0 0.0
      %2391 = vmatpush1.msra.mxu0 %v2351
      %2392 = vmatprep.subr.mxu0 0.0
      %2393 = vmatpush1.msra.mxu0 %v2352
      %2394 = vmatprep.subr.mxu0 0.0
      %2395 = vmatpush1.msra.mxu0 %v2353
      %2396 = vmatprep.subr.mxu0 0.0
      %2397 = vmatpush1.msra.mxu0 0.0
      %2398 = vmatprep.subr.mxu0 0.0
      %2399 = vmatpush1.msra.mxu0 0.0
      %2400 = vmatprep.subr.mxu0 0.0
      %2401 = vmatpush1.msra.mxu0 0.0
      %2402 = vmatprep.subr.mxu0 0.0
      %2403 = vmatpush1.msra.mxu0 0.0
      %2404 = vmatprep.subr.mxu0 0.0
      %2405 = vmatpush1.msra.mxu0 0.0
      %2406 = vmatprep.subr.mxu0 0.0
      %2407 = vmatpush1.msra.mxu0 0.0
      %2408 = vmatprep.subr.mxu0 0.0
      %2409 = vmatpush1.msra.mxu0 0.0
      %2410 = vmatprep.subr.mxu0 0.0
      %2411 = vmatpush1.msra.mxu0 0.0
      %2412 = vmatprep.subr.mxu0 0.0
      %2413 = vmatpush1.msra.mxu0 0.0
      %2414 = vmatprep.subr.mxu0 0.0
      %2415 = vmatpush1.msra.mxu0 0.0
      %2416 = vmatprep.subr.mxu0 0.0
      %2417 = vmatpush1.msra.mxu0 0.0
      %2418 = vmatprep.subr.mxu0 0.0
      %2419 = vmatpush1.msra.mxu0 0.0
      %2420 = vmatprep.subr.mxu0 0.0
      %2421 = vmatpush1.msra.mxu0 0.0
      %2422 = vmatprep.subr.mxu0 0.0
      %2423 = vmatpush1.msra.mxu0 0.0
      %2424 = vmatprep.subr.mxu0 0.0
      %2425 = vmatpush1.msra.mxu0 0.0
      %2426 = vmatprep.subr.mxu0 0.0
      %2427 = vmatpush1.msra.mxu0 0.0
      %2428 = vmatprep.subr.mxu0 0.0
      %2429 = vmatpush1.msra.mxu0 0.0
      %2430 = vmatprep.subr.mxu0 0.0
      %2431 = vmatpush1.msra.mxu0 0.0
      %2432 = vmatprep.subr.mxu0 0.0
      %2433 = vmatpush1.msra.mxu0 0.0
      %2434 = vmatprep.subr.mxu0 0.0
      %2435 = vmatpush1.msra.mxu0 0.0
      %2436 = vmatprep.subr.mxu0 0.0
      %2437 = vmatpush1.msra.mxu0 0.0
      %2438 = vmatprep.subr.mxu0 0.0
      %2439 = vmatpush1.msra.mxu0 0.0
      %2440 = vmatprep.subr.mxu0 0.0
      %2441 = vmatpush1.msra.mxu0 0.0
      %2442 = vmatprep.subr.mxu0 0.0
      %2443 = vmatpush1.msra.mxu0 0.0
      %2444 = vmatprep.subr.mxu0 0.0
      %2445 = vmatpush1.msra.mxu0 0.0
      %2446 = vmatprep.subr.mxu0 0.0
      %2447 = vmatpush1.msra.mxu0 0.0
      %2448 = vmatprep.subr.mxu0 0.0
      %2449 = vmatpush1.msra.mxu0 0.0
      %2450 = vmatprep.subr.mxu0 0.0
      %2451 = vmatpush1.msra.mxu0 0.0
      %2452 = vmatprep.mubr.f32.mxu0 0.0
      %2453 = vmatmul.mubr.f32.gmra.mrb[0].mxu0 %v2384
      %v2454 = vpop.f32.mrb[0].mxu0
      %v2455 = vadd.f32 0.0, %v2454
      %v2456 = vpop.f32.mrb[0].mxu0
      %2457 = vmatprep.mubr.f32.mxu0 0.0
      %2458 = vmatmul.mubr.f32.gmra.mrb[0].mxu0 %v2386
      %v2459 = vpop.f32.mrb[0].mxu0
      %v2460 = vadd.f32 0.0, %v2459
      %v2461 = vpop.f32.mrb[0].mxu0
      %2462 = vdwg.mxu0
      %v2465 = vcombine.high %v2342, %v2342
      %v2467 = vunpack.c.l.s4 1966171168
      %v2468 = vunpack.c.0.s8 %v2467
      %v2469 = vlaneseq
      %v2470 = vshrl.u32 %v2469, 7
      %v2471 = vsub.s32 %v2468, %v2470
      %v2472 = vrot.slane %v2342, %v2471
      %v2474 = vunpack.c.l.s4 1966171168
      %v2475 = vunpack.c.0.s8 %v2474
      %v2476 = vlaneseq
      %v2477 = vshrl.u32 %v2476, 7
      %v2478 = vsub.s32 %v2475, %v2477
      %v2479 = vrot.slane %v2465, %v2478
      %v2480 = vcombine.high %v2472, %v2472
      %v2481 = vcombine.high %v2479, %v2479
      %v2483 = vunpack.c.l.s4 1966171168
      %v2484 = vunpack.c.0.s8 %v2483
      %v2485 = vlaneseq
      %v2486 = vshrl.u32 %v2485, 7
      %v2487 = vsub.s32 %v2484, %v2486
      %v2488 = vrot.slane %v2472, %v2487
      %v2490 = vunpack.c.l.s4 1966171168
      %v2491 = vunpack.c.0.s8 %v2490
      %v2492 = vlaneseq
      %v2493 = vshrl.u32 %v2492, 7
      %v2494 = vsub.s32 %v2491, %v2493
      %v2495 = vrot.slane %v2479, %v2494
      %v2497 = vunpack.c.l.s4 1966171168
      %v2498 = vunpack.c.0.s8 %v2497
      %v2499 = vlaneseq
      %v2500 = vshrl.u32 %v2499, 7
      %v2501 = vsub.s32 %v2498, %v2500
      %v2502 = vrot.slane %v2480, %v2501
      %v2504 = vunpack.c.l.s4 1966171168
      %v2505 = vunpack.c.0.s8 %v2504
      %v2506 = vlaneseq
      %v2507 = vshrl.u32 %v2506, 7
      %v2508 = vsub.s32 %v2505, %v2507
      %v2509 = vrot.slane %v2481, %v2508
      %v2510 = vcombine.high %v2488, %v2488
      %v2511 = vcombine.high %v2495, %v2495
      %v2512 = vcombine.high %v2502, %v2502
      %v2513 = vcombine.high %v2509, %v2509
      %v2514 = vcombine.high %v2347, %v2347
      %v2516 = vunpack.c.l.s4 1966171168
      %v2517 = vunpack.c.0.s8 %v2516
      %v2518 = vlaneseq
      %v2519 = vshrl.u32 %v2518, 7
      %v2520 = vsub.s32 %v2517, %v2519
      %v2521 = vrot.slane %v2347, %v2520
      %v2523 = vunpack.c.l.s4 1966171168
      %v2524 = vunpack.c.0.s8 %v2523
      %v2525 = vlaneseq
      %v2526 = vshrl.u32 %v2525, 7
      %v2527 = vsub.s32 %v2524, %v2526
      %v2528 = vrot.slane %v2514, %v2527
      %v2529 = vcombine.high %v2521, %v2521
      %v2530 = vcombine.high %v2528, %v2528
      %v2532 = vunpack.c.l.s4 1966171168
      %v2533 = vunpack.c.0.s8 %v2532
      %v2534 = vlaneseq
      %v2535 = vshrl.u32 %v2534, 7
      %v2536 = vsub.s32 %v2533, %v2535
      %v2537 = vrot.slane %v2521, %v2536
      %v2539 = vunpack.c.l.s4 1966171168
      %v2540 = vunpack.c.0.s8 %v2539
      %v2541 = vlaneseq
      %v2542 = vshrl.u32 %v2541, 7
      %v2543 = vsub.s32 %v2540, %v2542
      %v2544 = vrot.slane %v2528, %v2543
      %v2546 = vunpack.c.l.s4 1966171168
      %v2547 = vunpack.c.0.s8 %v2546
      %v2548 = vlaneseq
      %v2549 = vshrl.u32 %v2548, 7
      %v2550 = vsub.s32 %v2547, %v2549
      %v2551 = vrot.slane %v2529, %v2550
      %v2553 = vunpack.c.l.s4 1966171168
      %v2554 = vunpack.c.0.s8 %v2553
      %v2555 = vlaneseq
      %v2556 = vshrl.u32 %v2555, 7
      %v2557 = vsub.s32 %v2554, %v2556
      %v2558 = vrot.slane %v2530, %v2557
      %v2559 = vcombine.high %v2537, %v2537
      %v2560 = vcombine.high %v2544, %v2544
      %v2561 = vcombine.high %v2551, %v2551
      %v2562 = vcombine.high %v2558, %v2558
      %v2563 = vlaneseq
      %v2564 = vshrl.u32 %v2563, 7
      %v2565 = vsub.s32 0, %v2564
      %v2566 = vrot.slane %v2488, %v2565
      %v2567 = vlaneseq
      %v2568 = vshrl.u32 %v2567, 7
      %v2569 = vsub.s32 0, %v2568
      %v2570 = vrot.slane %v2502, %v2569
      %v2571 = vlaneseq
      %v2572 = vshrl.u32 %v2571, 7
      %v2573 = vsub.s32 0, %v2572
      %v2574 = vrot.slane %v2510, %v2573
      %v2575 = vlaneseq
      %v2576 = vshrl.u32 %v2575, 7
      %v2577 = vsub.s32 0, %v2576
      %v2578 = vrot.slane %v2512, %v2577
      %v2579 = vlaneseq
      %v2580 = vshrl.u32 %v2579, 7
      %v2581 = vsub.s32 0, %v2580
      %v2582 = vrot.slane %v2495, %v2581
      %v2583 = vlaneseq
      %v2584 = vshrl.u32 %v2583, 7
      %v2585 = vsub.s32 0, %v2584
      %v2586 = vrot.slane %v2509, %v2585
      %v2587 = vlaneseq
      %v2588 = vshrl.u32 %v2587, 7
      %v2589 = vsub.s32 0, %v2588
      %v2590 = vrot.slane %v2511, %v2589
      %v2591 = vlaneseq
      %v2592 = vshrl.u32 %v2591, 7
      %v2593 = vsub.s32 0, %v2592
      %v2594 = vrot.slane %v2513, %v2593
      %v2595 = vlaneseq
      %v2596 = vshrl.u32 %v2595, 7
      %v2597 = vsub.s32 0, %v2596
      %v2598 = vrot.slane %v2537, %v2597
      %v2599 = vlaneseq
      %v2600 = vshrl.u32 %v2599, 7
      %v2601 = vsub.s32 0, %v2600
      %v2602 = vrot.slane %v2551, %v2601
      %v2603 = vlaneseq
      %v2604 = vshrl.u32 %v2603, 7
      %v2605 = vsub.s32 0, %v2604
      %v2606 = vrot.slane %v2559, %v2605
      %v2607 = vlaneseq
      %v2608 = vshrl.u32 %v2607, 7
      %v2609 = vsub.s32 0, %v2608
      %v2610 = vrot.slane %v2561, %v2609
      %v2611 = vlaneseq
      %v2612 = vshrl.u32 %v2611, 7
      %v2613 = vsub.s32 0, %v2612
      %v2614 = vrot.slane %v2544, %v2613
      %v2615 = vlaneseq
      %v2616 = vshrl.u32 %v2615, 7
      %v2617 = vsub.s32 0, %v2616
      %v2618 = vrot.slane %v2558, %v2617
      %v2619 = vlaneseq
      %v2620 = vshrl.u32 %v2619, 7
      %v2621 = vsub.s32 0, %v2620
      %v2622 = vrot.slane %v2560, %v2621
      %v2623 = vlaneseq
      %v2624 = vshrl.u32 %v2623, 7
      %v2625 = vsub.s32 0, %v2624
      %v2626 = vrot.slane %v2562, %v2625
      %v2643 = vmul.f32 %v1723, %v2566
      %v2644 = vmul.f32 %v1724, %v2570
      %v2645 = vmul.f32 %v1725, %v2574
      %v2646 = vmul.f32 %v1726, %v2578
      %v2647 = vmul.f32 %v1727, %v2582
      %v2648 = vmul.f32 %v1728, %v2586
      %v2649 = vmul.f32 %v1729, %v2590
      %v2650 = vmul.f32 %v1730, %v2594
      %v2651 = vmul.f32 %v1731, %v2598
      %v2652 = vmul.f32 %v1732, %v2602
      %v2653 = vmul.f32 %v1733, %v2606
      %v2654 = vmul.f32 %v1734, %v2610
      %v2655 = vmul.f32 %v1735, %v2614
      %v2656 = vmul.f32 %v1736, %v2618
      %v2657 = vmul.f32 %v1737, %v2622
      %v2658 = vmul.f32 %v1738, %v2626
      %v2659 = vsel %vm488, %v2643, 0.0
      %2660 = vadd.xlane.f32.xlu0 %v2659
      %v2661 = vpop.xlane.xlu0 %2660
      %v2662 = vsel %vm488, %v2644, 0.0
      %2663 = vadd.xlane.f32.xlu0 %v2662
      %v2664 = vpop.xlane.xlu0 %2663
      %v2665 = vsel %vm488, %v2645, 0.0
      %2666 = vadd.xlane.f32.xlu0 %v2665
      %v2667 = vpop.xlane.xlu0 %2666
      %v2668 = vsel %vm488, %v2646, 0.0
      %2669 = vadd.xlane.f32.xlu0 %v2668
      %v2670 = vpop.xlane.xlu0 %2669
      %v2671 = vsel %vm488, %v2647, 0.0
      %2672 = vadd.xlane.f32.xlu0 %v2671
      %v2673 = vpop.xlane.xlu0 %2672
      %v2674 = vsel %vm488, %v2648, 0.0
      %2675 = vadd.xlane.f32.xlu0 %v2674
      %v2676 = vpop.xlane.xlu0 %2675
      %v2677 = vsel %vm488, %v2649, 0.0
      %2678 = vadd.xlane.f32.xlu0 %v2677
      %v2679 = vpop.xlane.xlu0 %2678
      %v2680 = vsel %vm488, %v2650, 0.0
      %2681 = vadd.xlane.f32.xlu0 %v2680
      %v2682 = vpop.xlane.xlu0 %2681
      %v2683 = vsel %vm488, %v2651, 0.0
      %2684 = vadd.xlane.f32.xlu0 %v2683
      %v2685 = vpop.xlane.xlu0 %2684
      %v2686 = vsel %vm488, %v2652, 0.0
      %2687 = vadd.xlane.f32.xlu0 %v2686
      %v2688 = vpop.xlane.xlu0 %2687
      %v2689 = vsel %vm488, %v2653, 0.0
      %2690 = vadd.xlane.f32.xlu0 %v2689
      %v2691 = vpop.xlane.xlu0 %2690
      %v2692 = vsel %vm488, %v2654, 0.0
      %2693 = vadd.xlane.f32.xlu0 %v2692
      %v2694 = vpop.xlane.xlu0 %2693
      %v2695 = vsel %vm488, %v2655, 0.0
      %2696 = vadd.xlane.f32.xlu0 %v2695
      %v2697 = vpop.xlane.xlu0 %2696
      %v2698 = vsel %vm488, %v2656, 0.0
      %2699 = vadd.xlane.f32.xlu0 %v2698
      %v2700 = vpop.xlane.xlu0 %2699
      %v2701 = vsel %vm488, %v2657, 0.0
      %2702 = vadd.xlane.f32.xlu0 %v2701
      %v2703 = vpop.xlane.xlu0 %2702
      %v2704 = vsel %vm488, %v2658, 0.0
      %2705 = vadd.xlane.f32.xlu0 %v2704
      %v2706 = vpop.xlane.xlu0 %2705
      %v2709 = vcombine.high %v2455, %v2455
      %v2711 = vunpack.c.l.s4 1966171168
      %v2712 = vunpack.c.0.s8 %v2711
      %v2713 = vlaneseq
      %v2714 = vshrl.u32 %v2713, 7
      %v2715 = vsub.s32 %v2712, %v2714
      %v2716 = vrot.slane %v2455, %v2715
      %v2718 = vunpack.c.l.s4 1966171168
      %v2719 = vunpack.c.0.s8 %v2718
      %v2720 = vlaneseq
      %v2721 = vshrl.u32 %v2720, 7
      %v2722 = vsub.s32 %v2719, %v2721
      %v2723 = vrot.slane %v2709, %v2722
      %v2724 = vcombine.high %v2716, %v2716
      %v2725 = vcombine.high %v2723, %v2723
      %v2727 = vunpack.c.l.s4 1966171168
      %v2728 = vunpack.c.0.s8 %v2727
      %v2729 = vlaneseq
      %v2730 = vshrl.u32 %v2729, 7
      %v2731 = vsub.s32 %v2728, %v2730
      %v2732 = vrot.slane %v2716, %v2731
      %v2734 = vunpack.c.l.s4 1966171168
      %v2735 = vunpack.c.0.s8 %v2734
      %v2736 = vlaneseq
      %v2737 = vshrl.u32 %v2736, 7
      %v2738 = vsub.s32 %v2735, %v2737
      %v2739 = vrot.slane %v2723, %v2738
      %v2741 = vunpack.c.l.s4 1966171168
      %v2742 = vunpack.c.0.s8 %v2741
      %v2743 = vlaneseq
      %v2744 = vshrl.u32 %v2743, 7
      %v2745 = vsub.s32 %v2742, %v2744
      %v2746 = vrot.slane %v2724, %v2745
      %v2748 = vunpack.c.l.s4 1966171168
      %v2749 = vunpack.c.0.s8 %v2748
      %v2750 = vlaneseq
      %v2751 = vshrl.u32 %v2750, 7
      %v2752 = vsub.s32 %v2749, %v2751
      %v2753 = vrot.slane %v2725, %v2752
      %v2754 = vcombine.high %v2732, %v2732
      %v2755 = vcombine.high %v2739, %v2739
      %v2756 = vcombine.high %v2746, %v2746
      %v2757 = vcombine.high %v2753, %v2753
      %v2758 = vcombine.high %v2460, %v2460
      %v2760 = vunpack.c.l.s4 1966171168
      %v2761 = vunpack.c.0.s8 %v2760
      %v2762 = vlaneseq
      %v2763 = vshrl.u32 %v2762, 7
      %v2764 = vsub.s32 %v2761, %v2763
      %v2765 = vrot.slane %v2460, %v2764
      %v2767 = vunpack.c.l.s4 1966171168
      %v2768 = vunpack.c.0.s8 %v2767
      %v2769 = vlaneseq
      %v2770 = vshrl.u32 %v2769, 7
      %v2771 = vsub.s32 %v2768, %v2770
      %v2772 = vrot.slane %v2758, %v2771
      %v2773 = vcombine.high %v2765, %v2765
      %v2774 = vcombine.high %v2772, %v2772
      %v2776 = vunpack.c.l.s4 1966171168
      %v2777 = vunpack.c.0.s8 %v2776
      %v2778 = vlaneseq
      %v2779 = vshrl.u32 %v2778, 7
      %v2780 = vsub.s32 %v2777, %v2779
      %v2781 = vrot.slane %v2765, %v2780
      %v2783 = vunpack.c.l.s4 1966171168
      %v2784 = vunpack.c.0.s8 %v2783
      %v2785 = vlaneseq
      %v2786 = vshrl.u32 %v2785, 7
      %v2787 = vsub.s32 %v2784, %v2786
      %v2788 = vrot.slane %v2772, %v2787
      %v2790 = vunpack.c.l.s4 1966171168
      %v2791 = vunpack.c.0.s8 %v2790
      %v2792 = vlaneseq
      %v2793 = vshrl.u32 %v2792, 7
      %v2794 = vsub.s32 %v2791, %v2793
      %v2795 = vrot.slane %v2773, %v2794
      %v2797 = vunpack.c.l.s4 1966171168
      %v2798 = vunpack.c.0.s8 %v2797
      %v2799 = vlaneseq
      %v2800 = vshrl.u32 %v2799, 7
      %v2801 = vsub.s32 %v2798, %v2800
      %v2802 = vrot.slane %v2774, %v2801
      %v2803 = vcombine.high %v2781, %v2781
      %v2804 = vcombine.high %v2788, %v2788
      %v2805 = vcombine.high %v2795, %v2795
      %v2806 = vcombine.high %v2802, %v2802
      %v2807 = vlaneseq
      %v2808 = vshrl.u32 %v2807, 7
      %v2809 = vsub.s32 0, %v2808
      %v2810 = vrot.slane %v2732, %v2809
      %v2811 = vlaneseq
      %v2812 = vshrl.u32 %v2811, 7
      %v2813 = vsub.s32 0, %v2812
      %v2814 = vrot.slane %v2746, %v2813
      %v2815 = vlaneseq
      %v2816 = vshrl.u32 %v2815, 7
      %v2817 = vsub.s32 0, %v2816
      %v2818 = vrot.slane %v2754, %v2817
      %v2819 = vlaneseq
      %v2820 = vshrl.u32 %v2819, 7
      %v2821 = vsub.s32 0, %v2820
      %v2822 = vrot.slane %v2756, %v2821
      %v2823 = vlaneseq
      %v2824 = vshrl.u32 %v2823, 7
      %v2825 = vsub.s32 0, %v2824
      %v2826 = vrot.slane %v2739, %v2825
      %v2827 = vlaneseq
      %v2828 = vshrl.u32 %v2827, 7
      %v2829 = vsub.s32 0, %v2828
      %v2830 = vrot.slane %v2753, %v2829
      %v2831 = vlaneseq
      %v2832 = vshrl.u32 %v2831, 7
      %v2833 = vsub.s32 0, %v2832
      %v2834 = vrot.slane %v2755, %v2833
      %v2835 = vlaneseq
      %v2836 = vshrl.u32 %v2835, 7
      %v2837 = vsub.s32 0, %v2836
      %v2838 = vrot.slane %v2757, %v2837
      %v2839 = vlaneseq
      %v2840 = vshrl.u32 %v2839, 7
      %v2841 = vsub.s32 0, %v2840
      %v2842 = vrot.slane %v2781, %v2841
      %v2843 = vlaneseq
      %v2844 = vshrl.u32 %v2843, 7
      %v2845 = vsub.s32 0, %v2844
      %v2846 = vrot.slane %v2795, %v2845
      %v2847 = vlaneseq
      %v2848 = vshrl.u32 %v2847, 7
      %v2849 = vsub.s32 0, %v2848
      %v2850 = vrot.slane %v2803, %v2849
      %v2851 = vlaneseq
      %v2852 = vshrl.u32 %v2851, 7
      %v2853 = vsub.s32 0, %v2852
      %v2854 = vrot.slane %v2805, %v2853
      %v2855 = vlaneseq
      %v2856 = vshrl.u32 %v2855, 7
      %v2857 = vsub.s32 0, %v2856
      %v2858 = vrot.slane %v2788, %v2857
      %v2859 = vlaneseq
      %v2860 = vshrl.u32 %v2859, 7
      %v2861 = vsub.s32 0, %v2860
      %v2862 = vrot.slane %v2802, %v2861
      %v2863 = vlaneseq
      %v2864 = vshrl.u32 %v2863, 7
      %v2865 = vsub.s32 0, %v2864
      %v2866 = vrot.slane %v2804, %v2865
      %v2867 = vlaneseq
      %v2868 = vshrl.u32 %v2867, 7
      %v2869 = vsub.s32 0, %v2868
      %v2870 = vrot.slane %v2806, %v2869
      %v2887 = vmul.f32 %v1940, %v2810
      %v2888 = vmul.f32 %v1941, %v2810
      %v2889 = vmul.f32 %v1942, %v2814
      %v2890 = vmul.f32 %v1943, %v2814
      %v2891 = vmul.f32 %v1944, %v2818
      %v2892 = vmul.f32 %v1945, %v2818
      %v2893 = vmul.f32 %v1946, %v2822
      %v2894 = vmul.f32 %v1947, %v2822
      %v2895 = vmul.f32 %v1948, %v2826
      %v2896 = vmul.f32 %v1949, %v2826
      %v2897 = vmul.f32 %v1950, %v2830
      %v2898 = vmul.f32 %v1951, %v2830
      %v2899 = vmul.f32 %v1952, %v2834
      %v2900 = vmul.f32 %v1953, %v2834
      %v2901 = vmul.f32 %v1954, %v2838
      %v2902 = vmul.f32 %v1955, %v2838
      %v2903 = vmul.f32 %v1956, %v2842
      %v2904 = vmul.f32 %v1957, %v2842
      %v2905 = vmul.f32 %v1958, %v2846
      %v2906 = vmul.f32 %v1959, %v2846
      %v2907 = vmul.f32 %v1960, %v2850
      %v2908 = vmul.f32 %v1961, %v2850
      %v2909 = vmul.f32 %v1962, %v2854
      %v2910 = vmul.f32 %v1963, %v2854
      %v2911 = vmul.f32 %v1964, %v2858
      %v2912 = vmul.f32 %v1965, %v2858
      %v2913 = vmul.f32 %v1966, %v2862
      %v2914 = vmul.f32 %v1967, %v2862
      %v2915 = vmul.f32 %v1968, %v2866
      %v2916 = vmul.f32 %v1969, %v2866
      %v2917 = vmul.f32 %v1970, %v2870
      %v2918 = vmul.f32 %v1971, %v2870
      %v2919 = vsel %vm688, %v2887, 0.0
      %2920 = vadd.xlane.f32.xlu0 %v2919
      %v2921 = vpop.xlane.xlu0 %2920
      %v2922 = vsel %vm688, %v2888, 0.0
      %2923 = vadd.xlane.f32.xlu0 %v2922
      %v2924 = vpop.xlane.xlu0 %2923
      %v2925 = vsel %vm688, %v2889, 0.0
      %2926 = vadd.xlane.f32.xlu0 %v2925
      %v2927 = vpop.xlane.xlu0 %2926
      %v2928 = vsel %vm688, %v2890, 0.0
      %2929 = vadd.xlane.f32.xlu0 %v2928
      %v2930 = vpop.xlane.xlu0 %2929
      %v2931 = vsel %vm688, %v2891, 0.0
      %2932 = vadd.xlane.f32.xlu0 %v2931
      %v2933 = vpop.xlane.xlu0 %2932
      %v2934 = vsel %vm688, %v2892, 0.0
      %2935 = vadd.xlane.f32.xlu0 %v2934
      %v2936 = vpop.xlane.xlu0 %2935
      %v2937 = vsel %vm688, %v2893, 0.0
      %2938 = vadd.xlane.f32.xlu0 %v2937
      %v2939 = vpop.xlane.xlu0 %2938
      %v2940 = vsel %vm688, %v2894, 0.0
      %2941 = vadd.xlane.f32.xlu0 %v2940
      %v2942 = vpop.xlane.xlu0 %2941
      %v2943 = vsel %vm688, %v2895, 0.0
      %2944 = vadd.xlane.f32.xlu0 %v2943
      %v2945 = vpop.xlane.xlu0 %2944
      %v2946 = vsel %vm688, %v2896, 0.0
      %2947 = vadd.xlane.f32.xlu0 %v2946
      %v2948 = vpop.xlane.xlu0 %2947
      %v2949 = vsel %vm688, %v2897, 0.0
      %2950 = vadd.xlane.f32.xlu0 %v2949
      %v2951 = vpop.xlane.xlu0 %2950
      %v2952 = vsel %vm688, %v2898, 0.0
      %2953 = vadd.xlane.f32.xlu0 %v2952
      %v2954 = vpop.xlane.xlu0 %2953
      %v2955 = vsel %vm688, %v2899, 0.0
      %2956 = vadd.xlane.f32.xlu0 %v2955
      %v2957 = vpop.xlane.xlu0 %2956
      %v2958 = vsel %vm688, %v2900, 0.0
      %2959 = vadd.xlane.f32.xlu0 %v2958
      %v2960 = vpop.xlane.xlu0 %2959
      %v2961 = vsel %vm688, %v2901, 0.0
      %2962 = vadd.xlane.f32.xlu0 %v2961
      %v2963 = vpop.xlane.xlu0 %2962
      %v2964 = vsel %vm688, %v2902, 0.0
      %2965 = vadd.xlane.f32.xlu0 %v2964
      %v2966 = vpop.xlane.xlu0 %2965
      %v2967 = vsel %vm688, %v2903, 0.0
      %2968 = vadd.xlane.f32.xlu0 %v2967
      %v2969 = vpop.xlane.xlu0 %2968
      %v2970 = vsel %vm688, %v2904, 0.0
      %2971 = vadd.xlane.f32.xlu0 %v2970
      %v2972 = vpop.xlane.xlu0 %2971
      %v2973 = vsel %vm688, %v2905, 0.0
      %2974 = vadd.xlane.f32.xlu0 %v2973
      %v2975 = vpop.xlane.xlu0 %2974
      %v2976 = vsel %vm688, %v2906, 0.0
      %2977 = vadd.xlane.f32.xlu0 %v2976
      %v2978 = vpop.xlane.xlu0 %2977
      %v2979 = vsel %vm688, %v2907, 0.0
      %2980 = vadd.xlane.f32.xlu0 %v2979
      %v2981 = vpop.xlane.xlu0 %2980
      %v2982 = vsel %vm688, %v2908, 0.0
      %2983 = vadd.xlane.f32.xlu0 %v2982
      %v2984 = vpop.xlane.xlu0 %2983
      %v2985 = vsel %vm688, %v2909, 0.0
      %2986 = vadd.xlane.f32.xlu0 %v2985
      %v2987 = vpop.xlane.xlu0 %2986
      %v2988 = vsel %vm688, %v2910, 0.0
      %2989 = vadd.xlane.f32.xlu0 %v2988
      %v2990 = vpop.xlane.xlu0 %2989
      %v2991 = vsel %vm688, %v2911, 0.0
      %2992 = vadd.xlane.f32.xlu0 %v2991
      %v2993 = vpop.xlane.xlu0 %2992
      %v2994 = vsel %vm688, %v2912, 0.0
      %2995 = vadd.xlane.f32.xlu0 %v2994
      %v2996 = vpop.xlane.xlu0 %2995
      %v2997 = vsel %vm688, %v2913, 0.0
      %2998 = vadd.xlane.f32.xlu0 %v2997
      %v2999 = vpop.xlane.xlu0 %2998
      %v3000 = vsel %vm688, %v2914, 0.0
      %3001 = vadd.xlane.f32.xlu0 %v3000
      %v3002 = vpop.xlane.xlu0 %3001
      %v3003 = vsel %vm688, %v2915, 0.0
      %3004 = vadd.xlane.f32.xlu0 %v3003
      %v3005 = vpop.xlane.xlu0 %3004
      %v3006 = vsel %vm688, %v2916, 0.0
      %3007 = vadd.xlane.f32.xlu0 %v3006
      %v3008 = vpop.xlane.xlu0 %3007
      %v3009 = vsel %vm688, %v2917, 0.0
      %3010 = vadd.xlane.f32.xlu0 %v3009
      %v3011 = vpop.xlane.xlu0 %3010
      %v3012 = vsel %vm688, %v2918, 0.0
      %3013 = vadd.xlane.f32.xlu0 %v3012
      %v3014 = vpop.xlane.xlu0 %3013
      %v3015 = vsel %vm1938, %v2921, -1e+30
      %v3016 = vsel %vm1939, %v2924, -1e+30
      %v3017 = vsel %vm1938, %v2927, -1e+30
      %v3018 = vsel %vm1939, %v2930, -1e+30
      %v3019 = vsel %vm1938, %v2933, -1e+30
      %v3020 = vsel %vm1939, %v2936, -1e+30
      %v3021 = vsel %vm1938, %v2939, -1e+30
      %v3022 = vsel %vm1939, %v2942, -1e+30
      %v3023 = vsel %vm1938, %v2945, -1e+30
      %v3024 = vsel %vm1939, %v2948, -1e+30
      %v3025 = vsel %vm1938, %v2951, -1e+30
      %v3026 = vsel %vm1939, %v2954, -1e+30
      %v3027 = vsel %vm1938, %v2957, -1e+30
      %v3028 = vsel %vm1939, %v2960, -1e+30
      %v3029 = vsel %vm1938, %v2963, -1e+30
      %v3030 = vsel %vm1939, %v2966, -1e+30
      %v3031 = vsel %vm1938, %v2969, -1e+30
      %v3032 = vsel %vm1939, %v2972, -1e+30
      %v3033 = vsel %vm1938, %v2975, -1e+30
      %v3034 = vsel %vm1939, %v2978, -1e+30
      %v3035 = vsel %vm1938, %v2981, -1e+30
      %v3036 = vsel %vm1939, %v2984, -1e+30
      %v3037 = vsel %vm1938, %v2987, -1e+30
      %v3038 = vsel %vm1939, %v2990, -1e+30
      %v3039 = vsel %vm1938, %v2993, -1e+30
      %v3040 = vsel %vm1939, %v2996, -1e+30
      %v3041 = vsel %vm1938, %v2999, -1e+30
      %v3042 = vsel %vm1939, %v3002, -1e+30
      %v3043 = vsel %vm1938, %v3005, -1e+30
      %v3044 = vsel %vm1939, %v3008, -1e+30
      %v3045 = vsel %vm1938, %v3011, -1e+30
      %v3046 = vsel %vm1939, %v3014, -1e+30
      %v3047 = vrot.slane %v2661, 4
      %v3048 = vmax.f32 %v2661, %v3047
      %v3049 = vrot.slane %v3048, 2
      %v3050 = vmax.f32 %v3048, %v3049
      %v3051 = vrot.slane %v3050, 1
      %v3052 = vmax.f32 %v3050, %v3051
      %v3053 = vrot.slane %v2664, 4
      %v3054 = vmax.f32 %v2664, %v3053
      %v3055 = vrot.slane %v3054, 2
      %v3056 = vmax.f32 %v3054, %v3055
      %v3057 = vrot.slane %v3056, 1
      %v3058 = vmax.f32 %v3056, %v3057
      %v3059 = vrot.slane %v2667, 4
      %v3060 = vmax.f32 %v2667, %v3059
      %v3061 = vrot.slane %v3060, 2
      %v3062 = vmax.f32 %v3060, %v3061
      %v3063 = vrot.slane %v3062, 1
      %v3064 = vmax.f32 %v3062, %v3063
      %v3065 = vrot.slane %v2670, 4
      %v3066 = vmax.f32 %v2670, %v3065
      %v3067 = vrot.slane %v3066, 2
      %v3068 = vmax.f32 %v3066, %v3067
      %v3069 = vrot.slane %v3068, 1
      %v3070 = vmax.f32 %v3068, %v3069
      %v3071 = vrot.slane %v2673, 4
      %v3072 = vmax.f32 %v2673, %v3071
      %v3073 = vrot.slane %v3072, 2
      %v3074 = vmax.f32 %v3072, %v3073
      %v3075 = vrot.slane %v3074, 1
      %v3076 = vmax.f32 %v3074, %v3075
      %v3077 = vrot.slane %v2676, 4
      %v3078 = vmax.f32 %v2676, %v3077
      %v3079 = vrot.slane %v3078, 2
      %v3080 = vmax.f32 %v3078, %v3079
      %v3081 = vrot.slane %v3080, 1
      %v3082 = vmax.f32 %v3080, %v3081
      %v3083 = vrot.slane %v2679, 4
      %v3084 = vmax.f32 %v2679, %v3083
      %v3085 = vrot.slane %v3084, 2
      %v3086 = vmax.f32 %v3084, %v3085
      %v3087 = vrot.slane %v3086, 1
      %v3088 = vmax.f32 %v3086, %v3087
      %v3089 = vrot.slane %v2682, 4
      %v3090 = vmax.f32 %v2682, %v3089
      %v3091 = vrot.slane %v3090, 2
      %v3092 = vmax.f32 %v3090, %v3091
      %v3093 = vrot.slane %v3092, 1
      %v3094 = vmax.f32 %v3092, %v3093
      %v3095 = vrot.slane %v2685, 4
      %v3096 = vmax.f32 %v2685, %v3095
      %v3097 = vrot.slane %v3096, 2
      %v3098 = vmax.f32 %v3096, %v3097
      %v3099 = vrot.slane %v3098, 1
      %v3100 = vmax.f32 %v3098, %v3099
      %v3101 = vrot.slane %v2688, 4
      %v3102 = vmax.f32 %v2688, %v3101
      %v3103 = vrot.slane %v3102, 2
      %v3104 = vmax.f32 %v3102, %v3103
      %v3105 = vrot.slane %v3104, 1
      %v3106 = vmax.f32 %v3104, %v3105
      %v3107 = vrot.slane %v2691, 4
      %v3108 = vmax.f32 %v2691, %v3107
      %v3109 = vrot.slane %v3108, 2
      %v3110 = vmax.f32 %v3108, %v3109
      %v3111 = vrot.slane %v3110, 1
      %v3112 = vmax.f32 %v3110, %v3111
      %v3113 = vrot.slane %v2694, 4
      %v3114 = vmax.f32 %v2694, %v3113
      %v3115 = vrot.slane %v3114, 2
      %v3116 = vmax.f32 %v3114, %v3115
      %v3117 = vrot.slane %v3116, 1
      %v3118 = vmax.f32 %v3116, %v3117
      %v3119 = vrot.slane %v2697, 4
      %v3120 = vmax.f32 %v2697, %v3119
      %v3121 = vrot.slane %v3120, 2
      %v3122 = vmax.f32 %v3120, %v3121
      %v3123 = vrot.slane %v3122, 1
      %v3124 = vmax.f32 %v3122, %v3123
      %v3125 = vrot.slane %v2700, 4
      %v3126 = vmax.f32 %v2700, %v3125
      %v3127 = vrot.slane %v3126, 2
      %v3128 = vmax.f32 %v3126, %v3127
      %v3129 = vrot.slane %v3128, 1
      %v3130 = vmax.f32 %v3128, %v3129
      %v3131 = vrot.slane %v2703, 4
      %v3132 = vmax.f32 %v2703, %v3131
      %v3133 = vrot.slane %v3132, 2
      %v3134 = vmax.f32 %v3132, %v3133
      %v3135 = vrot.slane %v3134, 1
      %v3136 = vmax.f32 %v3134, %v3135
      %v3137 = vrot.slane %v2706, 4
      %v3138 = vmax.f32 %v2706, %v3137
      %v3139 = vrot.slane %v3138, 2
      %v3140 = vmax.f32 %v3138, %v3139
      %v3141 = vrot.slane %v3140, 1
      %v3142 = vmax.f32 %v3140, %v3141
      %v3143 = vsub.f32 %v2661, %v3052
      %v3144 = vsub.f32 %v2664, %v3058
      %v3145 = vsub.f32 %v2667, %v3064
      %v3146 = vsub.f32 %v2670, %v3070
      %v3147 = vsub.f32 %v2673, %v3076
      %v3148 = vsub.f32 %v2676, %v3082
      %v3149 = vsub.f32 %v2679, %v3088
      %v3150 = vsub.f32 %v2682, %v3094
      %v3151 = vsub.f32 %v2685, %v3100
      %v3152 = vsub.f32 %v2688, %v3106
      %v3153 = vsub.f32 %v2691, %v3112
      %v3154 = vsub.f32 %v2694, %v3118
      %v3155 = vsub.f32 %v2697, %v3124
      %v3156 = vsub.f32 %v2700, %v3130
      %v3157 = vsub.f32 %v2703, %v3136
      %v3158 = vsub.f32 %v2706, %v3142
      %v3159 = vmul.f32 %v3143, 1.442695
      %v3160 = vpow.pop %v3159
      %v3161 = vmul.f32 %v3144, 1.442695
      %v3162 = vpow.pop %v3161
      %v3163 = vmul.f32 %v3145, 1.442695
      %v3164 = vpow.pop %v3163
      %v3165 = vmul.f32 %v3146, 1.442695
      %v3166 = vpow.pop %v3165
      %v3167 = vmul.f32 %v3147, 1.442695
      %v3168 = vpow.pop %v3167
      %v3169 = vmul.f32 %v3148, 1.442695
      %v3170 = vpow.pop %v3169
      %v3171 = vmul.f32 %v3149, 1.442695
      %v3172 = vpow.pop %v3171
      %v3173 = vmul.f32 %v3150, 1.442695
      %v3174 = vpow.pop %v3173
      %v3175 = vmul.f32 %v3151, 1.442695
      %v3176 = vpow.pop %v3175
      %v3177 = vmul.f32 %v3152, 1.442695
      %v3178 = vpow.pop %v3177
      %v3179 = vmul.f32 %v3153, 1.442695
      %v3180 = vpow.pop %v3179
      %v3181 = vmul.f32 %v3154, 1.442695
      %v3182 = vpow.pop %v3181
      %v3183 = vmul.f32 %v3155, 1.442695
      %v3184 = vpow.pop %v3183
      %v3185 = vmul.f32 %v3156, 1.442695
      %v3186 = vpow.pop %v3185
      %v3187 = vmul.f32 %v3157, 1.442695
      %v3188 = vpow.pop %v3187
      %v3189 = vmul.f32 %v3158, 1.442695
      %v3190 = vpow.pop %v3189
      %v3191 = vrot.slane %v3160, 4
      %v3192 = vadd.f32 %v3160, %v3191
      %v3193 = vrot.slane %v3192, 2
      %v3194 = vadd.f32 %v3192, %v3193
      %v3195 = vrot.slane %v3194, 1
      %v3196 = vadd.f32 %v3194, %v3195
      %v3197 = vrot.slane %v3162, 4
      %v3198 = vadd.f32 %v3162, %v3197
      %v3199 = vrot.slane %v3198, 2
      %v3200 = vadd.f32 %v3198, %v3199
      %v3201 = vrot.slane %v3200, 1
      %v3202 = vadd.f32 %v3200, %v3201
      %v3203 = vrot.slane %v3164, 4
      %v3204 = vadd.f32 %v3164, %v3203
      %v3205 = vrot.slane %v3204, 2
      %v3206 = vadd.f32 %v3204, %v3205
      %v3207 = vrot.slane %v3206, 1
      %v3208 = vadd.f32 %v3206, %v3207
      %v3209 = vrot.slane %v3166, 4
      %v3210 = vadd.f32 %v3166, %v3209
      %v3211 = vrot.slane %v3210, 2
      %v3212 = vadd.f32 %v3210, %v3211
      %v3213 = vrot.slane %v3212, 1
      %v3214 = vadd.f32 %v3212, %v3213
      %v3215 = vrot.slane %v3168, 4
      %v3216 = vadd.f32 %v3168, %v3215
      %v3217 = vrot.slane %v3216, 2
      %v3218 = vadd.f32 %v3216, %v3217
      %v3219 = vrot.slane %v3218, 1
      %v3220 = vadd.f32 %v3218, %v3219
      %v3221 = vrot.slane %v3170, 4
      %v3222 = vadd.f32 %v3170, %v3221
      %v3223 = vrot.slane %v3222, 2
      %v3224 = vadd.f32 %v3222, %v3223
      %v3225 = vrot.slane %v3224, 1
      %v3226 = vadd.f32 %v3224, %v3225
      %v3227 = vrot.slane %v3172, 4
      %v3228 = vadd.f32 %v3172, %v3227
      %v3229 = vrot.slane %v3228, 2
      %v3230 = vadd.f32 %v3228, %v3229
      %v3231 = vrot.slane %v3230, 1
      %v3232 = vadd.f32 %v3230, %v3231
      %v3233 = vrot.slane %v3174, 4
      %v3234 = vadd.f32 %v3174, %v3233
      %v3235 = vrot.slane %v3234, 2
      %v3236 = vadd.f32 %v3234, %v3235
      %v3237 = vrot.slane %v3236, 1
      %v3238 = vadd.f32 %v3236, %v3237
      %v3239 = vrot.slane %v3176, 4
      %v3240 = vadd.f32 %v3176, %v3239
      %v3241 = vrot.slane %v3240, 2
      %v3242 = vadd.f32 %v3240, %v3241
      %v3243 = vrot.slane %v3242, 1
      %v3244 = vadd.f32 %v3242, %v3243
      %v3245 = vrot.slane %v3178, 4
      %v3246 = vadd.f32 %v3178, %v3245
      %v3247 = vrot.slane %v3246, 2
      %v3248 = vadd.f32 %v3246, %v3247
      %v3249 = vrot.slane %v3248, 1
      %v3250 = vadd.f32 %v3248, %v3249
      %v3251 = vrot.slane %v3180, 4
      %v3252 = vadd.f32 %v3180, %v3251
      %v3253 = vrot.slane %v3252, 2
      %v3254 = vadd.f32 %v3252, %v3253
      %v3255 = vrot.slane %v3254, 1
      %v3256 = vadd.f32 %v3254, %v3255
      %v3257 = vrot.slane %v3182, 4
      %v3258 = vadd.f32 %v3182, %v3257
      %v3259 = vrot.slane %v3258, 2
      %v3260 = vadd.f32 %v3258, %v3259
      %v3261 = vrot.slane %v3260, 1
      %v3262 = vadd.f32 %v3260, %v3261
      %v3263 = vrot.slane %v3184, 4
      %v3264 = vadd.f32 %v3184, %v3263
      %v3265 = vrot.slane %v3264, 2
      %v3266 = vadd.f32 %v3264, %v3265
      %v3267 = vrot.slane %v3266, 1
      %v3268 = vadd.f32 %v3266, %v3267
      %v3269 = vrot.slane %v3186, 4
      %v3270 = vadd.f32 %v3186, %v3269
      %v3271 = vrot.slane %v3270, 2
      %v3272 = vadd.f32 %v3270, %v3271
      %v3273 = vrot.slane %v3272, 1
      %v3274 = vadd.f32 %v3272, %v3273
      %v3275 = vrot.slane %v3188, 4
      %v3276 = vadd.f32 %v3188, %v3275
      %v3277 = vrot.slane %v3276, 2
      %v3278 = vadd.f32 %v3276, %v3277
      %v3279 = vrot.slane %v3278, 1
      %v3280 = vadd.f32 %v3278, %v3279
      %v3281 = vrot.slane %v3190, 4
      %v3282 = vadd.f32 %v3190, %v3281
      %v3283 = vrot.slane %v3282, 2
      %v3284 = vadd.f32 %v3282, %v3283
      %v3285 = vrot.slane %v3284, 1
      %v3286 = vadd.f32 %v3284, %v3285
      %v3287 = vrcp.pop %v3196
      %v3288 = vrcp.pop %v3202
      %v3289 = vrcp.pop %v3208
      %v3290 = vrcp.pop %v3214
      %v3291 = vrcp.pop %v3220
      %v3292 = vrcp.pop %v3226
      %v3293 = vrcp.pop %v3232
      %v3294 = vrcp.pop %v3238
      %v3295 = vrcp.pop %v3244
      %v3296 = vrcp.pop %v3250
      %v3297 = vrcp.pop %v3256
      %v3298 = vrcp.pop %v3262
      %v3299 = vrcp.pop %v3268
      %v3300 = vrcp.pop %v3274
      %v3301 = vrcp.pop %v3280
      %v3302 = vrcp.pop %v3286
      %v3303 = vmul.f32 %v3160, %v3287
      %v3304 = vmul.f32 %v3162, %v3288
      %v3305 = vmul.f32 %v3164, %v3289
      %v3306 = vmul.f32 %v3166, %v3290
      %v3307 = vmul.f32 %v3168, %v3291
      %v3308 = vmul.f32 %v3170, %v3292
      %v3309 = vmul.f32 %v3172, %v3293
      %v3310 = vmul.f32 %v3174, %v3294
      %v3311 = vmul.f32 %v3176, %v3295
      %v3312 = vmul.f32 %v3178, %v3296
      %v3313 = vmul.f32 %v3180, %v3297
      %v3314 = vmul.f32 %v3182, %v3298
      %v3315 = vmul.f32 %v3184, %v3299
      %v3316 = vmul.f32 %v3186, %v3300
      %v3317 = vmul.f32 %v3188, %v3301
      %v3318 = vmul.f32 %v3190, %v3302
      %v3319 = vmax.f32 %v3015, %v3016
      %v3320 = vrot.slane %v3319, 4
      %v3321 = vmax.f32 %v3319, %v3320
      %v3322 = vrot.slane %v3321, 2
      %v3323 = vmax.f32 %v3321, %v3322
      %v3324 = vrot.slane %v3323, 1
      %v3325 = vmax.f32 %v3323, %v3324
      %v3326 = vmax.f32 %v3017, %v3018
      %v3327 = vrot.slane %v3326, 4
      %v3328 = vmax.f32 %v3326, %v3327
      %v3329 = vrot.slane %v3328, 2
      %v3330 = vmax.f32 %v3328, %v3329
      %v3331 = vrot.slane %v3330, 1
      %v3332 = vmax.f32 %v3330, %v3331
      %v3333 = vmax.f32 %v3019, %v3020
      %v3334 = vrot.slane %v3333, 4
      %v3335 = vmax.f32 %v3333, %v3334
      %v3336 = vrot.slane %v3335, 2
      %v3337 = vmax.f32 %v3335, %v3336
      %v3338 = vrot.slane %v3337, 1
      %v3339 = vmax.f32 %v3337, %v3338
      %v3340 = vmax.f32 %v3021, %v3022
      %v3341 = vrot.slane %v3340, 4
      %v3342 = vmax.f32 %v3340, %v3341
      %v3343 = vrot.slane %v3342, 2
      %v3344 = vmax.f32 %v3342, %v3343
      %v3345 = vrot.slane %v3344, 1
      %v3346 = vmax.f32 %v3344, %v3345
      %v3347 = vmax.f32 %v3023, %v3024
      %v3348 = vrot.slane %v3347, 4
      %v3349 = vmax.f32 %v3347, %v3348
      %v3350 = vrot.slane %v3349, 2
      %v3351 = vmax.f32 %v3349, %v3350
      %v3352 = vrot.slane %v3351, 1
      %v3353 = vmax.f32 %v3351, %v3352
      %v3354 = vmax.f32 %v3025, %v3026
      %v3355 = vrot.slane %v3354, 4
      %v3356 = vmax.f32 %v3354, %v3355
      %v3357 = vrot.slane %v3356, 2
      %v3358 = vmax.f32 %v3356, %v3357
      %v3359 = vrot.slane %v3358, 1
      %v3360 = vmax.f32 %v3358, %v3359
      %v3361 = vmax.f32 %v3027, %v3028
      %v3362 = vrot.slane %v3361, 4
      %v3363 = vmax.f32 %v3361, %v3362
      %v3364 = vrot.slane %v3363, 2
      %v3365 = vmax.f32 %v3363, %v3364
      %v3366 = vrot.slane %v3365, 1
      %v3367 = vmax.f32 %v3365, %v3366
      %v3368 = vmax.f32 %v3029, %v3030
      %v3369 = vrot.slane %v3368, 4
      %v3370 = vmax.f32 %v3368, %v3369
      %v3371 = vrot.slane %v3370, 2
      %v3372 = vmax.f32 %v3370, %v3371
      %v3373 = vrot.slane %v3372, 1
      %v3374 = vmax.f32 %v3372, %v3373
      %v3375 = vmax.f32 %v3031, %v3032
      %v3376 = vrot.slane %v3375, 4
      %v3377 = vmax.f32 %v3375, %v3376
      %v3378 = vrot.slane %v3377, 2
      %v3379 = vmax.f32 %v3377, %v3378
      %v3380 = vrot.slane %v3379, 1
      %v3381 = vmax.f32 %v3379, %v3380
      %v3382 = vmax.f32 %v3033, %v3034
      %v3383 = vrot.slane %v3382, 4
      %v3384 = vmax.f32 %v3382, %v3383
      %v3385 = vrot.slane %v3384, 2
      %v3386 = vmax.f32 %v3384, %v3385
      %v3387 = vrot.slane %v3386, 1
      %v3388 = vmax.f32 %v3386, %v3387
      %v3389 = vmax.f32 %v3035, %v3036
      %v3390 = vrot.slane %v3389, 4
      %v3391 = vmax.f32 %v3389, %v3390
      %v3392 = vrot.slane %v3391, 2
      %v3393 = vmax.f32 %v3391, %v3392
      %v3394 = vrot.slane %v3393, 1
      %v3395 = vmax.f32 %v3393, %v3394
      %v3396 = vmax.f32 %v3037, %v3038
      %v3397 = vrot.slane %v3396, 4
      %v3398 = vmax.f32 %v3396, %v3397
      %v3399 = vrot.slane %v3398, 2
      %v3400 = vmax.f32 %v3398, %v3399
      %v3401 = vrot.slane %v3400, 1
      %v3402 = vmax.f32 %v3400, %v3401
      %v3403 = vmax.f32 %v3039, %v3040
      %v3404 = vrot.slane %v3403, 4
      %v3405 = vmax.f32 %v3403, %v3404
      %v3406 = vrot.slane %v3405, 2
      %v3407 = vmax.f32 %v3405, %v3406
      %v3408 = vrot.slane %v3407, 1
      %v3409 = vmax.f32 %v3407, %v3408
      %v3410 = vmax.f32 %v3041, %v3042
      %v3411 = vrot.slane %v3410, 4
      %v3412 = vmax.f32 %v3410, %v3411
      %v3413 = vrot.slane %v3412, 2
      %v3414 = vmax.f32 %v3412, %v3413
      %v3415 = vrot.slane %v3414, 1
      %v3416 = vmax.f32 %v3414, %v3415
      %v3417 = vmax.f32 %v3043, %v3044
      %v3418 = vrot.slane %v3417, 4
      %v3419 = vmax.f32 %v3417, %v3418
      %v3420 = vrot.slane %v3419, 2
      %v3421 = vmax.f32 %v3419, %v3420
      %v3422 = vrot.slane %v3421, 1
      %v3423 = vmax.f32 %v3421, %v3422
      %v3424 = vmax.f32 %v3045, %v3046
      %v3425 = vrot.slane %v3424, 4
      %v3426 = vmax.f32 %v3424, %v3425
      %v3427 = vrot.slane %v3426, 2
      %v3428 = vmax.f32 %v3426, %v3427
      %v3429 = vrot.slane %v3428, 1
      %v3430 = vmax.f32 %v3428, %v3429
      %v3431 = vsub.f32 %v3015, %v3325
      %v3432 = vsub.f32 %v3016, %v3325
      %v3433 = vsub.f32 %v3017, %v3332
      %v3434 = vsub.f32 %v3018, %v3332
      %v3435 = vsub.f32 %v3019, %v3339
      %v3436 = vsub.f32 %v3020, %v3339
      %v3437 = vsub.f32 %v3021, %v3346
      %v3438 = vsub.f32 %v3022, %v3346
      %v3439 = vsub.f32 %v3023, %v3353
      %v3440 = vsub.f32 %v3024, %v3353
      %v3441 = vsub.f32 %v3025, %v3360
      %v3442 = vsub.f32 %v3026, %v3360
      %v3443 = vsub.f32 %v3027, %v3367
      %v3444 = vsub.f32 %v3028, %v3367
      %v3445 = vsub.f32 %v3029, %v3374
      %v3446 = vsub.f32 %v3030, %v3374
      %v3447 = vsub.f32 %v3031, %v3381
      %v3448 = vsub.f32 %v3032, %v3381
      %v3449 = vsub.f32 %v3033, %v3388
      %v3450 = vsub.f32 %v3034, %v3388
      %v3451 = vsub.f32 %v3035, %v3395
      %v3452 = vsub.f32 %v3036, %v3395
      %v3453 = vsub.f32 %v3037, %v3402
      %v3454 = vsub.f32 %v3038, %v3402
      %v3455 = vsub.f32 %v3039, %v3409
      %v3456 = vsub.f32 %v3040, %v3409
      %v3457 = vsub.f32 %v3041, %v3416
      %v3458 = vsub.f32 %v3042, %v3416
      %v3459 = vsub.f32 %v3043, %v3423
      %v3460 = vsub.f32 %v3044, %v3423
      %v3461 = vsub.f32 %v3045, %v3430
      %v3462 = vsub.f32 %v3046, %v3430
      %v3463 = vmul.f32 %v3431, 1.442695
      %v3464 = vpow.pop %v3463
      %v3465 = vmul.f32 %v3432, 1.442695
      %v3466 = vpow.pop %v3465
      %v3467 = vmul.f32 %v3433, 1.442695
      %v3468 = vpow.pop %v3467
      %v3469 = vmul.f32 %v3434, 1.442695
      %v3470 = vpow.pop %v3469
      %v3471 = vmul.f32 %v3435, 1.442695
      %v3472 = vpow.pop %v3471
      %v3473 = vmul.f32 %v3436, 1.442695
      %v3474 = vpow.pop %v3473
      %v3475 = vmul.f32 %v3437, 1.442695
      %v3476 = vpow.pop %v3475
      %v3477 = vmul.f32 %v3438, 1.442695
      %v3478 = vpow.pop %v3477
      %v3479 = vmul.f32 %v3439, 1.442695
      %v3480 = vpow.pop %v3479
      %v3481 = vmul.f32 %v3440, 1.442695
      %v3482 = vpow.pop %v3481
      %v3483 = vmul.f32 %v3441, 1.442695
      %v3484 = vpow.pop %v3483
      %v3485 = vmul.f32 %v3442, 1.442695
      %v3486 = vpow.pop %v3485
      %v3487 = vmul.f32 %v3443, 1.442695
      %v3488 = vpow.pop %v3487
      %v3489 = vmul.f32 %v3444, 1.442695
      %v3490 = vpow.pop %v3489
      %v3491 = vmul.f32 %v3445, 1.442695
      %v3492 = vpow.pop %v3491
      %v3493 = vmul.f32 %v3446, 1.442695
      %v3494 = vpow.pop %v3493
      %v3495 = vmul.f32 %v3447, 1.442695
      %v3496 = vpow.pop %v3495
      %v3497 = vmul.f32 %v3448, 1.442695
      %v3498 = vpow.pop %v3497
      %v3499 = vmul.f32 %v3449, 1.442695
      %v3500 = vpow.pop %v3499
      %v3501 = vmul.f32 %v3450, 1.442695
      %v3502 = vpow.pop %v3501
      %v3503 = vmul.f32 %v3451, 1.442695
      %v3504 = vpow.pop %v3503
      %v3505 = vmul.f32 %v3452, 1.442695
      %v3506 = vpow.pop %v3505
      %v3507 = vmul.f32 %v3453, 1.442695
      %v3508 = vpow.pop %v3507
      %v3509 = vmul.f32 %v3454, 1.442695
      %v3510 = vpow.pop %v3509
      %v3511 = vmul.f32 %v3455, 1.442695
      %v3512 = vpow.pop %v3511
      %v3513 = vmul.f32 %v3456, 1.442695
      %v3514 = vpow.pop %v3513
      %v3515 = vmul.f32 %v3457, 1.442695
      %v3516 = vpow.pop %v3515
      %v3517 = vmul.f32 %v3458, 1.442695
      %v3518 = vpow.pop %v3517
      %v3519 = vmul.f32 %v3459, 1.442695
      %v3520 = vpow.pop %v3519
      %v3521 = vmul.f32 %v3460, 1.442695
      %v3522 = vpow.pop %v3521
      %v3523 = vmul.f32 %v3461, 1.442695
      %v3524 = vpow.pop %v3523
      %v3525 = vmul.f32 %v3462, 1.442695
      %v3526 = vpow.pop %v3525
      %v3527 = vadd.f32 %v3464, %v3466
      %v3528 = vrot.slane %v3527, 4
      %v3529 = vadd.f32 %v3527, %v3528
      %v3530 = vrot.slane %v3529, 2
      %v3531 = vadd.f32 %v3529, %v3530
      %v3532 = vrot.slane %v3531, 1
      %v3533 = vadd.f32 %v3531, %v3532
      %v3534 = vadd.f32 %v3468, %v3470
      %v3535 = vrot.slane %v3534, 4
      %v3536 = vadd.f32 %v3534, %v3535
      %v3537 = vrot.slane %v3536, 2
      %v3538 = vadd.f32 %v3536, %v3537
      %v3539 = vrot.slane %v3538, 1
      %v3540 = vadd.f32 %v3538, %v3539
      %v3541 = vadd.f32 %v3472, %v3474
      %v3542 = vrot.slane %v3541, 4
      %v3543 = vadd.f32 %v3541, %v3542
      %v3544 = vrot.slane %v3543, 2
      %v3545 = vadd.f32 %v3543, %v3544
      %v3546 = vrot.slane %v3545, 1
      %v3547 = vadd.f32 %v3545, %v3546
      %v3548 = vadd.f32 %v3476, %v3478
      %v3549 = vrot.slane %v3548, 4
      %v3550 = vadd.f32 %v3548, %v3549
      %v3551 = vrot.slane %v3550, 2
      %v3552 = vadd.f32 %v3550, %v3551
      %v3553 = vrot.slane %v3552, 1
      %v3554 = vadd.f32 %v3552, %v3553
      %v3555 = vadd.f32 %v3480, %v3482
      %v3556 = vrot.slane %v3555, 4
      %v3557 = vadd.f32 %v3555, %v3556
      %v3558 = vrot.slane %v3557, 2
      %v3559 = vadd.f32 %v3557, %v3558
      %v3560 = vrot.slane %v3559, 1
      %v3561 = vadd.f32 %v3559, %v3560
      %v3562 = vadd.f32 %v3484, %v3486
      %v3563 = vrot.slane %v3562, 4
      %v3564 = vadd.f32 %v3562, %v3563
      %v3565 = vrot.slane %v3564, 2
      %v3566 = vadd.f32 %v3564, %v3565
      %v3567 = vrot.slane %v3566, 1
      %v3568 = vadd.f32 %v3566, %v3567
      %v3569 = vadd.f32 %v3488, %v3490
      %v3570 = vrot.slane %v3569, 4
      %v3571 = vadd.f32 %v3569, %v3570
      %v3572 = vrot.slane %v3571, 2
      %v3573 = vadd.f32 %v3571, %v3572
      %v3574 = vrot.slane %v3573, 1
      %v3575 = vadd.f32 %v3573, %v3574
      %v3576 = vadd.f32 %v3492, %v3494
      %v3577 = vrot.slane %v3576, 4
      %v3578 = vadd.f32 %v3576, %v3577
      %v3579 = vrot.slane %v3578, 2
      %v3580 = vadd.f32 %v3578, %v3579
      %v3581 = vrot.slane %v3580, 1
      %v3582 = vadd.f32 %v3580, %v3581
      %v3583 = vadd.f32 %v3496, %v3498
      %v3584 = vrot.slane %v3583, 4
      %v3585 = vadd.f32 %v3583, %v3584
      %v3586 = vrot.slane %v3585, 2
      %v3587 = vadd.f32 %v3585, %v3586
      %v3588 = vrot.slane %v3587, 1
      %v3589 = vadd.f32 %v3587, %v3588
      %v3590 = vadd.f32 %v3500, %v3502
      %v3591 = vrot.slane %v3590, 4
      %v3592 = vadd.f32 %v3590, %v3591
      %v3593 = vrot.slane %v3592, 2
      %v3594 = vadd.f32 %v3592, %v3593
      %v3595 = vrot.slane %v3594, 1
      %v3596 = vadd.f32 %v3594, %v3595
      %v3597 = vadd.f32 %v3504, %v3506
      %v3598 = vrot.slane %v3597, 4
      %v3599 = vadd.f32 %v3597, %v3598
      %v3600 = vrot.slane %v3599, 2
      %v3601 = vadd.f32 %v3599, %v3600
      %v3602 = vrot.slane %v3601, 1
      %v3603 = vadd.f32 %v3601, %v3602
      %v3604 = vadd.f32 %v3508, %v3510
      %v3605 = vrot.slane %v3604, 4
      %v3606 = vadd.f32 %v3604, %v3605
      %v3607 = vrot.slane %v3606, 2
      %v3608 = vadd.f32 %v3606, %v3607
      %v3609 = vrot.slane %v3608, 1
      %v3610 = vadd.f32 %v3608, %v3609
      %v3611 = vadd.f32 %v3512, %v3514
      %v3612 = vrot.slane %v3611, 4
      %v3613 = vadd.f32 %v3611, %v3612
      %v3614 = vrot.slane %v3613, 2
      %v3615 = vadd.f32 %v3613, %v3614
      %v3616 = vrot.slane %v3615, 1
      %v3617 = vadd.f32 %v3615, %v3616
      %v3618 = vadd.f32 %v3516, %v3518
      %v3619 = vrot.slane %v3618, 4
      %v3620 = vadd.f32 %v3618, %v3619
      %v3621 = vrot.slane %v3620, 2
      %v3622 = vadd.f32 %v3620, %v3621
      %v3623 = vrot.slane %v3622, 1
      %v3624 = vadd.f32 %v3622, %v3623
      %v3625 = vadd.f32 %v3520, %v3522
      %v3626 = vrot.slane %v3625, 4
      %v3627 = vadd.f32 %v3625, %v3626
      %v3628 = vrot.slane %v3627, 2
      %v3629 = vadd.f32 %v3627, %v3628
      %v3630 = vrot.slane %v3629, 1
      %v3631 = vadd.f32 %v3629, %v3630
      %v3632 = vadd.f32 %v3524, %v3526
      %v3633 = vrot.slane %v3632, 4
      %v3634 = vadd.f32 %v3632, %v3633
      %v3635 = vrot.slane %v3634, 2
      %v3636 = vadd.f32 %v3634, %v3635
      %v3637 = vrot.slane %v3636, 1
      %v3638 = vadd.f32 %v3636, %v3637
      %v3639 = vrcp.pop %v3533
      %v3640 = vrcp.pop %v3540
      %v3641 = vrcp.pop %v3547
      %v3642 = vrcp.pop %v3554
      %v3643 = vrcp.pop %v3561
      %v3644 = vrcp.pop %v3568
      %v3645 = vrcp.pop %v3575
      %v3646 = vrcp.pop %v3582
      %v3647 = vrcp.pop %v3589
      %v3648 = vrcp.pop %v3596
      %v3649 = vrcp.pop %v3603
      %v3650 = vrcp.pop %v3610
      %v3651 = vrcp.pop %v3617
      %v3652 = vrcp.pop %v3624
      %v3653 = vrcp.pop %v3631
      %v3654 = vrcp.pop %v3638
      %v3655 = vmul.f32 %v3464, %v3639
      %v3656 = vmul.f32 %v3466, %v3639
      %v3657 = vmul.f32 %v3468, %v3640
      %v3658 = vmul.f32 %v3470, %v3640
      %v3659 = vmul.f32 %v3472, %v3641
      %v3660 = vmul.f32 %v3474, %v3641
      %v3661 = vmul.f32 %v3476, %v3642
      %v3662 = vmul.f32 %v3478, %v3642
      %v3663 = vmul.f32 %v3480, %v3643
      %v3664 = vmul.f32 %v3482, %v3643
      %v3665 = vmul.f32 %v3484, %v3644
      %v3666 = vmul.f32 %v3486, %v3644
      %v3667 = vmul.f32 %v3488, %v3645
      %v3668 = vmul.f32 %v3490, %v3645
      %v3669 = vmul.f32 %v3492, %v3646
      %v3670 = vmul.f32 %v3494, %v3646
      %v3671 = vmul.f32 %v3496, %v3647
      %v3672 = vmul.f32 %v3498, %v3647
      %v3673 = vmul.f32 %v3500, %v3648
      %v3674 = vmul.f32 %v3502, %v3648
      %v3675 = vmul.f32 %v3504, %v3649
      %v3676 = vmul.f32 %v3506, %v3649
      %v3677 = vmul.f32 %v3508, %v3650
      %v3678 = vmul.f32 %v3510, %v3650
      %v3679 = vmul.f32 %v3512, %v3651
      %v3680 = vmul.f32 %v3514, %v3651
      %v3681 = vmul.f32 %v3516, %v3652
      %v3682 = vmul.f32 %v3518, %v3652
      %v3683 = vmul.f32 %v3520, %v3653
      %v3684 = vmul.f32 %v3522, %v3653
      %v3685 = vmul.f32 %v3524, %v3654
      %v3686 = vmul.f32 %v3526, %v3654
      %v3687 = vmul.f32 %v3303, %v436
      %v3688 = vmul.f32 %v3304, %v437
      %v3689 = vmul.f32 %v3305, %v438
      %v3690 = vmul.f32 %v3306, %v439
      %v3691 = vmul.f32 %v3307, %v440
      %v3692 = vmul.f32 %v3308, %v441
      %v3693 = vmul.f32 %v3309, %v442
      %v3694 = vmul.f32 %v3310, %v443
      %v3695 = vmul.f32 %v3311, %v444
      %v3696 = vmul.f32 %v3312, %v445
      %v3697 = vmul.f32 %v3313, %v446
      %v3698 = vmul.f32 %v3314, %v447
      %v3699 = vmul.f32 %v3315, %v448
      %v3700 = vmul.f32 %v3316, %v449
      %v3701 = vmul.f32 %v3317, %v450
      %v3702 = vmul.f32 %v3318, %v451
      %v3703 = vsel %vm488, %v3687, 0.0
      %v3704 = vrot.slane %v3703, 4
      %v3705 = vadd.f32 %v3703, %v3704
      %v3706 = vrot.slane %v3705, 2
      %v3707 = vadd.f32 %v3705, %v3706
      %v3708 = vrot.slane %v3707, 1
      %v3709 = vadd.f32 %v3707, %v3708
      %v3710 = vsel %vm488, %v3688, 0.0
      %v3711 = vrot.slane %v3710, 4
      %v3712 = vadd.f32 %v3710, %v3711
      %v3713 = vrot.slane %v3712, 2
      %v3714 = vadd.f32 %v3712, %v3713
      %v3715 = vrot.slane %v3714, 1
      %v3716 = vadd.f32 %v3714, %v3715
      %v3717 = vsel %vm488, %v3689, 0.0
      %v3718 = vrot.slane %v3717, 4
      %v3719 = vadd.f32 %v3717, %v3718
      %v3720 = vrot.slane %v3719, 2
      %v3721 = vadd.f32 %v3719, %v3720
      %v3722 = vrot.slane %v3721, 1
      %v3723 = vadd.f32 %v3721, %v3722
      %v3724 = vsel %vm488, %v3690, 0.0
      %v3725 = vrot.slane %v3724, 4
      %v3726 = vadd.f32 %v3724, %v3725
      %v3727 = vrot.slane %v3726, 2
      %v3728 = vadd.f32 %v3726, %v3727
      %v3729 = vrot.slane %v3728, 1
      %v3730 = vadd.f32 %v3728, %v3729
      %v3731 = vsel %vm488, %v3691, 0.0
      %v3732 = vrot.slane %v3731, 4
      %v3733 = vadd.f32 %v3731, %v3732
      %v3734 = vrot.slane %v3733, 2
      %v3735 = vadd.f32 %v3733, %v3734
      %v3736 = vrot.slane %v3735, 1
      %v3737 = vadd.f32 %v3735, %v3736
      %v3738 = vsel %vm488, %v3692, 0.0
      %v3739 = vrot.slane %v3738, 4
      %v3740 = vadd.f32 %v3738, %v3739
      %v3741 = vrot.slane %v3740, 2
      %v3742 = vadd.f32 %v3740, %v3741
      %v3743 = vrot.slane %v3742, 1
      %v3744 = vadd.f32 %v3742, %v3743
      %v3745 = vsel %vm488, %v3693, 0.0
      %v3746 = vrot.slane %v3745, 4
      %v3747 = vadd.f32 %v3745, %v3746
      %v3748 = vrot.slane %v3747, 2
      %v3749 = vadd.f32 %v3747, %v3748
      %v3750 = vrot.slane %v3749, 1
      %v3751 = vadd.f32 %v3749, %v3750
      %v3752 = vsel %vm488, %v3694, 0.0
      %v3753 = vrot.slane %v3752, 4
      %v3754 = vadd.f32 %v3752, %v3753
      %v3755 = vrot.slane %v3754, 2
      %v3756 = vadd.f32 %v3754, %v3755
      %v3757 = vrot.slane %v3756, 1
      %v3758 = vadd.f32 %v3756, %v3757
      %v3759 = vsel %vm488, %v3695, 0.0
      %v3760 = vrot.slane %v3759, 4
      %v3761 = vadd.f32 %v3759, %v3760
      %v3762 = vrot.slane %v3761, 2
      %v3763 = vadd.f32 %v3761, %v3762
      %v3764 = vrot.slane %v3763, 1
      %v3765 = vadd.f32 %v3763, %v3764
      %v3766 = vsel %vm488, %v3696, 0.0
      %v3767 = vrot.slane %v3766, 4
      %v3768 = vadd.f32 %v3766, %v3767
      %v3769 = vrot.slane %v3768, 2
      %v3770 = vadd.f32 %v3768, %v3769
      %v3771 = vrot.slane %v3770, 1
      %v3772 = vadd.f32 %v3770, %v3771
      %v3773 = vsel %vm488, %v3697, 0.0
      %v3774 = vrot.slane %v3773, 4
      %v3775 = vadd.f32 %v3773, %v3774
      %v3776 = vrot.slane %v3775, 2
      %v3777 = vadd.f32 %v3775, %v3776
      %v3778 = vrot.slane %v3777, 1
      %v3779 = vadd.f32 %v3777, %v3778
      %v3780 = vsel %vm488, %v3698, 0.0
      %v3781 = vrot.slane %v3780, 4
      %v3782 = vadd.f32 %v3780, %v3781
      %v3783 = vrot.slane %v3782, 2
      %v3784 = vadd.f32 %v3782, %v3783
      %v3785 = vrot.slane %v3784, 1
      %v3786 = vadd.f32 %v3784, %v3785
      %v3787 = vsel %vm488, %v3699, 0.0
      %v3788 = vrot.slane %v3787, 4
      %v3789 = vadd.f32 %v3787, %v3788
      %v3790 = vrot.slane %v3789, 2
      %v3791 = vadd.f32 %v3789, %v3790
      %v3792 = vrot.slane %v3791, 1
      %v3793 = vadd.f32 %v3791, %v3792
      %v3794 = vsel %vm488, %v3700, 0.0
      %v3795 = vrot.slane %v3794, 4
      %v3796 = vadd.f32 %v3794, %v3795
      %v3797 = vrot.slane %v3796, 2
      %v3798 = vadd.f32 %v3796, %v3797
      %v3799 = vrot.slane %v3798, 1
      %v3800 = vadd.f32 %v3798, %v3799
      %v3801 = vsel %vm488, %v3701, 0.0
      %v3802 = vrot.slane %v3801, 4
      %v3803 = vadd.f32 %v3801, %v3802
      %v3804 = vrot.slane %v3803, 2
      %v3805 = vadd.f32 %v3803, %v3804
      %v3806 = vrot.slane %v3805, 1
      %v3807 = vadd.f32 %v3805, %v3806
      %v3808 = vsel %vm488, %v3702, 0.0
      %v3809 = vrot.slane %v3808, 4
      %v3810 = vadd.f32 %v3808, %v3809
      %v3811 = vrot.slane %v3810, 2
      %v3812 = vadd.f32 %v3810, %v3811
      %v3813 = vrot.slane %v3812, 1
      %v3814 = vadd.f32 %v3812, %v3813
      %v3815 = vmul.f32 %v3655, %v452
      %v3816 = vmul.f32 %v3656, %v453
      %v3817 = vmul.f32 %v3657, %v454
      %v3818 = vmul.f32 %v3658, %v455
      %v3819 = vmul.f32 %v3659, %v456
      %v3820 = vmul.f32 %v3660, %v457
      %v3821 = vmul.f32 %v3661, %v458
      %v3822 = vmul.f32 %v3662, %v459
      %v3823 = vmul.f32 %v3663, %v460
      %v3824 = vmul.f32 %v3664, %v461
      %v3825 = vmul.f32 %v3665, %v462
      %v3826 = vmul.f32 %v3666, %v463
      %v3827 = vmul.f32 %v3667, %v464
      %v3828 = vmul.f32 %v3668, %v465
      %v3829 = vmul.f32 %v3669, %v466
      %v3830 = vmul.f32 %v3670, %v467
      %v3831 = vmul.f32 %v3671, %v468
      %v3832 = vmul.f32 %v3672, %v469
      %v3833 = vmul.f32 %v3673, %v470
      %v3834 = vmul.f32 %v3674, %v471
      %v3835 = vmul.f32 %v3675, %v472
      %v3836 = vmul.f32 %v3676, %v473
      %v3837 = vmul.f32 %v3677, %v474
      %v3838 = vmul.f32 %v3678, %v475
      %v3839 = vmul.f32 %v3679, %v476
      %v3840 = vmul.f32 %v3680, %v477
      %v3841 = vmul.f32 %v3681, %v478
      %v3842 = vmul.f32 %v3682, %v479
      %v3843 = vmul.f32 %v3683, %v480
      %v3844 = vmul.f32 %v3684, %v481
      %v3845 = vmul.f32 %v3685, %v482
      %v3846 = vmul.f32 %v3686, %v483
      %v3847 = vsel %vm688, %v3815, 0.0
      %v3848 = vsel %vm688, %v3816, 0.0
      %v3849 = vadd.f32 %v3847, %v3848
      %v3850 = vrot.slane %v3849, 4
      %v3851 = vadd.f32 %v3849, %v3850
      %v3852 = vrot.slane %v3851, 2
      %v3853 = vadd.f32 %v3851, %v3852
      %v3854 = vrot.slane %v3853, 1
      %v3855 = vadd.f32 %v3853, %v3854
      %v3856 = vsel %vm688, %v3817, 0.0
      %v3857 = vsel %vm688, %v3818, 0.0
      %v3858 = vadd.f32 %v3856, %v3857
      %v3859 = vrot.slane %v3858, 4
      %v3860 = vadd.f32 %v3858, %v3859
      %v3861 = vrot.slane %v3860, 2
      %v3862 = vadd.f32 %v3860, %v3861
      %v3863 = vrot.slane %v3862, 1
      %v3864 = vadd.f32 %v3862, %v3863
      %v3865 = vsel %vm688, %v3819, 0.0
      %v3866 = vsel %vm688, %v3820, 0.0
      %v3867 = vadd.f32 %v3865, %v3866
      %v3868 = vrot.slane %v3867, 4
      %v3869 = vadd.f32 %v3867, %v3868
      %v3870 = vrot.slane %v3869, 2
      %v3871 = vadd.f32 %v3869, %v3870
      %v3872 = vrot.slane %v3871, 1
      %v3873 = vadd.f32 %v3871, %v3872
      %v3874 = vsel %vm688, %v3821, 0.0
      %v3875 = vsel %vm688, %v3822, 0.0
      %v3876 = vadd.f32 %v3874, %v3875
      %v3877 = vrot.slane %v3876, 4
      %v3878 = vadd.f32 %v3876, %v3877
      %v3879 = vrot.slane %v3878, 2
      %v3880 = vadd.f32 %v3878, %v3879
      %v3881 = vrot.slane %v3880, 1
      %v3882 = vadd.f32 %v3880, %v3881
      %v3883 = vsel %vm688, %v3823, 0.0
      %v3884 = vsel %vm688, %v3824, 0.0
      %v3885 = vadd.f32 %v3883, %v3884
      %v3886 = vrot.slane %v3885, 4
      %v3887 = vadd.f32 %v3885, %v3886
      %v3888 = vrot.slane %v3887, 2
      %v3889 = vadd.f32 %v3887, %v3888
      %v3890 = vrot.slane %v3889, 1
      %v3891 = vadd.f32 %v3889, %v3890
      %v3892 = vsel %vm688, %v3825, 0.0
      %v3893 = vsel %vm688, %v3826, 0.0
      %v3894 = vadd.f32 %v3892, %v3893
      %v3895 = vrot.slane %v3894, 4
      %v3896 = vadd.f32 %v3894, %v3895
      %v3897 = vrot.slane %v3896, 2
      %v3898 = vadd.f32 %v3896, %v3897
      %v3899 = vrot.slane %v3898, 1
      %v3900 = vadd.f32 %v3898, %v3899
      %v3901 = vsel %vm688, %v3827, 0.0
      %v3902 = vsel %vm688, %v3828, 0.0
      %v3903 = vadd.f32 %v3901, %v3902
      %v3904 = vrot.slane %v3903, 4
      %v3905 = vadd.f32 %v3903, %v3904
      %v3906 = vrot.slane %v3905, 2
      %v3907 = vadd.f32 %v3905, %v3906
      %v3908 = vrot.slane %v3907, 1
      %v3909 = vadd.f32 %v3907, %v3908
      %v3910 = vsel %vm688, %v3829, 0.0
      %v3911 = vsel %vm688, %v3830, 0.0
      %v3912 = vadd.f32 %v3910, %v3911
      %v3913 = vrot.slane %v3912, 4
      %v3914 = vadd.f32 %v3912, %v3913
      %v3915 = vrot.slane %v3914, 2
      %v3916 = vadd.f32 %v3914, %v3915
      %v3917 = vrot.slane %v3916, 1
      %v3918 = vadd.f32 %v3916, %v3917
      %v3919 = vsel %vm688, %v3831, 0.0
      %v3920 = vsel %vm688, %v3832, 0.0
      %v3921 = vadd.f32 %v3919, %v3920
      %v3922 = vrot.slane %v3921, 4
      %v3923 = vadd.f32 %v3921, %v3922
      %v3924 = vrot.slane %v3923, 2
      %v3925 = vadd.f32 %v3923, %v3924
      %v3926 = vrot.slane %v3925, 1
      %v3927 = vadd.f32 %v3925, %v3926
      %v3928 = vsel %vm688, %v3833, 0.0
      %v3929 = vsel %vm688, %v3834, 0.0
      %v3930 = vadd.f32 %v3928, %v3929
      %v3931 = vrot.slane %v3930, 4
      %v3932 = vadd.f32 %v3930, %v3931
      %v3933 = vrot.slane %v3932, 2
      %v3934 = vadd.f32 %v3932, %v3933
      %v3935 = vrot.slane %v3934, 1
      %v3936 = vadd.f32 %v3934, %v3935
      %v3937 = vsel %vm688, %v3835, 0.0
      %v3938 = vsel %vm688, %v3836, 0.0
      %v3939 = vadd.f32 %v3937, %v3938
      %v3940 = vrot.slane %v3939, 4
      %v3941 = vadd.f32 %v3939, %v3940
      %v3942 = vrot.slane %v3941, 2
      %v3943 = vadd.f32 %v3941, %v3942
      %v3944 = vrot.slane %v3943, 1
      %v3945 = vadd.f32 %v3943, %v3944
      %v3946 = vsel %vm688, %v3837, 0.0
      %v3947 = vsel %vm688, %v3838, 0.0
      %v3948 = vadd.f32 %v3946, %v3947
      %v3949 = vrot.slane %v3948, 4
      %v3950 = vadd.f32 %v3948, %v3949
      %v3951 = vrot.slane %v3950, 2
      %v3952 = vadd.f32 %v3950, %v3951
      %v3953 = vrot.slane %v3952, 1
      %v3954 = vadd.f32 %v3952, %v3953
      %v3955 = vsel %vm688, %v3839, 0.0
      %v3956 = vsel %vm688, %v3840, 0.0
      %v3957 = vadd.f32 %v3955, %v3956
      %v3958 = vrot.slane %v3957, 4
      %v3959 = vadd.f32 %v3957, %v3958
      %v3960 = vrot.slane %v3959, 2
      %v3961 = vadd.f32 %v3959, %v3960
      %v3962 = vrot.slane %v3961, 1
      %v3963 = vadd.f32 %v3961, %v3962
      %v3964 = vsel %vm688, %v3841, 0.0
      %v3965 = vsel %vm688, %v3842, 0.0
      %v3966 = vadd.f32 %v3964, %v3965
      %v3967 = vrot.slane %v3966, 4
      %v3968 = vadd.f32 %v3966, %v3967
      %v3969 = vrot.slane %v3968, 2
      %v3970 = vadd.f32 %v3968, %v3969
      %v3971 = vrot.slane %v3970, 1
      %v3972 = vadd.f32 %v3970, %v3971
      %v3973 = vsel %vm688, %v3843, 0.0
      %v3974 = vsel %vm688, %v3844, 0.0
      %v3975 = vadd.f32 %v3973, %v3974
      %v3976 = vrot.slane %v3975, 4
      %v3977 = vadd.f32 %v3975, %v3976
      %v3978 = vrot.slane %v3977, 2
      %v3979 = vadd.f32 %v3977, %v3978
      %v3980 = vrot.slane %v3979, 1
      %v3981 = vadd.f32 %v3979, %v3980
      %v3982 = vsel %vm688, %v3845, 0.0
      %v3983 = vsel %vm688, %v3846, 0.0
      %v3984 = vadd.f32 %v3982, %v3983
      %v3985 = vrot.slane %v3984, 4
      %v3986 = vadd.f32 %v3984, %v3985
      %v3987 = vrot.slane %v3986, 2
      %v3988 = vadd.f32 %v3986, %v3987
      %v3989 = vrot.slane %v3988, 1
      %v3990 = vadd.f32 %v3988, %v3989
      %v4007 = vsel %vm2250, %v3716, %v3709
      %v4008 = vsel %vm2252, %v3723, %v4007
      %v4009 = vsel %vm2254, %v3730, %v4008
      %v4010 = vsel %vm2256, %v3737, %v4009
      %v4011 = vsel %vm2258, %v3744, %v4010
      %v4012 = vsel %vm2260, %v3751, %v4011
      %v4013 = vsel %vm2262, %v3758, %v4012
      %v4014 = vsel %vm2250, %v3772, %v3765
      %v4015 = vsel %vm2252, %v3779, %v4014
      %v4016 = vsel %vm2254, %v3786, %v4015
      %v4017 = vsel %vm2256, %v3793, %v4016
      %v4018 = vsel %vm2258, %v3800, %v4017
      %v4019 = vsel %vm2260, %v3807, %v4018
      %v4020 = vsel %vm2262, %v3814, %v4019
      %v4023 = vsel %vm488, %v4013, 0.0
      %v4024 = vsel %vm488, %v4020, 0.0
      %v4041 = vsel %vm2250, %v3864, %v3855
      %v4042 = vsel %vm2252, %v3873, %v4041
      %v4043 = vsel %vm2254, %v3882, %v4042
      %v4044 = vsel %vm2256, %v3891, %v4043
      %v4045 = vsel %vm2258, %v3900, %v4044
      %v4046 = vsel %vm2260, %v3909, %v4045
      %v4047 = vsel %vm2262, %v3918, %v4046
      %v4048 = vsel %vm2250, %v3936, %v3927
      %v4049 = vsel %vm2252, %v3945, %v4048
      %v4050 = vsel %vm2254, %v3954, %v4049
      %v4051 = vsel %vm2256, %v3963, %v4050
      %v4052 = vsel %vm2258, %v3972, %v4051
      %v4053 = vsel %vm2260, %v3981, %v4052
      %v4054 = vsel %vm2262, %v3990, %v4053
      %v4057 = vsel %vm688, %v4047, 0.0
      %v4058 = vsel %vm688, %v4054, 0.0
      %4059 = vst [vmem:[%s434] sm:$0xff] %v4023
      %4060 = vst [vmem:[%s434 + $0x10] sm:$0xff] %v4024
      %4061 = vst [vmem:[%s434 + $0x8] sm:$0xff] %v4057
      %4062 = vst [vmem:[%s434 + $0x18] sm:$0xff] %v4058
      %s4063 = smul.u32 2, %s22
      %p4064 = scmp.lt.s32.totalorder %s4063, 3
      %s4065 = scalar_select %p4064, %s4063, 3
      %s4066 = smul.addr %s4065, 2
      %s4067 = smul.addr %s4066, 8
      %s4068 = scalar_lea.vmem %s11, %s4067
      // Predicated region
      $region65: #{outer2_attention_batched.1} parent=63 // pred_check
        %p4069 = pneg %p286
      $region66: #{outer2_attention_batched.1} parent=63 // pred_check_branch
        %4071 = sbr.rel (%p4069) target = $region68
      $region67: #{outer2_attention_batched.1} parent=63 // pred_region
        %s4072 = smul.u32 2, %s22
      $region68: #{outer2_attention_batched.1} parent=63 // pred_fallthru
        _
    $region64: #{outer2_attention_batched.1} parent=5 // pred_fallthru
      _
    %p4073 = scmp.le.s32.totalorder 2, %s17
    // Predicated region
    $region69: #{outer2_attention_batched.1} parent=5 // pred_check
      %p4074 = pneg %p4073
    $region70: #{outer2_attention_batched.1} parent=5 // pred_check_branch
      %4076 = sbr.rel (%p4074) target = $region72
    $region71: #{outer2_attention_batched.1} parent=5 // pred_region
      %s4077 = ssub.s32 %s17, 2
      // Predicated region
      $region73: #{outer2_attention_batched.1} parent=71 // pred_check
        %p4078 = pneg %p292
      $region74: #{outer2_attention_batched.1} parent=71 // pred_check_branch
        %4080 = sbr.rel (%p4078) target = $region76
      $region75: #{outer2_attention_batched.1} parent=71 // pred_region
        %s4081 = smul.u32 2, %s23
        %p4082 = scmp.lt.s32.totalorder %s4081, 3
        %s4083 = scalar_select %p4082, %s4081, 3
        %s4084 = smul.addr %s4083, 2
        %s4085 = smul.addr %s4084, 8
        %s4086 = scalar_lea.vmem %s11, %s4085
      $region76: #{outer2_attention_batched.1} parent=71 // pred_fallthru
        _
    $region72: #{outer2_attention_batched.1} parent=5 // pred_fallthru
      _
  $region6: #{outer2_attention_batched.1} parent=0 // loop_footer
    %s21 = sadd.s32 1, %s17
  $region7: #{outer2_attention_batched.1} parent=0 // loop_footer_branch
    %16 = sbr.rel target = $region3
  $region8: #{outer2_attention_batched.1} parent=0 // loop_exit
    _

</llo_original>
